<compile_context>
chip_gen: v7x
topology: tpu7x:2x2x1
jax: 0.10.0
libtpu: 0.0.40
codegen_flags: <defaults>
</compile_context>

<pallas_src>
import numpy as np
import jax
import jax.numpy as jnp
from jax import lax
from jax.experimental import pallas as pl
from jax.experimental.pallas import tpu as pltpu

EPS = 1e-5
NB = 128          # batch tile == lane width: every vector op is fully lane-dense


# -----------------------------------------------------------------------------
# Fused forward kernel (one 128-sample batch tile per grid step)
# -----------------------------------------------------------------------------
def fused_cnn_kernel(x_ref, w1_ref, b1_ref, w2_ref, b2_ref,
                     fw1_ref, fb1_ref, fw2_ref, fb2_ref,
                     o_ref, y1_scr, y2_scr):
    # x_ref   : [28, 28, NB]  f32 VMEM (H, W, batch-in-lanes)
    # w1_ref  : [10, 25]      f32 SMEM (BN1 scale folded in), b1_ref: [10] SMEM
    # w2_ref  : [20, 250]     f32 SMEM (BN2 scale folded in), b2_ref: [20] SMEM
    # fw1_ref : [50, 320] bf16 VMEM, fb1_ref: [50, 1] f32 VMEM
    # fw2_ref : [C, 50]   bf16 VMEM, fb2_ref: [C, 1]  f32 VMEM
    # o_ref   : [C, NB]   f32
    # y1_scr  : [10, 12, 12, NB] f32 VMEM scratch (post conv1+bn1+pool+relu)
    # y2_scr  : [20, 16, NB]     f32 VMEM scratch (post conv2+bn2+pool+relu, CHW rows)

    # ---- conv1 (1->10, k=5) + folded BN1 + 2x2 maxpool + relu  (VPU) ---------
    # 4 output rows at a time keep the accumulator register-resident (12 vregs).
    def conv1_channel(co, carry):
        def conv1_block(rb, inner):
            row0 = pl.multiple_of(rb * 4, 4)
            acc = jnp.zeros((4, 24, NB), jnp.float32)
            for k in range(25):                         # taps unrolled (static offsets)
                dh, dw = k // 5, k % 5
                win = x_ref[pl.ds(row0 + dh, 4), pl.ds(dw, 24), :]
                acc = acc + win * w1_ref[co, k]
            c = acc + b1_ref[co]                        # folded BN1 shift (+conv bias)
            c = c.reshape(2, 2, 24, NB)
            c = jnp.maximum(c[:, 0], c[:, 1])           # pool H (major pairs)
            c = jnp.max(c.reshape(2, 12, 2, NB), axis=2)  # pool W (sublane pairs)
            y1_scr[co, pl.ds(rb * 2, 2), :, :] = jnp.maximum(c, 0.0)
            return inner
        return lax.fori_loop(0, 6, conv1_block, carry)
    lax.fori_loop(0, 10, conv1_channel, 0)

    # ---- conv2 (10->20, k=5) + folded BN2 + 2x2 maxpool + relu  (VPU) --------
    # Two output channels per pass reuse each loaded window twice; accumulators
    # (2 x 8 vregs) are loop-carried in registers across the cin reduction.
    def conv2_pair(p, carry):
        co0 = p * 2
        co1 = co0 + 1

        def conv2_cin(ci, accs):
            a0, a1 = accs
            base = ci * 25
            for k in range(25):                         # taps unrolled (static offsets)
                dh, dw = k // 5, k % 5
                win = y1_scr[ci, pl.ds(dh, 8), pl.ds(dw, 8), :]
                a0 = a0 + win * w2_ref[co0, base + k]
                a1 = a1 + win * w2_ref[co1, base + k]
            return a0, a1

        zero = jnp.zeros((8, 8, NB), jnp.float32)
        a0, a1 = lax.fori_loop(0, 10, conv2_cin, (zero, zero))

        for co, a in ((co0, a0), (co1, a1)):
            c = a + b2_ref[co]                          # folded BN2 shift (+conv bias)
            # conv2_drop (Dropout2d) is identity in eval mode.
            c = c.reshape(4, 2, 8, NB)
            c = jnp.maximum(c[:, 0], c[:, 1])           # pool H
            c = jnp.max(c.reshape(4, 4, 2, NB), axis=2)  # pool W
            c = jnp.maximum(c, 0.0)                     # [4, 4, NB]
            for h in range(4):                          # static-offset row stores
                y2_scr[co, pl.ds(h * 4, 4), :] = c[h]
        return carry
    lax.fori_loop(0, 10, conv2_pair, 0)

    # ---- fc1 (one 320-K MXU matmul) + relu, fc2, log_softmax ----------------
    # y2_scr rows are already in PyTorch CHW flatten order: row = c*16 + h*4 + w.
    y2 = y2_scr[...].reshape(320, NB).astype(jnp.bfloat16)          # clean relabel
    h = jnp.dot(fw1_ref[...], y2, preferred_element_type=jnp.float32)   # [50, NB]
    h = jnp.maximum(h + fb1_ref[...], 0.0)
    # F.dropout is identity in eval mode.
    logits = jnp.dot(fw2_ref[...], h.astype(jnp.bfloat16),
                     preferred_element_type=jnp.float32) + fb2_ref[...]  # [C, NB]
    m = jnp.max(logits, axis=0, keepdims=True)
    lse = jnp.log(jnp.sum(jnp.exp(logits - m), axis=0, keepdims=True))
    o_ref[...] = logits - m - lse


# -----------------------------------------------------------------------------
# Wrapper: BN folding, layout packing, single pallas_call
# -----------------------------------------------------------------------------
def cnn_mnist_forward(x_nchw, P):
    N = x_nchw.shape[0]
    C = P["fc2_b"].shape[0]
    Npad = ((N + NB - 1) // NB) * NB

    # NCHW (C=1) -> [28, 28, batch]; batch (lane dim) padded to a NB multiple.
    x = jnp.transpose(x_nchw[:, 0].astype(jnp.float32), (1, 2, 0))
    if Npad != N:
        x = jnp.pad(x, ((0, 0), (0, 0), (0, Npad - N)))

    # Eval-mode BN folded: scale into conv weights, shift becomes the bias.
    s1 = P["bn1_g"] / jnp.sqrt(P["bn1_rv"] + EPS)
    w1 = (P["conv1_w"][:, 0] * s1[:, None, None]).reshape(10, 25).astype(jnp.float32)
    b1 = ((P["conv1_b"] - P["bn1_rm"]) * s1 + P["bn1_b"]).astype(jnp.float32)
    s2 = P["bn2_g"] / jnp.sqrt(P["bn2_rv"] + EPS)
    w2 = (P["conv2_w"] * s2[:, None, None, None]).reshape(20, 250).astype(jnp.float32)
    b2 = ((P["conv2_b"] - P["bn2_rm"]) * s2 + P["bn2_b"]).astype(jnp.float32)

    fw1 = P["fc1_w"].astype(jnp.bfloat16)               # [50, 320] (CHW column order)
    fb1 = P["fc1_b"][:, None].astype(jnp.float32)       # [50, 1]
    fw2 = P["fc2_w"].astype(jnp.bfloat16)               # [C, 50]
    fb2 = P["fc2_b"][:, None].astype(jnp.float32)       # [C, 1]

    smem = pl.BlockSpec(memory_space=pltpu.MemorySpace.SMEM)
    out = pl.pallas_call(
        fused_cnn_kernel,
        out_shape=jax.ShapeDtypeStruct((C, Npad), jnp.float32),
        grid=(Npad // NB,),
        in_specs=[
            pl.BlockSpec((28, 28, NB), lambda i: (0, 0, i)),   # x (batch in lanes)
            smem,                                              # w1 [10, 25]
            smem,                                              # b1 [10]
            smem,                                              # w2 [20, 250]
            smem,                                              # b2 [20]
            pl.BlockSpec((50, 320), lambda i: (0, 0)),         # fw1 (bf16, MXU)
            pl.BlockSpec((50, 1), lambda i: (0, 0)),           # fb1
            pl.BlockSpec((C, 50), lambda i: (0, 0)),           # fw2 (bf16, MXU)
            pl.BlockSpec((C, 1), lambda i: (0, 0)),            # fb2
        ],
        out_specs=pl.BlockSpec((C, NB), lambda i: (0, i)),     # lane-dense stores
        scratch_shapes=[
            pltpu.VMEM((10, 12, 12, NB), jnp.float32),         # y1
            pltpu.VMEM((20, 16, NB), jnp.float32),             # y2 (CHW rows)
        ],
        compiler_params=pltpu.CompilerParams(
            dimension_semantics=("parallel",),                 # v7x: tiles across TCs
            vmem_limit_bytes=32 * 1024 * 1024),                # safe on v5e/v6e/v7x
    )(x, w1, b1, w2, b2, fw1, fb1, fw2, fb2)

    return out.T[:N]


# -----------------------------------------------------------------------------
# Pure-JAX reference mirroring the PyTorch module exactly (eval mode)
# -----------------------------------------------------------------------------
def reference_forward(x_nchw, P):
    def conv(x, w, b):
        return jax.lax.conv_general_dilated(
            x, w, (1, 1), "VALID",
            dimension_numbers=("NCHW", "OIHW", "NCHW")) + b[None, :, None, None]

    def bn(z, g, b, rm, rv):
        return ((z - rm[None, :, None, None]) / jnp.sqrt(rv + EPS)[None, :, None, None]
                * g[None, :, None, None] + b[None, :, None, None])

    def maxpool2(z):
        return jax.lax.reduce_window(z, -jnp.inf, jax.lax.max,
                                     (1, 1, 2, 2), (1, 1, 2, 2), "VALID")

    z = conv(x_nchw, P["conv1_w"], P["conv1_b"])
    z = jax.nn.relu(maxpool2(bn(z, P["bn1_g"], P["bn1_b"], P["bn1_rm"], P["bn1_rv"])))
    z = conv(z, P["conv2_w"], P["conv2_b"])
    z = bn(z, P["bn2_g"], P["bn2_b"], P["bn2_rm"], P["bn2_rv"])
    z = jax.nn.relu(maxpool2(z))
    z = z.reshape(z.shape[0], -1)
    z = jax.nn.relu(z @ P["fc1_w"].T + P["fc1_b"])
    z = z @ P["fc2_w"].T + P["fc2_b"]
    return jax.nn.log_softmax(z, axis=1)


# -----------------------------------------------------------------------------
if __name__ == "__main__":
    num_classes = 10
    batch = 2

    key = jax.random.PRNGKey(0)
    ks = jax.random.split(key, 20)
    f32 = jnp.float32
    P = {
        "conv1_w": 0.10 * jax.random.normal(ks[0], (10, 1, 5, 5), f32),
        "conv1_b": 0.10 * jax.random.normal(ks[1], (10,), f32),
        "conv2_w": 0.05 * jax.random.normal(ks[2], (20, 10, 5, 5), f32),
        "conv2_b": 0.10 * jax.random.normal(ks[3], (20,), f32),
        "bn1_g": 1.0 + 0.10 * jax.random.normal(ks[4], (10,), f32),
        "bn1_b": 0.10 * jax.random.normal(ks[5], (10,), f32),
        "bn1_rm": 0.10 * jax.random.normal(ks[6], (10,), f32),
        "bn1_rv": jax.random.uniform(ks[7], (10,), f32, 0.5, 1.5),
        "bn2_g": 1.0 + 0.10 * jax.random.normal(ks[8], (20,), f32),
        "bn2_b": 0.10 * jax.random.normal(ks[9], (20,), f32),
        "bn2_rm": 0.10 * jax.random.normal(ks[10], (20,), f32),
        "bn2_rv": jax.random.uniform(ks[11], (20,), f32, 0.5, 1.5),
        "fc1_w": 0.05 * jax.random.normal(ks[12], (50, 320), f32),
        "fc1_b": 0.10 * jax.random.normal(ks[13], (50,), f32),
        "fc2_w": 0.10 * jax.random.normal(ks[14], (num_classes, 50), f32),
        "fc2_b": 0.05 * jax.random.normal(ks[15], (num_classes,), f32),
    }

    # MNIST-shaped input (NCHW, as PyTorch); 28x28 is required by fc1's 320 = 20*4*4.
    x = jax.random.normal(ks[16], (batch, 1, 28, 28), f32)

    out = jax.jit(cnn_mnist_forward)(x, P)
    out = jax.block_until_ready(out)

    ref = jax.block_until_ready(reference_forward(x, P))

    out_np, ref_np = np.asarray(out), np.asarray(ref)
    assert out_np.shape == (batch, num_classes)
    # log-probabilities must exponentiate-sum to 1
    np.testing.assert_allclose(np.exp(out_np).sum(axis=1), np.ones(batch), atol=1e-3)
    # match the PyTorch-semantics reference (f32 convs, bf16 MXU fc layers)
    np.testing.assert_allclose(out_np, ref_np, rtol=5e-2, atol=5e-2)

    print("KERNEL_OK")
</pallas_src>

<mosaic_0001>
module attributes {stable_mosaic.version = 11 : i64} {
  func.func @fused_cnn_kernel(%arg0: i32, %arg1: memref<28x28x128xf32, #tpu.memory_space<vmem>>, %arg2: memref<10x25xf32, #tpu.memory_space<smem>>, %arg3: memref<10xf32, #tpu.memory_space<smem>>, %arg4: memref<20x250xf32, #tpu.memory_space<smem>>, %arg5: memref<20xf32, #tpu.memory_space<smem>>, %arg6: memref<50x320xbf16, #tpu.memory_space<vmem>>, %arg7: memref<50x1xf32, #tpu.memory_space<vmem>>, %arg8: memref<10x50xbf16, #tpu.memory_space<vmem>>, %arg9: memref<10x1xf32, #tpu.memory_space<vmem>>, %arg10: memref<10x128xf32, #tpu.memory_space<vmem>>, %arg11: memref<10x12x12x128xf32, #tpu.memory_space<vmem>>, %arg12: memref<20x16x128xf32, #tpu.memory_space<vmem>>) attributes {dimension_semantics = [#tpu.dimension_semantics<parallel>], iteration_bounds = array<i64: 1>, scalar_prefetch = 0 : i64, scratch_operands = 2 : i64, tpu.core_type = #tpu.core_type<tc>, window_params = [{transform_indices = @transform_0, window_bounds = array<i64: 28, 28, 128>}, {transform_indices = @transform_1, window_bounds = array<i64: 10, 25>}, {transform_indices = @transform_2, window_bounds = array<i64: 10>}, {transform_indices = @transform_3, window_bounds = array<i64: 20, 250>}, {transform_indices = @transform_4, window_bounds = array<i64: 20>}, {pipeline_mode = #tpu.pipeline_mode<synchronous>, transform_indices = @transform_5, window_bounds = array<i64: 50, 320>}, {pipeline_mode = #tpu.pipeline_mode<synchronous>, transform_indices = @transform_6, window_bounds = array<i64: 50, 1>}, {pipeline_mode = #tpu.pipeline_mode<synchronous>, transform_indices = @transform_7, window_bounds = array<i64: 10, 50>}, {pipeline_mode = #tpu.pipeline_mode<synchronous>, transform_indices = @transform_8, window_bounds = array<i64: 10, 1>}, {transform_indices = @transform_9, window_bounds = array<i64: 10, 128>}]} {
    %c0_i32 = arith.constant 0 : i32
    %c10_i32 = arith.constant 10 : i32
    %0 = arith.addi %c0_i32, %c10_i32 : i32
    %c1_i32 = arith.constant 1 : i32
    scf.for %arg13 = %c0_i32 to %0 step %c1_i32  : i32 {
      %c0_i32_21 = arith.constant 0 : i32
      %c6_i32 = arith.constant 6 : i32
      %31 = arith.addi %c0_i32_21, %c6_i32 : i32
      %c1_i32_22 = arith.constant 1 : i32
      scf.for %arg14 = %c0_i32_21 to %31 step %c1_i32_22  : i32 {
        %c4_i32 = arith.constant 4 : i32
        %32 = arith.muli %arg14, %c4_i32 : i32
        %33 = tpu.assume_multiple %32, 4 : i32
        %cst_24 = arith.constant 0.000000e+00 : f32
        %34 = vector.broadcast %cst_24 : f32 to vector<4x24x128xf32>
        %c0_i32_25 = arith.constant 0 : i32
        %35 = arith.addi %33, %c0_i32_25 : i32
        %36 = arith.index_cast %35 : i32 to index
        %c0_26 = arith.constant 0 : index
        %c0_27 = arith.constant 0 : index
        %37 = vector.load %arg1[%36, %c0_26, %c0_27] : memref<28x28x128xf32, #tpu.memory_space<vmem>>, vector<4x24x128xf32>
        %38 = arith.index_cast %arg13 : i32 to index
        %c0_28 = arith.constant 0 : index
        %39 = memref.load %arg2[%38, %c0_28] : memref<10x25xf32, #tpu.memory_space<smem>>
        %40 = vector.broadcast %39 : f32 to vector<4x24x128xf32>
        %41 = arith.mulf %37, %40 : vector<4x24x128xf32>
        %42 = arith.addf %34, %41 : vector<4x24x128xf32>
        %c0_i32_29 = arith.constant 0 : i32
        %43 = arith.addi %33, %c0_i32_29 : i32
        %44 = arith.index_cast %43 : i32 to index
        %c1 = arith.constant 1 : index
        %c0_30 = arith.constant 0 : index
        %45 = vector.load %arg1[%44, %c1, %c0_30] : memref<28x28x128xf32, #tpu.memory_space<vmem>>, vector<4x24x128xf32>
        %46 = arith.index_cast %arg13 : i32 to index
        %c1_31 = arith.constant 1 : index
        %47 = memref.load %arg2[%46, %c1_31] : memref<10x25xf32, #tpu.memory_space<smem>>
        %48 = vector.broadcast %47 : f32 to vector<4x24x128xf32>
        %49 = arith.mulf %45, %48 : vector<4x24x128xf32>
        %50 = arith.addf %42, %49 : vector<4x24x128xf32>
        %c0_i32_32 = arith.constant 0 : i32
        %51 = arith.addi %33, %c0_i32_32 : i32
        %52 = arith.index_cast %51 : i32 to index
        %c2 = arith.constant 2 : index
        %c0_33 = arith.constant 0 : index
        %53 = vector.load %arg1[%52, %c2, %c0_33] : memref<28x28x128xf32, #tpu.memory_space<vmem>>, vector<4x24x128xf32>
        %54 = arith.index_cast %arg13 : i32 to index
        %c2_34 = arith.constant 2 : index
        %55 = memref.load %arg2[%54, %c2_34] : memref<10x25xf32, #tpu.memory_space<smem>>
        %56 = vector.broadcast %55 : f32 to vector<4x24x128xf32>
        %57 = arith.mulf %53, %56 : vector<4x24x128xf32>
        %58 = arith.addf %50, %57 : vector<4x24x128xf32>
        %c0_i32_35 = arith.constant 0 : i32
        %59 = arith.addi %33, %c0_i32_35 : i32
        %60 = arith.index_cast %59 : i32 to index
        %c3 = arith.constant 3 : index
        %c0_36 = arith.constant 0 : index
        %61 = vector.load %arg1[%60, %c3, %c0_36] : memref<28x28x128xf32, #tpu.memory_space<vmem>>, vector<4x24x128xf32>
        %62 = arith.index_cast %arg13 : i32 to index
        %c3_37 = arith.constant 3 : index
        %63 = memref.load %arg2[%62, %c3_37] : memref<10x25xf32, #tpu.memory_space<smem>>
        %64 = vector.broadcast %63 : f32 to vector<4x24x128xf32>
        %65 = arith.mulf %61, %64 : vector<4x24x128xf32>
        %66 = arith.addf %58, %65 : vector<4x24x128xf32>
        %c0_i32_38 = arith.constant 0 : i32
        %67 = arith.addi %33, %c0_i32_38 : i32
        %68 = arith.index_cast %67 : i32 to index
        %c4 = arith.constant 4 : index
        %c0_39 = arith.constant 0 : index
        %69 = vector.load %arg1[%68, %c4, %c0_39] : memref<28x28x128xf32, #tpu.memory_space<vmem>>, vector<4x24x128xf32>
        %70 = arith.index_cast %arg13 : i32 to index
        %c4_40 = arith.constant 4 : index
        %71 = memref.load %arg2[%70, %c4_40] : memref<10x25xf32, #tpu.memory_space<smem>>
        %72 = vector.broadcast %71 : f32 to vector<4x24x128xf32>
        %73 = arith.mulf %69, %72 : vector<4x24x128xf32>
        %74 = arith.addf %66, %73 : vector<4x24x128xf32>
        %c1_i32_41 = arith.constant 1 : i32
        %75 = arith.addi %33, %c1_i32_41 : i32
        %76 = arith.index_cast %75 : i32 to index
        %c0_42 = arith.constant 0 : index
        %c0_43 = arith.constant 0 : index
        %77 = vector.load %arg1[%76, %c0_42, %c0_43] : memref<28x28x128xf32, #tpu.memory_space<vmem>>, vector<4x24x128xf32>
        %78 = arith.index_cast %arg13 : i32 to index
        %c5 = arith.constant 5 : index
        %79 = memref.load %arg2[%78, %c5] : memref<10x25xf32, #tpu.memory_space<smem>>
        %80 = vector.broadcast %79 : f32 to vector<4x24x128xf32>
        %81 = arith.mulf %77, %80 : vector<4x24x128xf32>
        %82 = arith.addf %74, %81 : vector<4x24x128xf32>
        %c1_i32_44 = arith.constant 1 : i32
        %83 = arith.addi %33, %c1_i32_44 : i32
        %84 = arith.index_cast %83 : i32 to index
        %c1_45 = arith.constant 1 : index
        %c0_46 = arith.constant 0 : index
        %85 = vector.load %arg1[%84, %c1_45, %c0_46] : memref<28x28x128xf32, #tpu.memory_space<vmem>>, vector<4x24x128xf32>
        %86 = arith.index_cast %arg13 : i32 to index
        %c6 = arith.constant 6 : index
        %87 = memref.load %arg2[%86, %c6] : memref<10x25xf32, #tpu.memory_space<smem>>
        %88 = vector.broadcast %87 : f32 to vector<4x24x128xf32>
        %89 = arith.mulf %85, %88 : vector<4x24x128xf32>
        %90 = arith.addf %82, %89 : vector<4x24x128xf32>
        %c1_i32_47 = arith.constant 1 : i32
        %91 = arith.addi %33, %c1_i32_47 : i32
        %92 = arith.index_cast %91 : i32 to index
        %c2_48 = arith.constant 2 : index
        %c0_49 = arith.constant 0 : index
        %93 = vector.load %arg1[%92, %c2_48, %c0_49] : memref<28x28x128xf32, #tpu.memory_space<vmem>>, vector<4x24x128xf32>
        %94 = arith.index_cast %arg13 : i32 to index
        %c7 = arith.constant 7 : index
        %95 = memref.load %arg2[%94, %c7] : memref<10x25xf32, #tpu.memory_space<smem>>
        %96 = vector.broadcast %95 : f32 to vector<4x24x128xf32>
        %97 = arith.mulf %93, %96 : vector<4x24x128xf32>
        %98 = arith.addf %90, %97 : vector<4x24x128xf32>
        %c1_i32_50 = arith.constant 1 : i32
        %99 = arith.addi %33, %c1_i32_50 : i32
        %100 = arith.index_cast %99 : i32 to index
        %c3_51 = arith.constant 3 : index
        %c0_52 = arith.constant 0 : index
        %101 = vector.load %arg1[%100, %c3_51, %c0_52] : memref<28x28x128xf32, #tpu.memory_space<vmem>>, vector<4x24x128xf32>
        %102 = arith.index_cast %arg13 : i32 to index
        %c8 = arith.constant 8 : index
        %103 = memref.load %arg2[%102, %c8] : memref<10x25xf32, #tpu.memory_space<smem>>
        %104 = vector.broadcast %103 : f32 to vector<4x24x128xf32>
        %105 = arith.mulf %101, %104 : vector<4x24x128xf32>
        %106 = arith.addf %98, %105 : vector<4x24x128xf32>
        %c1_i32_53 = arith.constant 1 : i32
        %107 = arith.addi %33, %c1_i32_53 : i32
        %108 = arith.index_cast %107 : i32 to index
        %c4_54 = arith.constant 4 : index
        %c0_55 = arith.constant 0 : index
        %109 = vector.load %arg1[%108, %c4_54, %c0_55] : memref<28x28x128xf32, #tpu.memory_space<vmem>>, vector<4x24x128xf32>
        %110 = arith.index_cast %arg13 : i32 to index
        %c9 = arith.constant 9 : index
        %111 = memref.load %arg2[%110, %c9] : memref<10x25xf32, #tpu.memory_space<smem>>
        %112 = vector.broadcast %111 : f32 to vector<4x24x128xf32>
        %113 = arith.mulf %109, %112 : vector<4x24x128xf32>
        %114 = arith.addf %106, %113 : vector<4x24x128xf32>
        %c2_i32 = arith.constant 2 : i32
        %115 = arith.addi %33, %c2_i32 : i32
        %116 = arith.index_cast %115 : i32 to index
        %c0_56 = arith.constant 0 : index
        %c0_57 = arith.constant 0 : index
        %117 = vector.load %arg1[%116, %c0_56, %c0_57] : memref<28x28x128xf32, #tpu.memory_space<vmem>>, vector<4x24x128xf32>
        %118 = arith.index_cast %arg13 : i32 to index
        %c10 = arith.constant 10 : index
        %119 = memref.load %arg2[%118, %c10] : memref<10x25xf32, #tpu.memory_space<smem>>
        %120 = vector.broadcast %119 : f32 to vector<4x24x128xf32>
        %121 = arith.mulf %117, %120 : vector<4x24x128xf32>
        %122 = arith.addf %114, %121 : vector<4x24x128xf32>
        %c2_i32_58 = arith.constant 2 : i32
        %123 = arith.addi %33, %c2_i32_58 : i32
        %124 = arith.index_cast %123 : i32 to index
        %c1_59 = arith.constant 1 : index
        %c0_60 = arith.constant 0 : index
        %125 = vector.load %arg1[%124, %c1_59, %c0_60] : memref<28x28x128xf32, #tpu.memory_space<vmem>>, vector<4x24x128xf32>
        %126 = arith.index_cast %arg13 : i32 to index
        %c11 = arith.constant 11 : index
        %127 = memref.load %arg2[%126, %c11] : memref<10x25xf32, #tpu.memory_space<smem>>
        %128 = vector.broadcast %127 : f32 to vector<4x24x128xf32>
        %129 = arith.mulf %125, %128 : vector<4x24x128xf32>
        %130 = arith.addf %122, %129 : vector<4x24x128xf32>
        %c2_i32_61 = arith.constant 2 : i32
        %131 = arith.addi %33, %c2_i32_61 : i32
        %132 = arith.index_cast %131 : i32 to index
        %c2_62 = arith.constant 2 : index
        %c0_63 = arith.constant 0 : index
        %133 = vector.load %arg1[%132, %c2_62, %c0_63] : memref<28x28x128xf32, #tpu.memory_space<vmem>>, vector<4x24x128xf32>
        %134 = arith.index_cast %arg13 : i32 to index
        %c12 = arith.constant 12 : index
        %135 = memref.load %arg2[%134, %c12] : memref<10x25xf32, #tpu.memory_space<smem>>
        %136 = vector.broadcast %135 : f32 to vector<4x24x128xf32>
        %137 = arith.mulf %133, %136 : vector<4x24x128xf32>
        %138 = arith.addf %130, %137 : vector<4x24x128xf32>
        %c2_i32_64 = arith.constant 2 : i32
        %139 = arith.addi %33, %c2_i32_64 : i32
        %140 = arith.index_cast %139 : i32 to index
        %c3_65 = arith.constant 3 : index
        %c0_66 = arith.constant 0 : index
        %141 = vector.load %arg1[%140, %c3_65, %c0_66] : memref<28x28x128xf32, #tpu.memory_space<vmem>>, vector<4x24x128xf32>
        %142 = arith.index_cast %arg13 : i32 to index
        %c13 = arith.constant 13 : index
        %143 = memref.load %arg2[%142, %c13] : memref<10x25xf32, #tpu.memory_space<smem>>
        %144 = vector.broadcast %143 : f32 to vector<4x24x128xf32>
        %145 = arith.mulf %141, %144 : vector<4x24x128xf32>
        %146 = arith.addf %138, %145 : vector<4x24x128xf32>
        %c2_i32_67 = arith.constant 2 : i32
        %147 = arith.addi %33, %c2_i32_67 : i32
        %148 = arith.index_cast %147 : i32 to index
        %c4_68 = arith.constant 4 : index
        %c0_69 = arith.constant 0 : index
        %149 = vector.load %arg1[%148, %c4_68, %c0_69] : memref<28x28x128xf32, #tpu.memory_space<vmem>>, vector<4x24x128xf32>
        %150 = arith.index_cast %arg13 : i32 to index
        %c14 = arith.constant 14 : index
        %151 = memref.load %arg2[%150, %c14] : memref<10x25xf32, #tpu.memory_space<smem>>
        %152 = vector.broadcast %151 : f32 to vector<4x24x128xf32>
        %153 = arith.mulf %149, %152 : vector<4x24x128xf32>
        %154 = arith.addf %146, %153 : vector<4x24x128xf32>
        %c3_i32 = arith.constant 3 : i32
        %155 = arith.addi %33, %c3_i32 : i32
        %156 = arith.index_cast %155 : i32 to index
        %c0_70 = arith.constant 0 : index
        %c0_71 = arith.constant 0 : index
        %157 = vector.load %arg1[%156, %c0_70, %c0_71] : memref<28x28x128xf32, #tpu.memory_space<vmem>>, vector<4x24x128xf32>
        %158 = arith.index_cast %arg13 : i32 to index
        %c15 = arith.constant 15 : index
        %159 = memref.load %arg2[%158, %c15] : memref<10x25xf32, #tpu.memory_space<smem>>
        %160 = vector.broadcast %159 : f32 to vector<4x24x128xf32>
        %161 = arith.mulf %157, %160 : vector<4x24x128xf32>
        %162 = arith.addf %154, %161 : vector<4x24x128xf32>
        %c3_i32_72 = arith.constant 3 : i32
        %163 = arith.addi %33, %c3_i32_72 : i32
        %164 = arith.index_cast %163 : i32 to index
        %c1_73 = arith.constant 1 : index
        %c0_74 = arith.constant 0 : index
        %165 = vector.load %arg1[%164, %c1_73, %c0_74] : memref<28x28x128xf32, #tpu.memory_space<vmem>>, vector<4x24x128xf32>
        %166 = arith.index_cast %arg13 : i32 to index
        %c16 = arith.constant 16 : index
        %167 = memref.load %arg2[%166, %c16] : memref<10x25xf32, #tpu.memory_space<smem>>
        %168 = vector.broadcast %167 : f32 to vector<4x24x128xf32>
        %169 = arith.mulf %165, %168 : vector<4x24x128xf32>
        %170 = arith.addf %162, %169 : vector<4x24x128xf32>
        %c3_i32_75 = arith.constant 3 : i32
        %171 = arith.addi %33, %c3_i32_75 : i32
        %172 = arith.index_cast %171 : i32 to index
        %c2_76 = arith.constant 2 : index
        %c0_77 = arith.constant 0 : index
        %173 = vector.load %arg1[%172, %c2_76, %c0_77] : memref<28x28x128xf32, #tpu.memory_space<vmem>>, vector<4x24x128xf32>
        %174 = arith.index_cast %arg13 : i32 to index
        %c17 = arith.constant 17 : index
        %175 = memref.load %arg2[%174, %c17] : memref<10x25xf32, #tpu.memory_space<smem>>
        %176 = vector.broadcast %175 : f32 to vector<4x24x128xf32>
        %177 = arith.mulf %173, %176 : vector<4x24x128xf32>
        %178 = arith.addf %170, %177 : vector<4x24x128xf32>
        %c3_i32_78 = arith.constant 3 : i32
        %179 = arith.addi %33, %c3_i32_78 : i32
        %180 = arith.index_cast %179 : i32 to index
        %c3_79 = arith.constant 3 : index
        %c0_80 = arith.constant 0 : index
        %181 = vector.load %arg1[%180, %c3_79, %c0_80] : memref<28x28x128xf32, #tpu.memory_space<vmem>>, vector<4x24x128xf32>
        %182 = arith.index_cast %arg13 : i32 to index
        %c18 = arith.constant 18 : index
        %183 = memref.load %arg2[%182, %c18] : memref<10x25xf32, #tpu.memory_space<smem>>
        %184 = vector.broadcast %183 : f32 to vector<4x24x128xf32>
        %185 = arith.mulf %181, %184 : vector<4x24x128xf32>
        %186 = arith.addf %178, %185 : vector<4x24x128xf32>
        %c3_i32_81 = arith.constant 3 : i32
        %187 = arith.addi %33, %c3_i32_81 : i32
        %188 = arith.index_cast %187 : i32 to index
        %c4_82 = arith.constant 4 : index
        %c0_83 = arith.constant 0 : index
        %189 = vector.load %arg1[%188, %c4_82, %c0_83] : memref<28x28x128xf32, #tpu.memory_space<vmem>>, vector<4x24x128xf32>
        %190 = arith.index_cast %arg13 : i32 to index
        %c19 = arith.constant 19 : index
        %191 = memref.load %arg2[%190, %c19] : memref<10x25xf32, #tpu.memory_space<smem>>
        %192 = vector.broadcast %191 : f32 to vector<4x24x128xf32>
        %193 = arith.mulf %189, %192 : vector<4x24x128xf32>
        %194 = arith.addf %186, %193 : vector<4x24x128xf32>
        %c4_i32_84 = arith.constant 4 : i32
        %195 = arith.addi %33, %c4_i32_84 : i32
        %196 = arith.index_cast %195 : i32 to index
        %c0_85 = arith.constant 0 : index
        %c0_86 = arith.constant 0 : index
        %197 = vector.load %arg1[%196, %c0_85, %c0_86] : memref<28x28x128xf32, #tpu.memory_space<vmem>>, vector<4x24x128xf32>
        %198 = arith.index_cast %arg13 : i32 to index
        %c20 = arith.constant 20 : index
        %199 = memref.load %arg2[%198, %c20] : memref<10x25xf32, #tpu.memory_space<smem>>
        %200 = vector.broadcast %199 : f32 to vector<4x24x128xf32>
        %201 = arith.mulf %197, %200 : vector<4x24x128xf32>
        %202 = arith.addf %194, %201 : vector<4x24x128xf32>
        %c4_i32_87 = arith.constant 4 : i32
        %203 = arith.addi %33, %c4_i32_87 : i32
        %204 = arith.index_cast %203 : i32 to index
        %c1_88 = arith.constant 1 : index
        %c0_89 = arith.constant 0 : index
        %205 = vector.load %arg1[%204, %c1_88, %c0_89] : memref<28x28x128xf32, #tpu.memory_space<vmem>>, vector<4x24x128xf32>
        %206 = arith.index_cast %arg13 : i32 to index
        %c21 = arith.constant 21 : index
        %207 = memref.load %arg2[%206, %c21] : memref<10x25xf32, #tpu.memory_space<smem>>
        %208 = vector.broadcast %207 : f32 to vector<4x24x128xf32>
        %209 = arith.mulf %205, %208 : vector<4x24x128xf32>
        %210 = arith.addf %202, %209 : vector<4x24x128xf32>
        %c4_i32_90 = arith.constant 4 : i32
        %211 = arith.addi %33, %c4_i32_90 : i32
        %212 = arith.index_cast %211 : i32 to index
        %c2_91 = arith.constant 2 : index
        %c0_92 = arith.constant 0 : index
        %213 = vector.load %arg1[%212, %c2_91, %c0_92] : memref<28x28x128xf32, #tpu.memory_space<vmem>>, vector<4x24x128xf32>
        %214 = arith.index_cast %arg13 : i32 to index
        %c22 = arith.constant 22 : index
        %215 = memref.load %arg2[%214, %c22] : memref<10x25xf32, #tpu.memory_space<smem>>
        %216 = vector.broadcast %215 : f32 to vector<4x24x128xf32>
        %217 = arith.mulf %213, %216 : vector<4x24x128xf32>
        %218 = arith.addf %210, %217 : vector<4x24x128xf32>
        %c4_i32_93 = arith.constant 4 : i32
        %219 = arith.addi %33, %c4_i32_93 : i32
        %220 = arith.index_cast %219 : i32 to index
        %c3_94 = arith.constant 3 : index
        %c0_95 = arith.constant 0 : index
        %221 = vector.load %arg1[%220, %c3_94, %c0_95] : memref<28x28x128xf32, #tpu.memory_space<vmem>>, vector<4x24x128xf32>
        %222 = arith.index_cast %arg13 : i32 to index
        %c23 = arith.constant 23 : index
        %223 = memref.load %arg2[%222, %c23] : memref<10x25xf32, #tpu.memory_space<smem>>
        %224 = vector.broadcast %223 : f32 to vector<4x24x128xf32>
        %225 = arith.mulf %221, %224 : vector<4x24x128xf32>
        %226 = arith.addf %218, %225 : vector<4x24x128xf32>
        %c4_i32_96 = arith.constant 4 : i32
        %227 = arith.addi %33, %c4_i32_96 : i32
        %228 = arith.index_cast %227 : i32 to index
        %c4_97 = arith.constant 4 : index
        %c0_98 = arith.constant 0 : index
        %229 = vector.load %arg1[%228, %c4_97, %c0_98] : memref<28x28x128xf32, #tpu.memory_space<vmem>>, vector<4x24x128xf32>
        %230 = arith.index_cast %arg13 : i32 to index
        %c24 = arith.constant 24 : index
        %231 = memref.load %arg2[%230, %c24] : memref<10x25xf32, #tpu.memory_space<smem>>
        %232 = vector.broadcast %231 : f32 to vector<4x24x128xf32>
        %233 = arith.mulf %229, %232 : vector<4x24x128xf32>
        %234 = arith.addf %226, %233 : vector<4x24x128xf32>
        %235 = arith.index_cast %arg13 : i32 to index
        %236 = memref.load %arg3[%235] : memref<10xf32, #tpu.memory_space<smem>>
        %237 = vector.broadcast %236 : f32 to vector<4x24x128xf32>
        %238 = arith.addf %234, %237 : vector<4x24x128xf32>
        %239 = vector.shape_cast %238 : vector<4x24x128xf32> to vector<2x2x24x128xf32>
        %240 = vector.extract_strided_slice %239 {offsets = [0, 0, 0, 0], sizes = [2, 1, 24, 128], strides = [1, 1, 1, 1]} : vector<2x2x24x128xf32> to vector<2x1x24x128xf32>
        %241 = vector.shape_cast %240 : vector<2x1x24x128xf32> to vector<2x24x128xf32>
        %242 = vector.extract_strided_slice %239 {offsets = [0, 1, 0, 0], sizes = [2, 1, 24, 128], strides = [1, 1, 1, 1]} : vector<2x2x24x128xf32> to vector<2x1x24x128xf32>
        %243 = vector.shape_cast %242 : vector<2x1x24x128xf32> to vector<2x24x128xf32>
        %244 = arith.maximumf %241, %243 : vector<2x24x128xf32>
        %245 = vector.shape_cast %244 : vector<2x24x128xf32> to vector<2x12x2x128xf32>
        %cst_99 = arith.constant dense<0xFF800000> : vector<2x12x128xf32>
        %246 = vector.multi_reduction <maximumf>, %245, %cst_99 [2] : vector<2x12x2x128xf32> to vector<2x12x128xf32>
        %cst_100 = arith.constant 0.000000e+00 : f32
        %247 = vector.broadcast %cst_100 : f32 to vector<2x12x128xf32>
        %248 = arith.maximumf %246, %247 : vector<2x12x128xf32>
        %c2_i32_101 = arith.constant 2 : i32
        %249 = arith.muli %arg14, %c2_i32_101 : i32
        %250 = arith.index_cast %arg13 : i32 to index
        %251 = arith.index_cast %249 : i32 to index
        %c0_102 = arith.constant 0 : index
        %c0_103 = arith.constant 0 : index
        %252 = vector.load %arg11[%250, %251, %c0_102, %c0_103] : memref<10x12x12x128xf32, #tpu.memory_space<vmem>>, vector<1x2x12x128xf32>
        %253 = vector.shape_cast %252 : vector<1x2x12x128xf32> to vector<2x12x128xf32>
        %254 = vector.shape_cast %248 : vector<2x12x128xf32> to vector<1x2x12x128xf32>
        tpu.vector_store %arg11[%250, %251, %c0_102, %c0_103], %254 {strides = array<i32>} : memref<10x12x12x128xf32, #tpu.memory_space<vmem>>, vector<1x2x12x128xf32>,
      }
      %c6_i32_23 = arith.constant 6 : i32
    }
    %c10_i32_0 = arith.constant 10 : i32
    %c0_i32_1 = arith.constant 0 : i32
    %c10_i32_2 = arith.constant 10 : i32
    %1 = arith.addi %c0_i32_1, %c10_i32_2 : i32
    %c1_i32_3 = arith.constant 1 : i32
    scf.for %arg13 = %c0_i32_1 to %1 step %c1_i32_3  : i32 {
      %c2_i32 = arith.constant 2 : i32
      %31 = arith.muli %arg13, %c2_i32 : i32
      %c1_i32_21 = arith.constant 1 : i32
      %32 = arith.addi %31, %c1_i32_21 : i32
      %cst_22 = arith.constant 0.000000e+00 : f32
      %33 = vector.broadcast %cst_22 : f32 to vector<8x8x128xf32>
      %c0_i32_23 = arith.constant 0 : i32
      %c10_i32_24 = arith.constant 10 : i32
      %34 = arith.addi %c0_i32_23, %c10_i32_24 : i32
      %c1_i32_25 = arith.constant 1 : i32
      %35:2 = scf.for %arg14 = %c0_i32_23 to %34 step %c1_i32_25 iter_args(%arg15 = %33, %arg16 = %33) -> (vector<8x8x128xf32>, vector<8x8x128xf32>)  : i32 {
        %c25_i32 = arith.constant 25 : i32
        %112 = arith.muli %arg14, %c25_i32 : i32
        %113 = arith.index_cast %arg14 : i32 to index
        %c0_44 = arith.constant 0 : index
        %c0_45 = arith.constant 0 : index
        %c0_46 = arith.constant 0 : index
        %114 = vector.load %arg11[%113, %c0_44, %c0_45, %c0_46] : memref<10x12x12x128xf32, #tpu.memory_space<vmem>>, vector<1x8x8x128xf32>
        %115 = vector.shape_cast %114 : vector<1x8x8x128xf32> to vector<8x8x128xf32>
        %c0_i32_47 = arith.constant 0 : i32
        %116 = arith.addi %112, %c0_i32_47 : i32
        %117 = arith.index_cast %31 : i32 to index
        %118 = arith.index_cast %116 : i32 to index
        %119 = memref.load %arg4[%117, %118] : memref<20x250xf32, #tpu.memory_space<smem>>
        %120 = vector.broadcast %119 : f32 to vector<8x8x128xf32>
        %121 = arith.mulf %115, %120 : vector<8x8x128xf32>
        %122 = arith.addf %arg15, %121 : vector<8x8x128xf32>
        %c0_i32_48 = arith.constant 0 : i32
        %123 = arith.addi %112, %c0_i32_48 : i32
        %124 = arith.index_cast %32 : i32 to index
        %125 = arith.index_cast %123 : i32 to index
        %126 = memref.load %arg4[%124, %125] : memref<20x250xf32, #tpu.memory_space<smem>>
        %127 = vector.broadcast %126 : f32 to vector<8x8x128xf32>
        %128 = arith.mulf %115, %127 : vector<8x8x128xf32>
        %129 = arith.addf %arg16, %128 : vector<8x8x128xf32>
        %130 = arith.index_cast %arg14 : i32 to index
        %c0_49 = arith.constant 0 : index
        %c1 = arith.constant 1 : index
        %c0_50 = arith.constant 0 : index
        %131 = vector.load %arg11[%130, %c0_49, %c1, %c0_50] : memref<10x12x12x128xf32, #tpu.memory_space<vmem>>, vector<1x8x8x128xf32>
        %132 = vector.shape_cast %131 : vector<1x8x8x128xf32> to vector<8x8x128xf32>
        %c1_i32_51 = arith.constant 1 : i32
        %133 = arith.addi %112, %c1_i32_51 : i32
        %134 = arith.index_cast %31 : i32 to index
        %135 = arith.index_cast %133 : i32 to index
        %136 = memref.load %arg4[%134, %135] : memref<20x250xf32, #tpu.memory_space<smem>>
        %137 = vector.broadcast %136 : f32 to vector<8x8x128xf32>
        %138 = arith.mulf %132, %137 : vector<8x8x128xf32>
        %139 = arith.addf %122, %138 : vector<8x8x128xf32>
        %c1_i32_52 = arith.constant 1 : i32
        %140 = arith.addi %112, %c1_i32_52 : i32
        %141 = arith.index_cast %32 : i32 to index
        %142 = arith.index_cast %140 : i32 to index
        %143 = memref.load %arg4[%141, %142] : memref<20x250xf32, #tpu.memory_space<smem>>
        %144 = vector.broadcast %143 : f32 to vector<8x8x128xf32>
        %145 = arith.mulf %132, %144 : vector<8x8x128xf32>
        %146 = arith.addf %129, %145 : vector<8x8x128xf32>
        %147 = arith.index_cast %arg14 : i32 to index
        %c0_53 = arith.constant 0 : index
        %c2 = arith.constant 2 : index
        %c0_54 = arith.constant 0 : index
        %148 = vector.load %arg11[%147, %c0_53, %c2, %c0_54] : memref<10x12x12x128xf32, #tpu.memory_space<vmem>>, vector<1x8x8x128xf32>
        %149 = vector.shape_cast %148 : vector<1x8x8x128xf32> to vector<8x8x128xf32>
        %c2_i32_55 = arith.constant 2 : i32
        %150 = arith.addi %112, %c2_i32_55 : i32
        %151 = arith.index_cast %31 : i32 to index
        %152 = arith.index_cast %150 : i32 to index
        %153 = memref.load %arg4[%151, %152] : memref<20x250xf32, #tpu.memory_space<smem>>
        %154 = vector.broadcast %153 : f32 to vector<8x8x128xf32>
        %155 = arith.mulf %149, %154 : vector<8x8x128xf32>
        %156 = arith.addf %139, %155 : vector<8x8x128xf32>
        %c2_i32_56 = arith.constant 2 : i32
        %157 = arith.addi %112, %c2_i32_56 : i32
        %158 = arith.index_cast %32 : i32 to index
        %159 = arith.index_cast %157 : i32 to index
        %160 = memref.load %arg4[%158, %159] : memref<20x250xf32, #tpu.memory_space<smem>>
        %161 = vector.broadcast %160 : f32 to vector<8x8x128xf32>
        %162 = arith.mulf %149, %161 : vector<8x8x128xf32>
        %163 = arith.addf %146, %162 : vector<8x8x128xf32>
        %164 = arith.index_cast %arg14 : i32 to index
        %c0_57 = arith.constant 0 : index
        %c3 = arith.constant 3 : index
        %c0_58 = arith.constant 0 : index
        %165 = vector.load %arg11[%164, %c0_57, %c3, %c0_58] : memref<10x12x12x128xf32, #tpu.memory_space<vmem>>, vector<1x8x8x128xf32>
        %166 = vector.shape_cast %165 : vector<1x8x8x128xf32> to vector<8x8x128xf32>
        %c3_i32 = arith.constant 3 : i32
        %167 = arith.addi %112, %c3_i32 : i32
        %168 = arith.index_cast %31 : i32 to index
        %169 = arith.index_cast %167 : i32 to index
        %170 = memref.load %arg4[%168, %169] : memref<20x250xf32, #tpu.memory_space<smem>>
        %171 = vector.broadcast %170 : f32 to vector<8x8x128xf32>
        %172 = arith.mulf %166, %171 : vector<8x8x128xf32>
        %173 = arith.addf %156, %172 : vector<8x8x128xf32>
        %c3_i32_59 = arith.constant 3 : i32
        %174 = arith.addi %112, %c3_i32_59 : i32
        %175 = arith.index_cast %32 : i32 to index
        %176 = arith.index_cast %174 : i32 to index
        %177 = memref.load %arg4[%175, %176] : memref<20x250xf32, #tpu.memory_space<smem>>
        %178 = vector.broadcast %177 : f32 to vector<8x8x128xf32>
        %179 = arith.mulf %166, %178 : vector<8x8x128xf32>
        %180 = arith.addf %163, %179 : vector<8x8x128xf32>
        %181 = arith.index_cast %arg14 : i32 to index
        %c0_60 = arith.constant 0 : index
        %c4_61 = arith.constant 4 : index
        %c0_62 = arith.constant 0 : index
        %182 = vector.load %arg11[%181, %c0_60, %c4_61, %c0_62] : memref<10x12x12x128xf32, #tpu.memory_space<vmem>>, vector<1x8x8x128xf32>
        %183 = vector.shape_cast %182 : vector<1x8x8x128xf32> to vector<8x8x128xf32>
        %c4_i32 = arith.constant 4 : i32
        %184 = arith.addi %112, %c4_i32 : i32
        %185 = arith.index_cast %31 : i32 to index
        %186 = arith.index_cast %184 : i32 to index
        %187 = memref.load %arg4[%185, %186] : memref<20x250xf32, #tpu.memory_space<smem>>
        %188 = vector.broadcast %187 : f32 to vector<8x8x128xf32>
        %189 = arith.mulf %183, %188 : vector<8x8x128xf32>
        %190 = arith.addf %173, %189 : vector<8x8x128xf32>
        %c4_i32_63 = arith.constant 4 : i32
        %191 = arith.addi %112, %c4_i32_63 : i32
        %192 = arith.index_cast %32 : i32 to index
        %193 = arith.index_cast %191 : i32 to index
        %194 = memref.load %arg4[%192, %193] : memref<20x250xf32, #tpu.memory_space<smem>>
        %195 = vector.broadcast %194 : f32 to vector<8x8x128xf32>
        %196 = arith.mulf %183, %195 : vector<8x8x128xf32>
        %197 = arith.addf %180, %196 : vector<8x8x128xf32>
        %198 = arith.index_cast %arg14 : i32 to index
        %c1_64 = arith.constant 1 : index
        %c0_65 = arith.constant 0 : index
        %c0_66 = arith.constant 0 : index
        %199 = vector.load %arg11[%198, %c1_64, %c0_65, %c0_66] : memref<10x12x12x128xf32, #tpu.memory_space<vmem>>, vector<1x8x8x128xf32>
        %200 = vector.shape_cast %199 : vector<1x8x8x128xf32> to vector<8x8x128xf32>
        %c5_i32 = arith.constant 5 : i32
        %201 = arith.addi %112, %c5_i32 : i32
        %202 = arith.index_cast %31 : i32 to index
        %203 = arith.index_cast %201 : i32 to index
        %204 = memref.load %arg4[%202, %203] : memref<20x250xf32, #tpu.memory_space<smem>>
        %205 = vector.broadcast %204 : f32 to vector<8x8x128xf32>
        %206 = arith.mulf %200, %205 : vector<8x8x128xf32>
        %207 = arith.addf %190, %206 : vector<8x8x128xf32>
        %c5_i32_67 = arith.constant 5 : i32
        %208 = arith.addi %112, %c5_i32_67 : i32
        %209 = arith.index_cast %32 : i32 to index
        %210 = arith.index_cast %208 : i32 to index
        %211 = memref.load %arg4[%209, %210] : memref<20x250xf32, #tpu.memory_space<smem>>
        %212 = vector.broadcast %211 : f32 to vector<8x8x128xf32>
        %213 = arith.mulf %200, %212 : vector<8x8x128xf32>
        %214 = arith.addf %197, %213 : vector<8x8x128xf32>
        %215 = arith.index_cast %arg14 : i32 to index
        %c1_68 = arith.constant 1 : index
        %c1_69 = arith.constant 1 : index
        %c0_70 = arith.constant 0 : index
        %216 = vector.load %arg11[%215, %c1_68, %c1_69, %c0_70] : memref<10x12x12x128xf32, #tpu.memory_space<vmem>>, vector<1x8x8x128xf32>
        %217 = vector.shape_cast %216 : vector<1x8x8x128xf32> to vector<8x8x128xf32>
        %c6_i32 = arith.constant 6 : i32
        %218 = arith.addi %112, %c6_i32 : i32
        %219 = arith.index_cast %31 : i32 to index
        %220 = arith.index_cast %218 : i32 to index
        %221 = memref.load %arg4[%219, %220] : memref<20x250xf32, #tpu.memory_space<smem>>
        %222 = vector.broadcast %221 : f32 to vector<8x8x128xf32>
        %223 = arith.mulf %217, %222 : vector<8x8x128xf32>
        %224 = arith.addf %207, %223 : vector<8x8x128xf32>
        %c6_i32_71 = arith.constant 6 : i32
        %225 = arith.addi %112, %c6_i32_71 : i32
        %226 = arith.index_cast %32 : i32 to index
        %227 = arith.index_cast %225 : i32 to index
        %228 = memref.load %arg4[%226, %227] : memref<20x250xf32, #tpu.memory_space<smem>>
        %229 = vector.broadcast %228 : f32 to vector<8x8x128xf32>
        %230 = arith.mulf %217, %229 : vector<8x8x128xf32>
        %231 = arith.addf %214, %230 : vector<8x8x128xf32>
        %232 = arith.index_cast %arg14 : i32 to index
        %c1_72 = arith.constant 1 : index
        %c2_73 = arith.constant 2 : index
        %c0_74 = arith.constant 0 : index
        %233 = vector.load %arg11[%232, %c1_72, %c2_73, %c0_74] : memref<10x12x12x128xf32, #tpu.memory_space<vmem>>, vector<1x8x8x128xf32>
        %234 = vector.shape_cast %233 : vector<1x8x8x128xf32> to vector<8x8x128xf32>
        %c7_i32 = arith.constant 7 : i32
        %235 = arith.addi %112, %c7_i32 : i32
        %236 = arith.index_cast %31 : i32 to index
        %237 = arith.index_cast %235 : i32 to index
        %238 = memref.load %arg4[%236, %237] : memref<20x250xf32, #tpu.memory_space<smem>>
        %239 = vector.broadcast %238 : f32 to vector<8x8x128xf32>
        %240 = arith.mulf %234, %239 : vector<8x8x128xf32>
        %241 = arith.addf %224, %240 : vector<8x8x128xf32>
        %c7_i32_75 = arith.constant 7 : i32
        %242 = arith.addi %112, %c7_i32_75 : i32
        %243 = arith.index_cast %32 : i32 to index
        %244 = arith.index_cast %242 : i32 to index
        %245 = memref.load %arg4[%243, %244] : memref<20x250xf32, #tpu.memory_space<smem>>
        %246 = vector.broadcast %245 : f32 to vector<8x8x128xf32>
        %247 = arith.mulf %234, %246 : vector<8x8x128xf32>
        %248 = arith.addf %231, %247 : vector<8x8x128xf32>
        %249 = arith.index_cast %arg14 : i32 to index
        %c1_76 = arith.constant 1 : index
        %c3_77 = arith.constant 3 : index
        %c0_78 = arith.constant 0 : index
        %250 = vector.load %arg11[%249, %c1_76, %c3_77, %c0_78] : memref<10x12x12x128xf32, #tpu.memory_space<vmem>>, vector<1x8x8x128xf32>
        %251 = vector.shape_cast %250 : vector<1x8x8x128xf32> to vector<8x8x128xf32>
        %c8_i32 = arith.constant 8 : i32
        %252 = arith.addi %112, %c8_i32 : i32
        %253 = arith.index_cast %31 : i32 to index
        %254 = arith.index_cast %252 : i32 to index
        %255 = memref.load %arg4[%253, %254] : memref<20x250xf32, #tpu.memory_space<smem>>
        %256 = vector.broadcast %255 : f32 to vector<8x8x128xf32>
        %257 = arith.mulf %251, %256 : vector<8x8x128xf32>
        %258 = arith.addf %241, %257 : vector<8x8x128xf32>
        %c8_i32_79 = arith.constant 8 : i32
        %259 = arith.addi %112, %c8_i32_79 : i32
        %260 = arith.index_cast %32 : i32 to index
        %261 = arith.index_cast %259 : i32 to index
        %262 = memref.load %arg4[%260, %261] : memref<20x250xf32, #tpu.memory_space<smem>>
        %263 = vector.broadcast %262 : f32 to vector<8x8x128xf32>
        %264 = arith.mulf %251, %263 : vector<8x8x128xf32>
        %265 = arith.addf %248, %264 : vector<8x8x128xf32>
        %266 = arith.index_cast %arg14 : i32 to index
        %c1_80 = arith.constant 1 : index
        %c4_81 = arith.constant 4 : index
        %c0_82 = arith.constant 0 : index
        %267 = vector.load %arg11[%266, %c1_80, %c4_81, %c0_82] : memref<10x12x12x128xf32, #tpu.memory_space<vmem>>, vector<1x8x8x128xf32>
        %268 = vector.shape_cast %267 : vector<1x8x8x128xf32> to vector<8x8x128xf32>
        %c9_i32 = arith.constant 9 : i32
        %269 = arith.addi %112, %c9_i32 : i32
        %270 = arith.index_cast %31 : i32 to index
        %271 = arith.index_cast %269 : i32 to index
        %272 = memref.load %arg4[%270, %271] : memref<20x250xf32, #tpu.memory_space<smem>>
        %273 = vector.broadcast %272 : f32 to vector<8x8x128xf32>
        %274 = arith.mulf %268, %273 : vector<8x8x128xf32>
        %275 = arith.addf %258, %274 : vector<8x8x128xf32>
        %c9_i32_83 = arith.constant 9 : i32
        %276 = arith.addi %112, %c9_i32_83 : i32
        %277 = arith.index_cast %32 : i32 to index
        %278 = arith.index_cast %276 : i32 to index
        %279 = memref.load %arg4[%277, %278] : memref<20x250xf32, #tpu.memory_space<smem>>
        %280 = vector.broadcast %279 : f32 to vector<8x8x128xf32>
        %281 = arith.mulf %268, %280 : vector<8x8x128xf32>
        %282 = arith.addf %265, %281 : vector<8x8x128xf32>
        %283 = arith.index_cast %arg14 : i32 to index
        %c2_84 = arith.constant 2 : index
        %c0_85 = arith.constant 0 : index
        %c0_86 = arith.constant 0 : index
        %284 = vector.load %arg11[%283, %c2_84, %c0_85, %c0_86] : memref<10x12x12x128xf32, #tpu.memory_space<vmem>>, vector<1x8x8x128xf32>
        %285 = vector.shape_cast %284 : vector<1x8x8x128xf32> to vector<8x8x128xf32>
        %c10_i32_87 = arith.constant 10 : i32
        %286 = arith.addi %112, %c10_i32_87 : i32
        %287 = arith.index_cast %31 : i32 to index
        %288 = arith.index_cast %286 : i32 to index
        %289 = memref.load %arg4[%287, %288] : memref<20x250xf32, #tpu.memory_space<smem>>
        %290 = vector.broadcast %289 : f32 to vector<8x8x128xf32>
        %291 = arith.mulf %285, %290 : vector<8x8x128xf32>
        %292 = arith.addf %275, %291 : vector<8x8x128xf32>
        %c10_i32_88 = arith.constant 10 : i32
        %293 = arith.addi %112, %c10_i32_88 : i32
        %294 = arith.index_cast %32 : i32 to index
        %295 = arith.index_cast %293 : i32 to index
        %296 = memref.load %arg4[%294, %295] : memref<20x250xf32, #tpu.memory_space<smem>>
        %297 = vector.broadcast %296 : f32 to vector<8x8x128xf32>
        %298 = arith.mulf %285, %297 : vector<8x8x128xf32>
        %299 = arith.addf %282, %298 : vector<8x8x128xf32>
        %300 = arith.index_cast %arg14 : i32 to index
        %c2_89 = arith.constant 2 : index
        %c1_90 = arith.constant 1 : index
        %c0_91 = arith.constant 0 : index
        %301 = vector.load %arg11[%300, %c2_89, %c1_90, %c0_91] : memref<10x12x12x128xf32, #tpu.memory_space<vmem>>, vector<1x8x8x128xf32>
        %302 = vector.shape_cast %301 : vector<1x8x8x128xf32> to vector<8x8x128xf32>
        %c11_i32 = arith.constant 11 : i32
        %303 = arith.addi %112, %c11_i32 : i32
        %304 = arith.index_cast %31 : i32 to index
        %305 = arith.index_cast %303 : i32 to index
        %306 = memref.load %arg4[%304, %305] : memref<20x250xf32, #tpu.memory_space<smem>>
        %307 = vector.broadcast %306 : f32 to vector<8x8x128xf32>
        %308 = arith.mulf %302, %307 : vector<8x8x128xf32>
        %309 = arith.addf %292, %308 : vector<8x8x128xf32>
        %c11_i32_92 = arith.constant 11 : i32
        %310 = arith.addi %112, %c11_i32_92 : i32
        %311 = arith.index_cast %32 : i32 to index
        %312 = arith.index_cast %310 : i32 to index
        %313 = memref.load %arg4[%311, %312] : memref<20x250xf32, #tpu.memory_space<smem>>
        %314 = vector.broadcast %313 : f32 to vector<8x8x128xf32>
        %315 = arith.mulf %302, %314 : vector<8x8x128xf32>
        %316 = arith.addf %299, %315 : vector<8x8x128xf32>
        %317 = arith.index_cast %arg14 : i32 to index
        %c2_93 = arith.constant 2 : index
        %c2_94 = arith.constant 2 : index
        %c0_95 = arith.constant 0 : index
        %318 = vector.load %arg11[%317, %c2_93, %c2_94, %c0_95] : memref<10x12x12x128xf32, #tpu.memory_space<vmem>>, vector<1x8x8x128xf32>
        %319 = vector.shape_cast %318 : vector<1x8x8x128xf32> to vector<8x8x128xf32>
        %c12_i32 = arith.constant 12 : i32
        %320 = arith.addi %112, %c12_i32 : i32
        %321 = arith.index_cast %31 : i32 to index
        %322 = arith.index_cast %320 : i32 to index
        %323 = memref.load %arg4[%321, %322] : memref<20x250xf32, #tpu.memory_space<smem>>
        %324 = vector.broadcast %323 : f32 to vector<8x8x128xf32>
        %325 = arith.mulf %319, %324 : vector<8x8x128xf32>
        %326 = arith.addf %309, %325 : vector<8x8x128xf32>
        %c12_i32_96 = arith.constant 12 : i32
        %327 = arith.addi %112, %c12_i32_96 : i32
        %328 = arith.index_cast %32 : i32 to index
        %329 = arith.index_cast %327 : i32 to index
        %330 = memref.load %arg4[%328, %329] : memref<20x250xf32, #tpu.memory_space<smem>>
        %331 = vector.broadcast %330 : f32 to vector<8x8x128xf32>
        %332 = arith.mulf %319, %331 : vector<8x8x128xf32>
        %333 = arith.addf %316, %332 : vector<8x8x128xf32>
        %334 = arith.index_cast %arg14 : i32 to index
        %c2_97 = arith.constant 2 : index
        %c3_98 = arith.constant 3 : index
        %c0_99 = arith.constant 0 : index
        %335 = vector.load %arg11[%334, %c2_97, %c3_98, %c0_99] : memref<10x12x12x128xf32, #tpu.memory_space<vmem>>, vector<1x8x8x128xf32>
        %336 = vector.shape_cast %335 : vector<1x8x8x128xf32> to vector<8x8x128xf32>
        %c13_i32 = arith.constant 13 : i32
        %337 = arith.addi %112, %c13_i32 : i32
        %338 = arith.index_cast %31 : i32 to index
        %339 = arith.index_cast %337 : i32 to index
        %340 = memref.load %arg4[%338, %339] : memref<20x250xf32, #tpu.memory_space<smem>>
        %341 = vector.broadcast %340 : f32 to vector<8x8x128xf32>
        %342 = arith.mulf %336, %341 : vector<8x8x128xf32>
        %343 = arith.addf %326, %342 : vector<8x8x128xf32>
        %c13_i32_100 = arith.constant 13 : i32
        %344 = arith.addi %112, %c13_i32_100 : i32
        %345 = arith.index_cast %32 : i32 to index
        %346 = arith.index_cast %344 : i32 to index
        %347 = memref.load %arg4[%345, %346] : memref<20x250xf32, #tpu.memory_space<smem>>
        %348 = vector.broadcast %347 : f32 to vector<8x8x128xf32>
        %349 = arith.mulf %336, %348 : vector<8x8x128xf32>
        %350 = arith.addf %333, %349 : vector<8x8x128xf32>
        %351 = arith.index_cast %arg14 : i32 to index
        %c2_101 = arith.constant 2 : index
        %c4_102 = arith.constant 4 : index
        %c0_103 = arith.constant 0 : index
        %352 = vector.load %arg11[%351, %c2_101, %c4_102, %c0_103] : memref<10x12x12x128xf32, #tpu.memory_space<vmem>>, vector<1x8x8x128xf32>
        %353 = vector.shape_cast %352 : vector<1x8x8x128xf32> to vector<8x8x128xf32>
        %c14_i32 = arith.constant 14 : i32
        %354 = arith.addi %112, %c14_i32 : i32
        %355 = arith.index_cast %31 : i32 to index
        %356 = arith.index_cast %354 : i32 to index
        %357 = memref.load %arg4[%355, %356] : memref<20x250xf32, #tpu.memory_space<smem>>
        %358 = vector.broadcast %357 : f32 to vector<8x8x128xf32>
        %359 = arith.mulf %353, %358 : vector<8x8x128xf32>
        %360 = arith.addf %343, %359 : vector<8x8x128xf32>
        %c14_i32_104 = arith.constant 14 : i32
        %361 = arith.addi %112, %c14_i32_104 : i32
        %362 = arith.index_cast %32 : i32 to index
        %363 = arith.index_cast %361 : i32 to index
        %364 = memref.load %arg4[%362, %363] : memref<20x250xf32, #tpu.memory_space<smem>>
        %365 = vector.broadcast %364 : f32 to vector<8x8x128xf32>
        %366 = arith.mulf %353, %365 : vector<8x8x128xf32>
        %367 = arith.addf %350, %366 : vector<8x8x128xf32>
        %368 = arith.index_cast %arg14 : i32 to index
        %c3_105 = arith.constant 3 : index
        %c0_106 = arith.constant 0 : index
        %c0_107 = arith.constant 0 : index
        %369 = vector.load %arg11[%368, %c3_105, %c0_106, %c0_107] : memref<10x12x12x128xf32, #tpu.memory_space<vmem>>, vector<1x8x8x128xf32>
        %370 = vector.shape_cast %369 : vector<1x8x8x128xf32> to vector<8x8x128xf32>
        %c15_i32 = arith.constant 15 : i32
        %371 = arith.addi %112, %c15_i32 : i32
        %372 = arith.index_cast %31 : i32 to index
        %373 = arith.index_cast %371 : i32 to index
        %374 = memref.load %arg4[%372, %373] : memref<20x250xf32, #tpu.memory_space<smem>>
        %375 = vector.broadcast %374 : f32 to vector<8x8x128xf32>
        %376 = arith.mulf %370, %375 : vector<8x8x128xf32>
        %377 = arith.addf %360, %376 : vector<8x8x128xf32>
        %c15_i32_108 = arith.constant 15 : i32
        %378 = arith.addi %112, %c15_i32_108 : i32
        %379 = arith.index_cast %32 : i32 to index
        %380 = arith.index_cast %378 : i32 to index
        %381 = memref.load %arg4[%379, %380] : memref<20x250xf32, #tpu.memory_space<smem>>
        %382 = vector.broadcast %381 : f32 to vector<8x8x128xf32>
        %383 = arith.mulf %370, %382 : vector<8x8x128xf32>
        %384 = arith.addf %367, %383 : vector<8x8x128xf32>
        %385 = arith.index_cast %arg14 : i32 to index
        %c3_109 = arith.constant 3 : index
        %c1_110 = arith.constant 1 : index
        %c0_111 = arith.constant 0 : index
        %386 = vector.load %arg11[%385, %c3_109, %c1_110, %c0_111] : memref<10x12x12x128xf32, #tpu.memory_space<vmem>>, vector<1x8x8x128xf32>
        %387 = vector.shape_cast %386 : vector<1x8x8x128xf32> to vector<8x8x128xf32>
        %c16_i32 = arith.constant 16 : i32
        %388 = arith.addi %112, %c16_i32 : i32
        %389 = arith.index_cast %31 : i32 to index
        %390 = arith.index_cast %388 : i32 to index
        %391 = memref.load %arg4[%389, %390] : memref<20x250xf32, #tpu.memory_space<smem>>
        %392 = vector.broadcast %391 : f32 to vector<8x8x128xf32>
        %393 = arith.mulf %387, %392 : vector<8x8x128xf32>
        %394 = arith.addf %377, %393 : vector<8x8x128xf32>
        %c16_i32_112 = arith.constant 16 : i32
        %395 = arith.addi %112, %c16_i32_112 : i32
        %396 = arith.index_cast %32 : i32 to index
        %397 = arith.index_cast %395 : i32 to index
        %398 = memref.load %arg4[%396, %397] : memref<20x250xf32, #tpu.memory_space<smem>>
        %399 = vector.broadcast %398 : f32 to vector<8x8x128xf32>
        %400 = arith.mulf %387, %399 : vector<8x8x128xf32>
        %401 = arith.addf %384, %400 : vector<8x8x128xf32>
        %402 = arith.index_cast %arg14 : i32 to index
        %c3_113 = arith.constant 3 : index
        %c2_114 = arith.constant 2 : index
        %c0_115 = arith.constant 0 : index
        %403 = vector.load %arg11[%402, %c3_113, %c2_114, %c0_115] : memref<10x12x12x128xf32, #tpu.memory_space<vmem>>, vector<1x8x8x128xf32>
        %404 = vector.shape_cast %403 : vector<1x8x8x128xf32> to vector<8x8x128xf32>
        %c17_i32 = arith.constant 17 : i32
        %405 = arith.addi %112, %c17_i32 : i32
        %406 = arith.index_cast %31 : i32 to index
        %407 = arith.index_cast %405 : i32 to index
        %408 = memref.load %arg4[%406, %407] : memref<20x250xf32, #tpu.memory_space<smem>>
        %409 = vector.broadcast %408 : f32 to vector<8x8x128xf32>
        %410 = arith.mulf %404, %409 : vector<8x8x128xf32>
        %411 = arith.addf %394, %410 : vector<8x8x128xf32>
        %c17_i32_116 = arith.constant 17 : i32
        %412 = arith.addi %112, %c17_i32_116 : i32
        %413 = arith.index_cast %32 : i32 to index
        %414 = arith.index_cast %412 : i32 to index
        %415 = memref.load %arg4[%413, %414] : memref<20x250xf32, #tpu.memory_space<smem>>
        %416 = vector.broadcast %415 : f32 to vector<8x8x128xf32>
        %417 = arith.mulf %404, %416 : vector<8x8x128xf32>
        %418 = arith.addf %401, %417 : vector<8x8x128xf32>
        %419 = arith.index_cast %arg14 : i32 to index
        %c3_117 = arith.constant 3 : index
        %c3_118 = arith.constant 3 : index
        %c0_119 = arith.constant 0 : index
        %420 = vector.load %arg11[%419, %c3_117, %c3_118, %c0_119] : memref<10x12x12x128xf32, #tpu.memory_space<vmem>>, vector<1x8x8x128xf32>
        %421 = vector.shape_cast %420 : vector<1x8x8x128xf32> to vector<8x8x128xf32>
        %c18_i32 = arith.constant 18 : i32
        %422 = arith.addi %112, %c18_i32 : i32
        %423 = arith.index_cast %31 : i32 to index
        %424 = arith.index_cast %422 : i32 to index
        %425 = memref.load %arg4[%423, %424] : memref<20x250xf32, #tpu.memory_space<smem>>
        %426 = vector.broadcast %425 : f32 to vector<8x8x128xf32>
        %427 = arith.mulf %421, %426 : vector<8x8x128xf32>
        %428 = arith.addf %411, %427 : vector<8x8x128xf32>
        %c18_i32_120 = arith.constant 18 : i32
        %429 = arith.addi %112, %c18_i32_120 : i32
        %430 = arith.index_cast %32 : i32 to index
        %431 = arith.index_cast %429 : i32 to index
        %432 = memref.load %arg4[%430, %431] : memref<20x250xf32, #tpu.memory_space<smem>>
        %433 = vector.broadcast %432 : f32 to vector<8x8x128xf32>
        %434 = arith.mulf %421, %433 : vector<8x8x128xf32>
        %435 = arith.addf %418, %434 : vector<8x8x128xf32>
        %436 = arith.index_cast %arg14 : i32 to index
        %c3_121 = arith.constant 3 : index
        %c4_122 = arith.constant 4 : index
        %c0_123 = arith.constant 0 : index
        %437 = vector.load %arg11[%436, %c3_121, %c4_122, %c0_123] : memref<10x12x12x128xf32, #tpu.memory_space<vmem>>, vector<1x8x8x128xf32>
        %438 = vector.shape_cast %437 : vector<1x8x8x128xf32> to vector<8x8x128xf32>
        %c19_i32 = arith.constant 19 : i32
        %439 = arith.addi %112, %c19_i32 : i32
        %440 = arith.index_cast %31 : i32 to index
        %441 = arith.index_cast %439 : i32 to index
        %442 = memref.load %arg4[%440, %441] : memref<20x250xf32, #tpu.memory_space<smem>>
        %443 = vector.broadcast %442 : f32 to vector<8x8x128xf32>
        %444 = arith.mulf %438, %443 : vector<8x8x128xf32>
        %445 = arith.addf %428, %444 : vector<8x8x128xf32>
        %c19_i32_124 = arith.constant 19 : i32
        %446 = arith.addi %112, %c19_i32_124 : i32
        %447 = arith.index_cast %32 : i32 to index
        %448 = arith.index_cast %446 : i32 to index
        %449 = memref.load %arg4[%447, %448] : memref<20x250xf32, #tpu.memory_space<smem>>
        %450 = vector.broadcast %449 : f32 to vector<8x8x128xf32>
        %451 = arith.mulf %438, %450 : vector<8x8x128xf32>
        %452 = arith.addf %435, %451 : vector<8x8x128xf32>
        %453 = arith.index_cast %arg14 : i32 to index
        %c4_125 = arith.constant 4 : index
        %c0_126 = arith.constant 0 : index
        %c0_127 = arith.constant 0 : index
        %454 = vector.load %arg11[%453, %c4_125, %c0_126, %c0_127] : memref<10x12x12x128xf32, #tpu.memory_space<vmem>>, vector<1x8x8x128xf32>
        %455 = vector.shape_cast %454 : vector<1x8x8x128xf32> to vector<8x8x128xf32>
        %c20_i32 = arith.constant 20 : i32
        %456 = arith.addi %112, %c20_i32 : i32
        %457 = arith.index_cast %31 : i32 to index
        %458 = arith.index_cast %456 : i32 to index
        %459 = memref.load %arg4[%457, %458] : memref<20x250xf32, #tpu.memory_space<smem>>
        %460 = vector.broadcast %459 : f32 to vector<8x8x128xf32>
        %461 = arith.mulf %455, %460 : vector<8x8x128xf32>
        %462 = arith.addf %445, %461 : vector<8x8x128xf32>
        %c20_i32_128 = arith.constant 20 : i32
        %463 = arith.addi %112, %c20_i32_128 : i32
        %464 = arith.index_cast %32 : i32 to index
        %465 = arith.index_cast %463 : i32 to index
        %466 = memref.load %arg4[%464, %465] : memref<20x250xf32, #tpu.memory_space<smem>>
        %467 = vector.broadcast %466 : f32 to vector<8x8x128xf32>
        %468 = arith.mulf %455, %467 : vector<8x8x128xf32>
        %469 = arith.addf %452, %468 : vector<8x8x128xf32>
        %470 = arith.index_cast %arg14 : i32 to index
        %c4_129 = arith.constant 4 : index
        %c1_130 = arith.constant 1 : index
        %c0_131 = arith.constant 0 : index
        %471 = vector.load %arg11[%470, %c4_129, %c1_130, %c0_131] : memref<10x12x12x128xf32, #tpu.memory_space<vmem>>, vector<1x8x8x128xf32>
        %472 = vector.shape_cast %471 : vector<1x8x8x128xf32> to vector<8x8x128xf32>
        %c21_i32 = arith.constant 21 : i32
        %473 = arith.addi %112, %c21_i32 : i32
        %474 = arith.index_cast %31 : i32 to index
        %475 = arith.index_cast %473 : i32 to index
        %476 = memref.load %arg4[%474, %475] : memref<20x250xf32, #tpu.memory_space<smem>>
        %477 = vector.broadcast %476 : f32 to vector<8x8x128xf32>
        %478 = arith.mulf %472, %477 : vector<8x8x128xf32>
        %479 = arith.addf %462, %478 : vector<8x8x128xf32>
        %c21_i32_132 = arith.constant 21 : i32
        %480 = arith.addi %112, %c21_i32_132 : i32
        %481 = arith.index_cast %32 : i32 to index
        %482 = arith.index_cast %480 : i32 to index
        %483 = memref.load %arg4[%481, %482] : memref<20x250xf32, #tpu.memory_space<smem>>
        %484 = vector.broadcast %483 : f32 to vector<8x8x128xf32>
        %485 = arith.mulf %472, %484 : vector<8x8x128xf32>
        %486 = arith.addf %469, %485 : vector<8x8x128xf32>
        %487 = arith.index_cast %arg14 : i32 to index
        %c4_133 = arith.constant 4 : index
        %c2_134 = arith.constant 2 : index
        %c0_135 = arith.constant 0 : index
        %488 = vector.load %arg11[%487, %c4_133, %c2_134, %c0_135] : memref<10x12x12x128xf32, #tpu.memory_space<vmem>>, vector<1x8x8x128xf32>
        %489 = vector.shape_cast %488 : vector<1x8x8x128xf32> to vector<8x8x128xf32>
        %c22_i32 = arith.constant 22 : i32
        %490 = arith.addi %112, %c22_i32 : i32
        %491 = arith.index_cast %31 : i32 to index
        %492 = arith.index_cast %490 : i32 to index
        %493 = memref.load %arg4[%491, %492] : memref<20x250xf32, #tpu.memory_space<smem>>
        %494 = vector.broadcast %493 : f32 to vector<8x8x128xf32>
        %495 = arith.mulf %489, %494 : vector<8x8x128xf32>
        %496 = arith.addf %479, %495 : vector<8x8x128xf32>
        %c22_i32_136 = arith.constant 22 : i32
        %497 = arith.addi %112, %c22_i32_136 : i32
        %498 = arith.index_cast %32 : i32 to index
        %499 = arith.index_cast %497 : i32 to index
        %500 = memref.load %arg4[%498, %499] : memref<20x250xf32, #tpu.memory_space<smem>>
        %501 = vector.broadcast %500 : f32 to vector<8x8x128xf32>
        %502 = arith.mulf %489, %501 : vector<8x8x128xf32>
        %503 = arith.addf %486, %502 : vector<8x8x128xf32>
        %504 = arith.index_cast %arg14 : i32 to index
        %c4_137 = arith.constant 4 : index
        %c3_138 = arith.constant 3 : index
        %c0_139 = arith.constant 0 : index
        %505 = vector.load %arg11[%504, %c4_137, %c3_138, %c0_139] : memref<10x12x12x128xf32, #tpu.memory_space<vmem>>, vector<1x8x8x128xf32>
        %506 = vector.shape_cast %505 : vector<1x8x8x128xf32> to vector<8x8x128xf32>
        %c23_i32 = arith.constant 23 : i32
        %507 = arith.addi %112, %c23_i32 : i32
        %508 = arith.index_cast %31 : i32 to index
        %509 = arith.index_cast %507 : i32 to index
        %510 = memref.load %arg4[%508, %509] : memref<20x250xf32, #tpu.memory_space<smem>>
        %511 = vector.broadcast %510 : f32 to vector<8x8x128xf32>
        %512 = arith.mulf %506, %511 : vector<8x8x128xf32>
        %513 = arith.addf %496, %512 : vector<8x8x128xf32>
        %c23_i32_140 = arith.constant 23 : i32
        %514 = arith.addi %112, %c23_i32_140 : i32
        %515 = arith.index_cast %32 : i32 to index
        %516 = arith.index_cast %514 : i32 to index
        %517 = memref.load %arg4[%515, %516] : memref<20x250xf32, #tpu.memory_space<smem>>
        %518 = vector.broadcast %517 : f32 to vector<8x8x128xf32>
        %519 = arith.mulf %506, %518 : vector<8x8x128xf32>
        %520 = arith.addf %503, %519 : vector<8x8x128xf32>
        %521 = arith.index_cast %arg14 : i32 to index
        %c4_141 = arith.constant 4 : index
        %c4_142 = arith.constant 4 : index
        %c0_143 = arith.constant 0 : index
        %522 = vector.load %arg11[%521, %c4_141, %c4_142, %c0_143] : memref<10x12x12x128xf32, #tpu.memory_space<vmem>>, vector<1x8x8x128xf32>
        %523 = vector.shape_cast %522 : vector<1x8x8x128xf32> to vector<8x8x128xf32>
        %c24_i32 = arith.constant 24 : i32
        %524 = arith.addi %112, %c24_i32 : i32
        %525 = arith.index_cast %31 : i32 to index
        %526 = arith.index_cast %524 : i32 to index
        %527 = memref.load %arg4[%525, %526] : memref<20x250xf32, #tpu.memory_space<smem>>
        %528 = vector.broadcast %527 : f32 to vector<8x8x128xf32>
        %529 = arith.mulf %523, %528 : vector<8x8x128xf32>
        %530 = arith.addf %513, %529 : vector<8x8x128xf32>
        %c24_i32_144 = arith.constant 24 : i32
        %531 = arith.addi %112, %c24_i32_144 : i32
        %532 = arith.index_cast %32 : i32 to index
        %533 = arith.index_cast %531 : i32 to index
        %534 = memref.load %arg4[%532, %533] : memref<20x250xf32, #tpu.memory_space<smem>>
        %535 = vector.broadcast %534 : f32 to vector<8x8x128xf32>
        %536 = arith.mulf %523, %535 : vector<8x8x128xf32>
        %537 = arith.addf %520, %536 : vector<8x8x128xf32>
        scf.yield %530, %537 : vector<8x8x128xf32>, vector<8x8x128xf32>
      }
      %c10_i32_26 = arith.constant 10 : i32
      %36 = arith.index_cast %31 : i32 to index
      %37 = memref.load %arg5[%36] : memref<20xf32, #tpu.memory_space<smem>>
      %38 = vector.broadcast %37 : f32 to vector<8x8x128xf32>
      %39 = arith.addf %35#0, %38 : vector<8x8x128xf32>
      %40 = vector.shape_cast %39 : vector<8x8x128xf32> to vector<4x2x8x128xf32>
      %41 = vector.extract_strided_slice %40 {offsets = [0, 0, 0, 0], sizes = [4, 1, 8, 128], strides = [1, 1, 1, 1]} : vector<4x2x8x128xf32> to vector<4x1x8x128xf32>
      %42 = vector.shape_cast %41 : vector<4x1x8x128xf32> to vector<4x8x128xf32>
      %43 = vector.extract_strided_slice %40 {offsets = [0, 1, 0, 0], sizes = [4, 1, 8, 128], strides = [1, 1, 1, 1]} : vector<4x2x8x128xf32> to vector<4x1x8x128xf32>
      %44 = vector.shape_cast %43 : vector<4x1x8x128xf32> to vector<4x8x128xf32>
      %45 = arith.maximumf %42, %44 : vector<4x8x128xf32>
      %46 = vector.shape_cast %45 : vector<4x8x128xf32> to vector<4x4x2x128xf32>
      %cst_27 = arith.constant dense<0xFF800000> : vector<4x4x128xf32>
      %47 = vector.multi_reduction <maximumf>, %46, %cst_27 [2] : vector<4x4x2x128xf32> to vector<4x4x128xf32>
      %cst_28 = arith.constant 0.000000e+00 : f32
      %48 = vector.broadcast %cst_28 : f32 to vector<4x4x128xf32>
      %49 = arith.maximumf %47, %48 : vector<4x4x128xf32>
      %50 = vector.extract_strided_slice %49 {offsets = [0, 0, 0], sizes = [1, 4, 128], strides = [1, 1, 1]} : vector<4x4x128xf32> to vector<1x4x128xf32>
      %51 = vector.shape_cast %50 : vector<1x4x128xf32> to vector<4x128xf32>
      %52 = arith.index_cast %31 : i32 to index
      %c0_29 = arith.constant 0 : index
      %c0_30 = arith.constant 0 : index
      %53 = vector.load %arg12[%52, %c0_29, %c0_30] : memref<20x16x128xf32, #tpu.memory_space<vmem>>, vector<1x4x128xf32>
      %54 = vector.shape_cast %53 : vector<1x4x128xf32> to vector<4x128xf32>
      %55 = vector.shape_cast %51 : vector<4x128xf32> to vector<1x4x128xf32>
      tpu.vector_store %arg12[%52, %c0_29, %c0_30], %55 {strides = array<i32>} : memref<20x16x128xf32, #tpu.memory_space<vmem>>, vector<1x4x128xf32>,
      %56 = vector.extract_strided_slice %49 {offsets = [1, 0, 0], sizes = [1, 4, 128], strides = [1, 1, 1]} : vector<4x4x128xf32> to vector<1x4x128xf32>
      %57 = vector.shape_cast %56 : vector<1x4x128xf32> to vector<4x128xf32>
      %58 = arith.index_cast %31 : i32 to index
      %c4 = arith.constant 4 : index
      %c0_31 = arith.constant 0 : index
      %59 = vector.load %arg12[%58, %c4, %c0_31] : memref<20x16x128xf32, #tpu.memory_space<vmem>>, vector<1x4x128xf32>
      %60 = vector.shape_cast %59 : vector<1x4x128xf32> to vector<4x128xf32>
      %61 = vector.shape_cast %57 : vector<4x128xf32> to vector<1x4x128xf32>
      tpu.vector_store %arg12[%58, %c4, %c0_31], %61 {strides = array<i32>} : memref<20x16x128xf32, #tpu.memory_space<vmem>>, vector<1x4x128xf32>,
      %62 = vector.extract_strided_slice %49 {offsets = [2, 0, 0], sizes = [1, 4, 128], strides = [1, 1, 1]} : vector<4x4x128xf32> to vector<1x4x128xf32>
      %63 = vector.shape_cast %62 : vector<1x4x128xf32> to vector<4x128xf32>
      %64 = arith.index_cast %31 : i32 to index
      %c8 = arith.constant 8 : index
      %c0_32 = arith.constant 0 : index
      %65 = vector.load %arg12[%64, %c8, %c0_32] : memref<20x16x128xf32, #tpu.memory_space<vmem>>, vector<1x4x128xf32>
      %66 = vector.shape_cast %65 : vector<1x4x128xf32> to vector<4x128xf32>
      %67 = vector.shape_cast %63 : vector<4x128xf32> to vector<1x4x128xf32>
      tpu.vector_store %arg12[%64, %c8, %c0_32], %67 {strides = array<i32>} : memref<20x16x128xf32, #tpu.memory_space<vmem>>, vector<1x4x128xf32>,
      %68 = vector.extract_strided_slice %49 {offsets = [3, 0, 0], sizes = [1, 4, 128], strides = [1, 1, 1]} : vector<4x4x128xf32> to vector<1x4x128xf32>
      %69 = vector.shape_cast %68 : vector<1x4x128xf32> to vector<4x128xf32>
      %70 = arith.index_cast %31 : i32 to index
      %c12 = arith.constant 12 : index
      %c0_33 = arith.constant 0 : index
      %71 = vector.load %arg12[%70, %c12, %c0_33] : memref<20x16x128xf32, #tpu.memory_space<vmem>>, vector<1x4x128xf32>
      %72 = vector.shape_cast %71 : vector<1x4x128xf32> to vector<4x128xf32>
      %73 = vector.shape_cast %69 : vector<4x128xf32> to vector<1x4x128xf32>
      tpu.vector_store %arg12[%70, %c12, %c0_33], %73 {strides = array<i32>} : memref<20x16x128xf32, #tpu.memory_space<vmem>>, vector<1x4x128xf32>,
      %74 = arith.index_cast %32 : i32 to index
      %75 = memref.load %arg5[%74] : memref<20xf32, #tpu.memory_space<smem>>
      %76 = vector.broadcast %75 : f32 to vector<8x8x128xf32>
      %77 = arith.addf %35#1, %76 : vector<8x8x128xf32>
      %78 = vector.shape_cast %77 : vector<8x8x128xf32> to vector<4x2x8x128xf32>
      %79 = vector.extract_strided_slice %78 {offsets = [0, 0, 0, 0], sizes = [4, 1, 8, 128], strides = [1, 1, 1, 1]} : vector<4x2x8x128xf32> to vector<4x1x8x128xf32>
      %80 = vector.shape_cast %79 : vector<4x1x8x128xf32> to vector<4x8x128xf32>
      %81 = vector.extract_strided_slice %78 {offsets = [0, 1, 0, 0], sizes = [4, 1, 8, 128], strides = [1, 1, 1, 1]} : vector<4x2x8x128xf32> to vector<4x1x8x128xf32>
      %82 = vector.shape_cast %81 : vector<4x1x8x128xf32> to vector<4x8x128xf32>
      %83 = arith.maximumf %80, %82 : vector<4x8x128xf32>
      %84 = vector.shape_cast %83 : vector<4x8x128xf32> to vector<4x4x2x128xf32>
      %cst_34 = arith.constant dense<0xFF800000> : vector<4x4x128xf32>
      %85 = vector.multi_reduction <maximumf>, %84, %cst_34 [2] : vector<4x4x2x128xf32> to vector<4x4x128xf32>
      %cst_35 = arith.constant 0.000000e+00 : f32
      %86 = vector.broadcast %cst_35 : f32 to vector<4x4x128xf32>
      %87 = arith.maximumf %85, %86 : vector<4x4x128xf32>
      %88 = vector.extract_strided_slice %87 {offsets = [0, 0, 0], sizes = [1, 4, 128], strides = [1, 1, 1]} : vector<4x4x128xf32> to vector<1x4x128xf32>
      %89 = vector.shape_cast %88 : vector<1x4x128xf32> to vector<4x128xf32>
      %90 = arith.index_cast %32 : i32 to index
      %c0_36 = arith.constant 0 : index
      %c0_37 = arith.constant 0 : index
      %91 = vector.load %arg12[%90, %c0_36, %c0_37] : memref<20x16x128xf32, #tpu.memory_space<vmem>>, vector<1x4x128xf32>
      %92 = vector.shape_cast %91 : vector<1x4x128xf32> to vector<4x128xf32>
      %93 = vector.shape_cast %89 : vector<4x128xf32> to vector<1x4x128xf32>
      tpu.vector_store %arg12[%90, %c0_36, %c0_37], %93 {strides = array<i32>} : memref<20x16x128xf32, #tpu.memory_space<vmem>>, vector<1x4x128xf32>,
      %94 = vector.extract_strided_slice %87 {offsets = [1, 0, 0], sizes = [1, 4, 128], strides = [1, 1, 1]} : vector<4x4x128xf32> to vector<1x4x128xf32>
      %95 = vector.shape_cast %94 : vector<1x4x128xf32> to vector<4x128xf32>
      %96 = arith.index_cast %32 : i32 to index
      %c4_38 = arith.constant 4 : index
      %c0_39 = arith.constant 0 : index
      %97 = vector.load %arg12[%96, %c4_38, %c0_39] : memref<20x16x128xf32, #tpu.memory_space<vmem>>, vector<1x4x128xf32>
      %98 = vector.shape_cast %97 : vector<1x4x128xf32> to vector<4x128xf32>
      %99 = vector.shape_cast %95 : vector<4x128xf32> to vector<1x4x128xf32>
      tpu.vector_store %arg12[%96, %c4_38, %c0_39], %99 {strides = array<i32>} : memref<20x16x128xf32, #tpu.memory_space<vmem>>, vector<1x4x128xf32>,
      %100 = vector.extract_strided_slice %87 {offsets = [2, 0, 0], sizes = [1, 4, 128], strides = [1, 1, 1]} : vector<4x4x128xf32> to vector<1x4x128xf32>
      %101 = vector.shape_cast %100 : vector<1x4x128xf32> to vector<4x128xf32>
      %102 = arith.index_cast %32 : i32 to index
      %c8_40 = arith.constant 8 : index
      %c0_41 = arith.constant 0 : index
      %103 = vector.load %arg12[%102, %c8_40, %c0_41] : memref<20x16x128xf32, #tpu.memory_space<vmem>>, vector<1x4x128xf32>
      %104 = vector.shape_cast %103 : vector<1x4x128xf32> to vector<4x128xf32>
      %105 = vector.shape_cast %101 : vector<4x128xf32> to vector<1x4x128xf32>
      tpu.vector_store %arg12[%102, %c8_40, %c0_41], %105 {strides = array<i32>} : memref<20x16x128xf32, #tpu.memory_space<vmem>>, vector<1x4x128xf32>,
      %106 = vector.extract_strided_slice %87 {offsets = [3, 0, 0], sizes = [1, 4, 128], strides = [1, 1, 1]} : vector<4x4x128xf32> to vector<1x4x128xf32>
      %107 = vector.shape_cast %106 : vector<1x4x128xf32> to vector<4x128xf32>
      %108 = arith.index_cast %32 : i32 to index
      %c12_42 = arith.constant 12 : index
      %c0_43 = arith.constant 0 : index
      %109 = vector.load %arg12[%108, %c12_42, %c0_43] : memref<20x16x128xf32, #tpu.memory_space<vmem>>, vector<1x4x128xf32>
      %110 = vector.shape_cast %109 : vector<1x4x128xf32> to vector<4x128xf32>
      %111 = vector.shape_cast %107 : vector<4x128xf32> to vector<1x4x128xf32>
      tpu.vector_store %arg12[%108, %c12_42, %c0_43], %111 {strides = array<i32>} : memref<20x16x128xf32, #tpu.memory_space<vmem>>, vector<1x4x128xf32>,
    }
    %c10_i32_4 = arith.constant 10 : i32
    %c0 = arith.constant 0 : index
    %c0_5 = arith.constant 0 : index
    %c0_6 = arith.constant 0 : index
    %2 = vector.load %arg12[%c0, %c0_5, %c0_6] : memref<20x16x128xf32, #tpu.memory_space<vmem>>, vector<20x16x128xf32>
    %3 = vector.shape_cast %2 : vector<20x16x128xf32> to vector<320x128xf32>
    %4 = arith.truncf %3 : vector<320x128xf32> to vector<320x128xbf16>
    %c0_7 = arith.constant 0 : index
    %c0_8 = arith.constant 0 : index
    %5 = vector.load %arg6[%c0_7, %c0_8] : memref<50x320xbf16, #tpu.memory_space<vmem>>, vector<50x320xbf16>
    %cst = arith.constant dense<0.000000e+00> : vector<50x128xf32>
    %6 = tpu.matmul %5, %4, %cst {dimension_numbers = #tpu.dot_dimension_numbers<[1], [0], [0], [1], [0, 0, 1, 1], [], []>} : vector<50x320xbf16>, vector<320x128xbf16>, vector<50x128xf32> -> vector<50x128xf32>
    %c0_9 = arith.constant 0 : index
    %c0_10 = arith.constant 0 : index
    %7 = vector.load %arg7[%c0_9, %c0_10] : memref<50x1xf32, #tpu.memory_space<vmem>>, vector<50x1xf32>
    %8 = vector.broadcast %7 : vector<50x1xf32> to vector<50x128xf32>
    %9 = arith.addf %6, %8 : vector<50x128xf32>
    %cst_11 = arith.constant 0.000000e+00 : f32
    %10 = vector.broadcast %cst_11 : f32 to vector<50x128xf32>
    %11 = arith.maximumf %9, %10 : vector<50x128xf32>
    %c0_12 = arith.constant 0 : index
    %c0_13 = arith.constant 0 : index
    %12 = vector.load %arg8[%c0_12, %c0_13] : memref<10x50xbf16, #tpu.memory_space<vmem>>, vector<10x50xbf16>
    %13 = arith.truncf %11 : vector<50x128xf32> to vector<50x128xbf16>
    %cst_14 = arith.constant dense<0.000000e+00> : vector<10x128xf32>
    %14 = tpu.matmul %12, %13, %cst_14 {dimension_numbers = #tpu.dot_dimension_numbers<[1], [0], [0], [1], [0, 0, 1, 1], [], []>} : vector<10x50xbf16>, vector<50x128xbf16>, vector<10x128xf32> -> vector<10x128xf32>
    %c0_15 = arith.constant 0 : index
    %c0_16 = arith.constant 0 : index
    %15 = vector.load %arg9[%c0_15, %c0_16] : memref<10x1xf32, #tpu.memory_space<vmem>>, vector<10x1xf32>
    %16 = vector.broadcast %15 : vector<10x1xf32> to vector<10x128xf32>
    %17 = arith.addf %14, %16 : vector<10x128xf32>
    %cst_17 = arith.constant dense<0xFF800000> : vector<128xf32>
    %18 = vector.multi_reduction <maximumf>, %17, %cst_17 [0] : vector<10x128xf32> to vector<128xf32>
    %19 = vector.shape_cast %18 : vector<128xf32> to vector<1x128xf32>
    %20 = vector.broadcast %19 : vector<1x128xf32> to vector<10x128xf32>
    %21 = arith.subf %17, %20 : vector<10x128xf32>
    %22 = math.exp %21 : vector<10x128xf32>
    %cst_18 = arith.constant dense<0.000000e+00> : vector<128xf32>
    %23 = vector.multi_reduction <add>, %22, %cst_18 [0] : vector<10x128xf32> to vector<128xf32>
    %24 = vector.shape_cast %23 : vector<128xf32> to vector<1x128xf32>
    %25 = math.log %24 : vector<1x128xf32>
    %26 = vector.broadcast %19 : vector<1x128xf32> to vector<10x128xf32>
    %27 = arith.subf %17, %26 : vector<10x128xf32>
    %28 = vector.broadcast %25 : vector<1x128xf32> to vector<10x128xf32>
    %29 = arith.subf %27, %28 : vector<10x128xf32>
    %c0_19 = arith.constant 0 : index
    %c0_20 = arith.constant 0 : index
    %30 = vector.load %arg10[%c0_19, %c0_20] : memref<10x128xf32, #tpu.memory_space<vmem>>, vector<10x128xf32>
    tpu.vector_store %arg10[%c0_19, %c0_20], %29 {strides = array<i32>} : memref<10x128xf32, #tpu.memory_space<vmem>>, vector<10x128xf32>,
    return
  }
  func.func @transform_0(%arg0: i32) -> (i32, i32, i32) {
    %c0_i32 = arith.constant 0 : i32
    %c0_i32_0 = arith.constant 0 : i32
    %c0_i32_1 = arith.constant 0 : i32
    return %c0_i32, %c0_i32_0, %arg0 : i32, i32, i32
  }
  func.func @transform_1(%arg0: i32) -> (i32, i32) {
    %c0_i32 = arith.constant 0 : i32
    %c0_i32_0 = arith.constant 0 : i32
    %c0_i32_1 = arith.constant 0 : i32
    return %c0_i32, %c0_i32_0 : i32, i32
  }
  func.func @transform_2(%arg0: i32) -> i32 {
    %c0_i32 = arith.constant 0 : i32
    %c0_i32_0 = arith.constant 0 : i32
    return %c0_i32 : i32
  }
  func.func @transform_3(%arg0: i32) -> (i32, i32) {
    %c0_i32 = arith.constant 0 : i32
    %c0_i32_0 = arith.constant 0 : i32
    %c0_i32_1 = arith.constant 0 : i32
    return %c0_i32, %c0_i32_0 : i32, i32
  }
  func.func @transform_4(%arg0: i32) -> i32 {
    %c0_i32 = arith.constant 0 : i32
    %c0_i32_0 = arith.constant 0 : i32
    return %c0_i32 : i32
  }
  func.func @transform_5(%arg0: i32) -> (i32, i32) {
    %c0_i32 = arith.constant 0 : i32
    %c0_i32_0 = arith.constant 0 : i32
    %c0_i32_1 = arith.constant 0 : i32
    return %c0_i32, %c0_i32_0 : i32, i32
  }
  func.func @transform_6(%arg0: i32) -> (i32, i32) {
    %c0_i32 = arith.constant 0 : i32
    %c0_i32_0 = arith.constant 0 : i32
    %c0_i32_1 = arith.constant 0 : i32
    return %c0_i32, %c0_i32_0 : i32, i32
  }
  func.func @transform_7(%arg0: i32) -> (i32, i32) {
    %c0_i32 = arith.constant 0 : i32
    %c0_i32_0 = arith.constant 0 : i32
    %c0_i32_1 = arith.constant 0 : i32
    return %c0_i32, %c0_i32_0 : i32, i32
  }
  func.func @transform_8(%arg0: i32) -> (i32, i32) {
    %c0_i32 = arith.constant 0 : i32
    %c0_i32_0 = arith.constant 0 : i32
    %c0_i32_1 = arith.constant 0 : i32
    return %c0_i32, %c0_i32_0 : i32, i32
  }
  func.func @transform_9(%arg0: i32) -> (i32, i32) {
    %c0_i32 = arith.constant 0 : i32
    %c0_i32_0 = arith.constant 0 : i32
    return %c0_i32, %arg0 : i32, i32
  }
}

</mosaic_0001>

<llo_original>
// kernel: cnn_mnist_forward.1
$region0: #{cnn_mnist_forward.1}
  #allocation0 [shape = 'u32[]', space=smem, size = 0x4, offset = 0x4, fixed_abs, tag = 'smem constant byte address 0x4 - core index']
  #allocation1 [shape = 'u32[144,128]{1,0:T(1,128)}', space=vmem, size = 0x12000, scoped, tag = 'internal scratch']
  #allocation2 [shape = 'f32[10,12,12,128]{3,2,1,0:T(8,128)}', space=vmem, size = 0xf0000, scoped, tag = 'scratch operand']
  #allocation3 [shape = 'f32[20,16,128]{2,1,0:T(8,128)}', space=vmem, size = 0x28000, scoped, tag = 'scratch operand']
  %s0 = inlined_call_operand.vmem [shape: f32[28,28,128], index: 0, kind: input, shape index: {}]
  %s1 = inlined_call_operand.vmem [shape: f32[10,25], index: 1, kind: input, shape index: {}]
  %s2 = inlined_call_operand.vmem [shape: f32[10], index: 2, kind: input, shape index: {}]
  %s3 = inlined_call_operand.vmem [shape: f32[20,250], index: 3, kind: input, shape index: {}]
  %s4 = inlined_call_operand.vmem [shape: f32[20], index: 4, kind: input, shape index: {}]
  %s5 = inlined_call_operand.vmem [shape: bf16[50,320], index: 5, kind: input, shape index: {}]
  %s6 = inlined_call_operand.vmem [shape: f32[50,1], index: 6, kind: input, shape index: {}]
  %s7 = inlined_call_operand.vmem [shape: bf16[10,50], index: 7, kind: input, shape index: {}]
  %s8 = inlined_call_operand.vmem [shape: f32[10,1], index: 8, kind: input, shape index: {}]
  %s9 = inlined_call_operand.vmem [shape: f32[10,128], index: 9, kind: output, shape index: {}]
  %s10 = sld [smem:[#allocation0]]
  $region90: #{cnn_mnist_forward.1} parent=0
    _
  %s12 = ssub.s32 1, %s10
  %s13 = scalar_select 0, %s12, %s10
  $region1: #{cnn_mnist_forward.1} parent=0
    #allocation4 [shape = 'u8[8192]{0}', space=smem, size = 0x2000, scoped, tag = 'input window, operand 1, single buffered']
    #allocation5 [shape = 's32[1]{0}', space=sflag, size = 0x4, scoped, tag = 'scoped memory for cnn_mnist_forward.1']
    #allocation6 [shape = 'u8[512]{0}', space=smem, size = 0x200, scoped, tag = 'input window, operand 2, single buffered']
    #allocation7 [shape = 's32[1]{0}', space=sflag, size = 0x4, scoped, tag = 'scoped memory for cnn_mnist_forward.1']
    #allocation8 [shape = 'u8[24576]{0}', space=smem, size = 0x6000, scoped, tag = 'input window, operand 3, single buffered']
    #allocation9 [shape = 'u8[512]{0}', space=smem, size = 0x200, scoped, tag = 'input window, operand 4, single buffered']
    #allocation10 [shape = 's32[1]{0}', space=sflag, size = 0x4, scoped, tag = 'scoped memory for cnn_mnist_forward.1']
    %14 = vsyncpa [#allocation5], 0
    %15 = vsyncpa [#allocation7], 0
    %16 = vsyncpa [#allocation10], 0
    // Predicated region
    $region2: #{cnn_mnist_forward.1} parent=1 // pred_check
      _
    $region3: #{cnn_mnist_forward.1} parent=1 // pred_check_branch
      %18 = sbr.rel (0) target = $region5
    $region4: #{cnn_mnist_forward.1} parent=1 // pred_region
      _
    $region5: #{cnn_mnist_forward.1} parent=1 // pred_fallthru
      _
    // Predicated region
    $region6: #{cnn_mnist_forward.1} parent=1 // pred_check
      _
    $region7: #{cnn_mnist_forward.1} parent=1 // pred_check_branch
      %20 = sbr.rel (0) target = $region9
    $region8: #{cnn_mnist_forward.1} parent=1 // pred_region
      %s22 = ssub.s32 256, 256
      %23 = vsyncadd [#allocation5], %s22
      %s24 = sshll.u32 %s1, 4
      %s25 = int_to_ptr.vmem [resolvable:$true] %s24
      %30 = dma.vmem_to_smem %s25, 256, [#allocation4], [#allocation5], 128, 128, 8
    $region9: #{cnn_mnist_forward.1} parent=1 // pred_fallthru
      _
    // Predicated region
    $region10: #{cnn_mnist_forward.1} parent=1 // pred_check
      _
    $region11: #{cnn_mnist_forward.1} parent=1 // pred_check_branch
      %32 = sbr.rel (0) target = $region13
    $region12: #{cnn_mnist_forward.1} parent=1 // pred_region
      %s34 = ssub.s32 16, 16
      %35 = vsyncadd [#allocation7], %s34
      %s37 = sshll.u32 %s2, 4
      %s38 = int_to_ptr.vmem [resolvable:$true] %s37
      %40 = dma.vmem_to_smem %s38, 16, [#allocation6], [#allocation7]
    $region13: #{cnn_mnist_forward.1} parent=1 // pred_fallthru
      _
    // Predicated region
    $region14: #{cnn_mnist_forward.1} parent=1 // pred_check
      _
    $region15: #{cnn_mnist_forward.1} parent=1 // pred_check_branch
      %42 = sbr.rel (0) target = $region17
    $region16: #{cnn_mnist_forward.1} parent=1 // pred_region
      %s44 = ssub.s32 768, 768
      %45 = vsyncadd [#allocation7], %s44
      %s46 = sshll.u32 %s3, 4
      %s47 = int_to_ptr.vmem [resolvable:$true] %s46
      %52 = dma.vmem_to_smem %s47, 768, [#allocation8], [#allocation7], 256, 256, 16
    $region17: #{cnn_mnist_forward.1} parent=1 // pred_fallthru
      _
    // Predicated region
    $region18: #{cnn_mnist_forward.1} parent=1 // pred_check
      _
    $region19: #{cnn_mnist_forward.1} parent=1 // pred_check_branch
      %54 = sbr.rel (0) target = $region21
    $region20: #{cnn_mnist_forward.1} parent=1 // pred_region
      %s56 = ssub.s32 16, 16
      %57 = vsyncadd [#allocation10], %s56
      %s59 = sshll.u32 %s4, 4
      %s60 = int_to_ptr.vmem [resolvable:$true] %s59
      %62 = dma.vmem_to_smem %s60, 16, [#allocation9], [#allocation10]
    $region21: #{cnn_mnist_forward.1} parent=1 // pred_fallthru
      _
    // Predicated region
    $region22: #{cnn_mnist_forward.1} parent=1 // pred_check
      _
    $region23: #{cnn_mnist_forward.1} parent=1 // pred_check_branch
      %64 = sbr.rel (0) target = $region25
    $region24: #{cnn_mnist_forward.1} parent=1 // pred_region
      _
    $region25: #{cnn_mnist_forward.1} parent=1 // pred_fallthru
      _
    // Predicated region
    $region26: #{cnn_mnist_forward.1} parent=1 // pred_check
      _
    $region27: #{cnn_mnist_forward.1} parent=1 // pred_check_branch
      %66 = sbr.rel (0) target = $region29
    $region28: #{cnn_mnist_forward.1} parent=1 // pred_region
      _
    $region29: #{cnn_mnist_forward.1} parent=1 // pred_fallthru
      _
    // Predicated region
    $region30: #{cnn_mnist_forward.1} parent=1 // pred_check
      _
    $region31: #{cnn_mnist_forward.1} parent=1 // pred_check_branch
      %68 = sbr.rel (0) target = $region33
    $region32: #{cnn_mnist_forward.1} parent=1 // pred_region
      _
    $region33: #{cnn_mnist_forward.1} parent=1 // pred_fallthru
      _
    // Predicated region
    $region34: #{cnn_mnist_forward.1} parent=1 // pred_check
      _
    $region35: #{cnn_mnist_forward.1} parent=1 // pred_check_branch
      %70 = sbr.rel (0) target = $region37
    $region36: #{cnn_mnist_forward.1} parent=1 // pred_region
      _
    $region37: #{cnn_mnist_forward.1} parent=1 // pred_fallthru
      _
    // Predicated region
    $region38: #{cnn_mnist_forward.1} parent=1 // pred_check
      _
    $region39: #{cnn_mnist_forward.1} parent=1 // pred_check_branch
      %72 = sbr.rel (0) target = $region41
    $region40: #{cnn_mnist_forward.1} parent=1 // pred_region
      %73 = dma.done [#allocation5], 256
    $region41: #{cnn_mnist_forward.1} parent=1 // pred_fallthru
      _
    // Predicated region
    $region42: #{cnn_mnist_forward.1} parent=1 // pred_check
      _
    $region43: #{cnn_mnist_forward.1} parent=1 // pred_check_branch
      %75 = sbr.rel (0) target = $region45
    $region44: #{cnn_mnist_forward.1} parent=1 // pred_region
      %76 = dma.done [#allocation7], 16
    $region45: #{cnn_mnist_forward.1} parent=1 // pred_fallthru
      _
    // Predicated region
    $region46: #{cnn_mnist_forward.1} parent=1 // pred_check
      _
    $region47: #{cnn_mnist_forward.1} parent=1 // pred_check_branch
      %78 = sbr.rel (0) target = $region49
    $region48: #{cnn_mnist_forward.1} parent=1 // pred_region
      %79 = dma.done [#allocation7], 768
    $region49: #{cnn_mnist_forward.1} parent=1 // pred_fallthru
      _
    // Predicated region
    $region50: #{cnn_mnist_forward.1} parent=1 // pred_check
      _
    $region51: #{cnn_mnist_forward.1} parent=1 // pred_check_branch
      %81 = sbr.rel (0) target = $region53
    $region52: #{cnn_mnist_forward.1} parent=1 // pred_region
      %82 = dma.done [#allocation10], 16
    $region53: #{cnn_mnist_forward.1} parent=1 // pred_fallthru
      _
    %83 = sfence
    loop: start=0, step=1, limit=10
    $region54: #{cnn_mnist_forward.1} parent=1 // loop_pre_header
      _
    $region55: #{cnn_mnist_forward.1} parent=1 // loop_header
      %s86 = sphi 0, %s90
      %p87 = scmp.ge.s32.totalorder %s86, 10
    $region56: #{cnn_mnist_forward.1} parent=1 // loop_header_branch
      %89 = sbr.rel (%p87) target = $region60
    $region57: #{cnn_mnist_forward.1} parent=1 // loop_body
      loop: start=0, step=1, limit=6
      $region61: #{cnn_mnist_forward.1} parent=57 // loop_pre_header
        _
      $region62: #{cnn_mnist_forward.1} parent=57 // loop_header
        %s92 = sphi 0, %s96
        %p93 = scmp.ge.s32.totalorder %s92, 6
      $region63: #{cnn_mnist_forward.1} parent=57 // loop_header_branch
        %95 = sbr.rel (%p93) target = $region67
      $region64: #{cnn_mnist_forward.1} parent=57 // loop_body
        %s97 = smul.u32 %s92, 4
        %s98 = smul.u32 %s97, 32
        %s99 = scalar_lea.vmem %s0, %s98
        %v100 = vld [vmem:[%s99] sm:$0xff]
        %v101 = vld [vmem:[%s99 + $0x8] sm:$0xff]
        %v102 = vld [vmem:[%s99 + $0x10] sm:$0xff]
        %v103 = vld [vmem:[%s99 + $0x20] sm:$0xff]
        %v104 = vld [vmem:[%s99 + $0x28] sm:$0xff]
        %v105 = vld [vmem:[%s99 + $0x30] sm:$0xff]
        %v106 = vld [vmem:[%s99 + $0x40] sm:$0xff]
        %v107 = vld [vmem:[%s99 + $0x48] sm:$0xff]
        %v108 = vld [vmem:[%s99 + $0x50] sm:$0xff]
        %v109 = vld [vmem:[%s99 + $0x60] sm:$0xff]
        %v110 = vld [vmem:[%s99 + $0x68] sm:$0xff]
        %v111 = vld [vmem:[%s99 + $0x70] sm:$0xff]
        %s112 = smul.u32 %s86, 128
        %s113 = sld [smem:[#allocation4 + %s112]]
        %v114 = vstv %s113
        %v115 = vmul.f32 %v100, %v114
        %v116 = vmul.f32 %v101, %v114
        %v117 = vmul.f32 %v102, %v114
        %v118 = vmul.f32 %v103, %v114
        %v119 = vmul.f32 %v104, %v114
        %v120 = vmul.f32 %v105, %v114
        %v121 = vmul.f32 %v106, %v114
        %v122 = vmul.f32 %v107, %v114
        %v123 = vmul.f32 %v108, %v114
        %v124 = vmul.f32 %v109, %v114
        %v125 = vmul.f32 %v110, %v114
        %v126 = vmul.f32 %v111, %v114
        %v127 = vadd.f32 %v115, 0.0
        %v128 = vadd.f32 %v116, 0.0
        %v129 = vadd.f32 %v117, 0.0
        %v130 = vadd.f32 %v118, 0.0
        %v131 = vadd.f32 %v119, 0.0
        %v132 = vadd.f32 %v120, 0.0
        %v133 = vadd.f32 %v121, 0.0
        %v134 = vadd.f32 %v122, 0.0
        %v135 = vadd.f32 %v123, 0.0
        %v136 = vadd.f32 %v124, 0.0
        %v137 = vadd.f32 %v125, 0.0
        %v138 = vadd.f32 %v126, 0.0
        %v139 = vld [vmem:[%s99 + $0x1] sm:$0xff]
        %v140 = vld [vmem:[%s99 + $0x9] sm:$0xff]
        %v141 = vld [vmem:[%s99 + $0x11] sm:$0xff]
        %v142 = vld [vmem:[%s99 + $0x21] sm:$0xff]
        %v143 = vld [vmem:[%s99 + $0x29] sm:$0xff]
        %v144 = vld [vmem:[%s99 + $0x31] sm:$0xff]
        %v145 = vld [vmem:[%s99 + $0x41] sm:$0xff]
        %v146 = vld [vmem:[%s99 + $0x49] sm:$0xff]
        %v147 = vld [vmem:[%s99 + $0x51] sm:$0xff]
        %v148 = vld [vmem:[%s99 + $0x61] sm:$0xff]
        %v149 = vld [vmem:[%s99 + $0x69] sm:$0xff]
        %v150 = vld [vmem:[%s99 + $0x71] sm:$0xff]
        %s151 = sadd.s32 %s112, 1
        %s152 = sld [smem:[#allocation4 + %s151]]
        %v153 = vstv %s152
        %v154 = vmul.f32 %v139, %v153
        %v155 = vmul.f32 %v140, %v153
        %v156 = vmul.f32 %v141, %v153
        %v157 = vmul.f32 %v142, %v153
        %v158 = vmul.f32 %v143, %v153
        %v159 = vmul.f32 %v144, %v153
        %v160 = vmul.f32 %v145, %v153
        %v161 = vmul.f32 %v146, %v153
        %v162 = vmul.f32 %v147, %v153
        %v163 = vmul.f32 %v148, %v153
        %v164 = vmul.f32 %v149, %v153
        %v165 = vmul.f32 %v150, %v153
        %v166 = vadd.f32 %v127, %v154
        %v167 = vadd.f32 %v128, %v155
        %v168 = vadd.f32 %v129, %v156
        %v169 = vadd.f32 %v130, %v157
        %v170 = vadd.f32 %v131, %v158
        %v171 = vadd.f32 %v132, %v159
        %v172 = vadd.f32 %v133, %v160
        %v173 = vadd.f32 %v134, %v161
        %v174 = vadd.f32 %v135, %v162
        %v175 = vadd.f32 %v136, %v163
        %v176 = vadd.f32 %v137, %v164
        %v177 = vadd.f32 %v138, %v165
        %v178 = vld [vmem:[%s99 + $0x2] sm:$0xff]
        %v179 = vld [vmem:[%s99 + $0xa] sm:$0xff]
        %v180 = vld [vmem:[%s99 + $0x12] sm:$0xff]
        %v181 = vld [vmem:[%s99 + $0x22] sm:$0xff]
        %v182 = vld [vmem:[%s99 + $0x2a] sm:$0xff]
        %v183 = vld [vmem:[%s99 + $0x32] sm:$0xff]
        %v184 = vld [vmem:[%s99 + $0x42] sm:$0xff]
        %v185 = vld [vmem:[%s99 + $0x4a] sm:$0xff]
        %v186 = vld [vmem:[%s99 + $0x52] sm:$0xff]
        %v187 = vld [vmem:[%s99 + $0x62] sm:$0xff]
        %v188 = vld [vmem:[%s99 + $0x6a] sm:$0xff]
        %v189 = vld [vmem:[%s99 + $0x72] sm:$0xff]
        %s190 = sadd.s32 %s112, 2
        %s191 = sld [smem:[#allocation4 + %s190]]
        %v192 = vstv %s191
        %v193 = vmul.f32 %v178, %v192
        %v194 = vmul.f32 %v179, %v192
        %v195 = vmul.f32 %v180, %v192
        %v196 = vmul.f32 %v181, %v192
        %v197 = vmul.f32 %v182, %v192
        %v198 = vmul.f32 %v183, %v192
        %v199 = vmul.f32 %v184, %v192
        %v200 = vmul.f32 %v185, %v192
        %v201 = vmul.f32 %v186, %v192
        %v202 = vmul.f32 %v187, %v192
        %v203 = vmul.f32 %v188, %v192
        %v204 = vmul.f32 %v189, %v192
        %v205 = vadd.f32 %v166, %v193
        %v206 = vadd.f32 %v167, %v194
        %v207 = vadd.f32 %v168, %v195
        %v208 = vadd.f32 %v169, %v196
        %v209 = vadd.f32 %v170, %v197
        %v210 = vadd.f32 %v171, %v198
        %v211 = vadd.f32 %v172, %v199
        %v212 = vadd.f32 %v173, %v200
        %v213 = vadd.f32 %v174, %v201
        %v214 = vadd.f32 %v175, %v202
        %v215 = vadd.f32 %v176, %v203
        %v216 = vadd.f32 %v177, %v204
        %v217 = vld [vmem:[%s99 + $0x3] sm:$0xff]
        %v218 = vld [vmem:[%s99 + $0xb] sm:$0xff]
        %v219 = vld [vmem:[%s99 + $0x13] sm:$0xff]
        %v220 = vld [vmem:[%s99 + $0x23] sm:$0xff]
        %v221 = vld [vmem:[%s99 + $0x2b] sm:$0xff]
        %v222 = vld [vmem:[%s99 + $0x33] sm:$0xff]
        %v223 = vld [vmem:[%s99 + $0x43] sm:$0xff]
        %v224 = vld [vmem:[%s99 + $0x4b] sm:$0xff]
        %v225 = vld [vmem:[%s99 + $0x53] sm:$0xff]
        %v226 = vld [vmem:[%s99 + $0x63] sm:$0xff]
        %v227 = vld [vmem:[%s99 + $0x6b] sm:$0xff]
        %v228 = vld [vmem:[%s99 + $0x73] sm:$0xff]
        %s229 = sadd.s32 %s112, 3
        %s230 = sld [smem:[#allocation4 + %s229]]
        %v231 = vstv %s230
        %v232 = vmul.f32 %v217, %v231
        %v233 = vmul.f32 %v218, %v231
        %v234 = vmul.f32 %v219, %v231
        %v235 = vmul.f32 %v220, %v231
        %v236 = vmul.f32 %v221, %v231
        %v237 = vmul.f32 %v222, %v231
        %v238 = vmul.f32 %v223, %v231
        %v239 = vmul.f32 %v224, %v231
        %v240 = vmul.f32 %v225, %v231
        %v241 = vmul.f32 %v226, %v231
        %v242 = vmul.f32 %v227, %v231
        %v243 = vmul.f32 %v228, %v231
        %v244 = vadd.f32 %v205, %v232
        %v245 = vadd.f32 %v206, %v233
        %v246 = vadd.f32 %v207, %v234
        %v247 = vadd.f32 %v208, %v235
        %v248 = vadd.f32 %v209, %v236
        %v249 = vadd.f32 %v210, %v237
        %v250 = vadd.f32 %v211, %v238
        %v251 = vadd.f32 %v212, %v239
        %v252 = vadd.f32 %v213, %v240
        %v253 = vadd.f32 %v214, %v241
        %v254 = vadd.f32 %v215, %v242
        %v255 = vadd.f32 %v216, %v243
        %v256 = vld [vmem:[%s99 + $0x4] sm:$0xff]
        %v257 = vld [vmem:[%s99 + $0xc] sm:$0xff]
        %v258 = vld [vmem:[%s99 + $0x14] sm:$0xff]
        %v259 = vld [vmem:[%s99 + $0x24] sm:$0xff]
        %v260 = vld [vmem:[%s99 + $0x2c] sm:$0xff]
        %v261 = vld [vmem:[%s99 + $0x34] sm:$0xff]
        %v262 = vld [vmem:[%s99 + $0x44] sm:$0xff]
        %v263 = vld [vmem:[%s99 + $0x4c] sm:$0xff]
        %v264 = vld [vmem:[%s99 + $0x54] sm:$0xff]
        %v265 = vld [vmem:[%s99 + $0x64] sm:$0xff]
        %v266 = vld [vmem:[%s99 + $0x6c] sm:$0xff]
        %v267 = vld [vmem:[%s99 + $0x74] sm:$0xff]
        %s268 = sadd.s32 %s112, 4
        %s269 = sld [smem:[#allocation4 + %s268]]
        %v270 = vstv %s269
        %v271 = vmul.f32 %v256, %v270
        %v272 = vmul.f32 %v257, %v270
        %v273 = vmul.f32 %v258, %v270
        %v274 = vmul.f32 %v259, %v270
        %v275 = vmul.f32 %v260, %v270
        %v276 = vmul.f32 %v261, %v270
        %v277 = vmul.f32 %v262, %v270
        %v278 = vmul.f32 %v263, %v270
        %v279 = vmul.f32 %v264, %v270
        %v280 = vmul.f32 %v265, %v270
        %v281 = vmul.f32 %v266, %v270
        %v282 = vmul.f32 %v267, %v270
        %v283 = vadd.f32 %v244, %v271
        %v284 = vadd.f32 %v245, %v272
        %v285 = vadd.f32 %v246, %v273
        %v286 = vadd.f32 %v247, %v274
        %v287 = vadd.f32 %v248, %v275
        %v288 = vadd.f32 %v249, %v276
        %v289 = vadd.f32 %v250, %v277
        %v290 = vadd.f32 %v251, %v278
        %v291 = vadd.f32 %v252, %v279
        %v292 = vadd.f32 %v253, %v280
        %v293 = vadd.f32 %v254, %v281
        %v294 = vadd.f32 %v255, %v282
        %s295 = sadd.s32 %s97, 1
        %s296 = smul.u32 %s295, 32
        %s297 = scalar_lea.vmem %s0, %s296
        %v298 = vld [vmem:[%s297] sm:$0xff]
        %v299 = vld [vmem:[%s297 + $0x8] sm:$0xff]
        %v300 = vld [vmem:[%s297 + $0x10] sm:$0xff]
        %v301 = vld [vmem:[%s297 + $0x20] sm:$0xff]
        %v302 = vld [vmem:[%s297 + $0x28] sm:$0xff]
        %v303 = vld [vmem:[%s297 + $0x30] sm:$0xff]
        %v304 = vld [vmem:[%s297 + $0x40] sm:$0xff]
        %v305 = vld [vmem:[%s297 + $0x48] sm:$0xff]
        %v306 = vld [vmem:[%s297 + $0x50] sm:$0xff]
        %v307 = vld [vmem:[%s297 + $0x60] sm:$0xff]
        %v308 = vld [vmem:[%s297 + $0x68] sm:$0xff]
        %v309 = vld [vmem:[%s297 + $0x70] sm:$0xff]
        %s310 = sadd.s32 %s112, 5
        %s311 = sld [smem:[#allocation4 + %s310]]
        %v312 = vstv %s311
        %v313 = vmul.f32 %v298, %v312
        %v314 = vmul.f32 %v299, %v312
        %v315 = vmul.f32 %v300, %v312
        %v316 = vmul.f32 %v301, %v312
        %v317 = vmul.f32 %v302, %v312
        %v318 = vmul.f32 %v303, %v312
        %v319 = vmul.f32 %v304, %v312
        %v320 = vmul.f32 %v305, %v312
        %v321 = vmul.f32 %v306, %v312
        %v322 = vmul.f32 %v307, %v312
        %v323 = vmul.f32 %v308, %v312
        %v324 = vmul.f32 %v309, %v312
        %v325 = vadd.f32 %v283, %v313
        %v326 = vadd.f32 %v284, %v314
        %v327 = vadd.f32 %v285, %v315
        %v328 = vadd.f32 %v286, %v316
        %v329 = vadd.f32 %v287, %v317
        %v330 = vadd.f32 %v288, %v318
        %v331 = vadd.f32 %v289, %v319
        %v332 = vadd.f32 %v290, %v320
        %v333 = vadd.f32 %v291, %v321
        %v334 = vadd.f32 %v292, %v322
        %v335 = vadd.f32 %v293, %v323
        %v336 = vadd.f32 %v294, %v324
        %v337 = vld [vmem:[%s297 + $0x1] sm:$0xff]
        %v338 = vld [vmem:[%s297 + $0x9] sm:$0xff]
        %v339 = vld [vmem:[%s297 + $0x11] sm:$0xff]
        %v340 = vld [vmem:[%s297 + $0x21] sm:$0xff]
        %v341 = vld [vmem:[%s297 + $0x29] sm:$0xff]
        %v342 = vld [vmem:[%s297 + $0x31] sm:$0xff]
        %v343 = vld [vmem:[%s297 + $0x41] sm:$0xff]
        %v344 = vld [vmem:[%s297 + $0x49] sm:$0xff]
        %v345 = vld [vmem:[%s297 + $0x51] sm:$0xff]
        %v346 = vld [vmem:[%s297 + $0x61] sm:$0xff]
        %v347 = vld [vmem:[%s297 + $0x69] sm:$0xff]
        %v348 = vld [vmem:[%s297 + $0x71] sm:$0xff]
        %s349 = sadd.s32 %s112, 6
        %s350 = sld [smem:[#allocation4 + %s349]]
        %v351 = vstv %s350
        %v352 = vmul.f32 %v337, %v351
        %v353 = vmul.f32 %v338, %v351
        %v354 = vmul.f32 %v339, %v351
        %v355 = vmul.f32 %v340, %v351
        %v356 = vmul.f32 %v341, %v351
        %v357 = vmul.f32 %v342, %v351
        %v358 = vmul.f32 %v343, %v351
        %v359 = vmul.f32 %v344, %v351
        %v360 = vmul.f32 %v345, %v351
        %v361 = vmul.f32 %v346, %v351
        %v362 = vmul.f32 %v347, %v351
        %v363 = vmul.f32 %v348, %v351
        %v364 = vadd.f32 %v325, %v352
        %v365 = vadd.f32 %v326, %v353
        %v366 = vadd.f32 %v327, %v354
        %v367 = vadd.f32 %v328, %v355
        %v368 = vadd.f32 %v329, %v356
        %v369 = vadd.f32 %v330, %v357
        %v370 = vadd.f32 %v331, %v358
        %v371 = vadd.f32 %v332, %v359
        %v372 = vadd.f32 %v333, %v360
        %v373 = vadd.f32 %v334, %v361
        %v374 = vadd.f32 %v335, %v362
        %v375 = vadd.f32 %v336, %v363
        %v376 = vld [vmem:[%s297 + $0x2] sm:$0xff]
        %v377 = vld [vmem:[%s297 + $0xa] sm:$0xff]
        %v378 = vld [vmem:[%s297 + $0x12] sm:$0xff]
        %v379 = vld [vmem:[%s297 + $0x22] sm:$0xff]
        %v380 = vld [vmem:[%s297 + $0x2a] sm:$0xff]
        %v381 = vld [vmem:[%s297 + $0x32] sm:$0xff]
        %v382 = vld [vmem:[%s297 + $0x42] sm:$0xff]
        %v383 = vld [vmem:[%s297 + $0x4a] sm:$0xff]
        %v384 = vld [vmem:[%s297 + $0x52] sm:$0xff]
        %v385 = vld [vmem:[%s297 + $0x62] sm:$0xff]
        %v386 = vld [vmem:[%s297 + $0x6a] sm:$0xff]
        %v387 = vld [vmem:[%s297 + $0x72] sm:$0xff]
        %s388 = sadd.s32 %s112, 7
        %s389 = sld [smem:[#allocation4 + %s388]]
        %v390 = vstv %s389
        %v391 = vmul.f32 %v376, %v390
        %v392 = vmul.f32 %v377, %v390
        %v393 = vmul.f32 %v378, %v390
        %v394 = vmul.f32 %v379, %v390
        %v395 = vmul.f32 %v380, %v390
        %v396 = vmul.f32 %v381, %v390
        %v397 = vmul.f32 %v382, %v390
        %v398 = vmul.f32 %v383, %v390
        %v399 = vmul.f32 %v384, %v390
        %v400 = vmul.f32 %v385, %v390
        %v401 = vmul.f32 %v386, %v390
        %v402 = vmul.f32 %v387, %v390
        %v403 = vadd.f32 %v364, %v391
        %v404 = vadd.f32 %v365, %v392
        %v405 = vadd.f32 %v366, %v393
        %v406 = vadd.f32 %v367, %v394
        %v407 = vadd.f32 %v368, %v395
        %v408 = vadd.f32 %v369, %v396
        %v409 = vadd.f32 %v370, %v397
        %v410 = vadd.f32 %v371, %v398
        %v411 = vadd.f32 %v372, %v399
        %v412 = vadd.f32 %v373, %v400
        %v413 = vadd.f32 %v374, %v401
        %v414 = vadd.f32 %v375, %v402
        %v415 = vld [vmem:[%s297 + $0x3] sm:$0xff]
        %v416 = vld [vmem:[%s297 + $0xb] sm:$0xff]
        %v417 = vld [vmem:[%s297 + $0x13] sm:$0xff]
        %v418 = vld [vmem:[%s297 + $0x23] sm:$0xff]
        %v419 = vld [vmem:[%s297 + $0x2b] sm:$0xff]
        %v420 = vld [vmem:[%s297 + $0x33] sm:$0xff]
        %v421 = vld [vmem:[%s297 + $0x43] sm:$0xff]
        %v422 = vld [vmem:[%s297 + $0x4b] sm:$0xff]
        %v423 = vld [vmem:[%s297 + $0x53] sm:$0xff]
        %v424 = vld [vmem:[%s297 + $0x63] sm:$0xff]
        %v425 = vld [vmem:[%s297 + $0x6b] sm:$0xff]
        %v426 = vld [vmem:[%s297 + $0x73] sm:$0xff]
        %s427 = sadd.s32 %s112, 8
        %s428 = sld [smem:[#allocation4 + %s427]]
        %v429 = vstv %s428
        %v430 = vmul.f32 %v415, %v429
        %v431 = vmul.f32 %v416, %v429
        %v432 = vmul.f32 %v417, %v429
        %v433 = vmul.f32 %v418, %v429
        %v434 = vmul.f32 %v419, %v429
        %v435 = vmul.f32 %v420, %v429
        %v436 = vmul.f32 %v421, %v429
        %v437 = vmul.f32 %v422, %v429
        %v438 = vmul.f32 %v423, %v429
        %v439 = vmul.f32 %v424, %v429
        %v440 = vmul.f32 %v425, %v429
        %v441 = vmul.f32 %v426, %v429
        %v442 = vadd.f32 %v403, %v430
        %v443 = vadd.f32 %v404, %v431
        %v444 = vadd.f32 %v405, %v432
        %v445 = vadd.f32 %v406, %v433
        %v446 = vadd.f32 %v407, %v434
        %v447 = vadd.f32 %v408, %v435
        %v448 = vadd.f32 %v409, %v436
        %v449 = vadd.f32 %v410, %v437
        %v450 = vadd.f32 %v411, %v438
        %v451 = vadd.f32 %v412, %v439
        %v452 = vadd.f32 %v413, %v440
        %v453 = vadd.f32 %v414, %v441
        %v454 = vld [vmem:[%s297 + $0x4] sm:$0xff]
        %v455 = vld [vmem:[%s297 + $0xc] sm:$0xff]
        %v456 = vld [vmem:[%s297 + $0x14] sm:$0xff]
        %v457 = vld [vmem:[%s297 + $0x24] sm:$0xff]
        %v458 = vld [vmem:[%s297 + $0x2c] sm:$0xff]
        %v459 = vld [vmem:[%s297 + $0x34] sm:$0xff]
        %v460 = vld [vmem:[%s297 + $0x44] sm:$0xff]
        %v461 = vld [vmem:[%s297 + $0x4c] sm:$0xff]
        %v462 = vld [vmem:[%s297 + $0x54] sm:$0xff]
        %v463 = vld [vmem:[%s297 + $0x64] sm:$0xff]
        %v464 = vld [vmem:[%s297 + $0x6c] sm:$0xff]
        %v465 = vld [vmem:[%s297 + $0x74] sm:$0xff]
        %s466 = sadd.s32 %s112, 9
        %s467 = sld [smem:[#allocation4 + %s466]]
        %v468 = vstv %s467
        %v469 = vmul.f32 %v454, %v468
        %v470 = vmul.f32 %v455, %v468
        %v471 = vmul.f32 %v456, %v468
        %v472 = vmul.f32 %v457, %v468
        %v473 = vmul.f32 %v458, %v468
        %v474 = vmul.f32 %v459, %v468
        %v475 = vmul.f32 %v460, %v468
        %v476 = vmul.f32 %v461, %v468
        %v477 = vmul.f32 %v462, %v468
        %v478 = vmul.f32 %v463, %v468
        %v479 = vmul.f32 %v464, %v468
        %v480 = vmul.f32 %v465, %v468
        %v481 = vadd.f32 %v442, %v469
        %v482 = vadd.f32 %v443, %v470
        %v483 = vadd.f32 %v444, %v471
        %v484 = vadd.f32 %v445, %v472
        %v485 = vadd.f32 %v446, %v473
        %v486 = vadd.f32 %v447, %v474
        %v487 = vadd.f32 %v448, %v475
        %v488 = vadd.f32 %v449, %v476
        %v489 = vadd.f32 %v450, %v477
        %v490 = vadd.f32 %v451, %v478
        %v491 = vadd.f32 %v452, %v479
        %v492 = vadd.f32 %v453, %v480
        %s493 = sadd.s32 %s97, 2
        %s494 = smul.u32 %s493, 32
        %s495 = scalar_lea.vmem %s0, %s494
        %v496 = vld [vmem:[%s495] sm:$0xff]
        %v497 = vld [vmem:[%s495 + $0x8] sm:$0xff]
        %v498 = vld [vmem:[%s495 + $0x10] sm:$0xff]
        %v499 = vld [vmem:[%s495 + $0x20] sm:$0xff]
        %v500 = vld [vmem:[%s495 + $0x28] sm:$0xff]
        %v501 = vld [vmem:[%s495 + $0x30] sm:$0xff]
        %v502 = vld [vmem:[%s495 + $0x40] sm:$0xff]
        %v503 = vld [vmem:[%s495 + $0x48] sm:$0xff]
        %v504 = vld [vmem:[%s495 + $0x50] sm:$0xff]
        %v505 = vld [vmem:[%s495 + $0x60] sm:$0xff]
        %v506 = vld [vmem:[%s495 + $0x68] sm:$0xff]
        %v507 = vld [vmem:[%s495 + $0x70] sm:$0xff]
        %s508 = sadd.s32 %s112, 10
        %s509 = sld [smem:[#allocation4 + %s508]]
        %v510 = vstv %s509
        %v511 = vmul.f32 %v496, %v510
        %v512 = vmul.f32 %v497, %v510
        %v513 = vmul.f32 %v498, %v510
        %v514 = vmul.f32 %v499, %v510
        %v515 = vmul.f32 %v500, %v510
        %v516 = vmul.f32 %v501, %v510
        %v517 = vmul.f32 %v502, %v510
        %v518 = vmul.f32 %v503, %v510
        %v519 = vmul.f32 %v504, %v510
        %v520 = vmul.f32 %v505, %v510
        %v521 = vmul.f32 %v506, %v510
        %v522 = vmul.f32 %v507, %v510
        %v523 = vadd.f32 %v481, %v511
        %v524 = vadd.f32 %v482, %v512
        %v525 = vadd.f32 %v483, %v513
        %v526 = vadd.f32 %v484, %v514
        %v527 = vadd.f32 %v485, %v515
        %v528 = vadd.f32 %v486, %v516
        %v529 = vadd.f32 %v487, %v517
        %v530 = vadd.f32 %v488, %v518
        %v531 = vadd.f32 %v489, %v519
        %v532 = vadd.f32 %v490, %v520
        %v533 = vadd.f32 %v491, %v521
        %v534 = vadd.f32 %v492, %v522
        %v535 = vld [vmem:[%s495 + $0x1] sm:$0xff]
        %v536 = vld [vmem:[%s495 + $0x9] sm:$0xff]
        %v537 = vld [vmem:[%s495 + $0x11] sm:$0xff]
        %v538 = vld [vmem:[%s495 + $0x21] sm:$0xff]
        %v539 = vld [vmem:[%s495 + $0x29] sm:$0xff]
        %v540 = vld [vmem:[%s495 + $0x31] sm:$0xff]
        %v541 = vld [vmem:[%s495 + $0x41] sm:$0xff]
        %v542 = vld [vmem:[%s495 + $0x49] sm:$0xff]
        %v543 = vld [vmem:[%s495 + $0x51] sm:$0xff]
        %v544 = vld [vmem:[%s495 + $0x61] sm:$0xff]
        %v545 = vld [vmem:[%s495 + $0x69] sm:$0xff]
        %v546 = vld [vmem:[%s495 + $0x71] sm:$0xff]
        %s547 = sadd.s32 %s112, 11
        %s548 = sld [smem:[#allocation4 + %s547]]
        %v549 = vstv %s548
        %v550 = vmul.f32 %v535, %v549
        %v551 = vmul.f32 %v536, %v549
        %v552 = vmul.f32 %v537, %v549
        %v553 = vmul.f32 %v538, %v549
        %v554 = vmul.f32 %v539, %v549
        %v555 = vmul.f32 %v540, %v549
        %v556 = vmul.f32 %v541, %v549
        %v557 = vmul.f32 %v542, %v549
        %v558 = vmul.f32 %v543, %v549
        %v559 = vmul.f32 %v544, %v549
        %v560 = vmul.f32 %v545, %v549
        %v561 = vmul.f32 %v546, %v549
        %v562 = vadd.f32 %v523, %v550
        %v563 = vadd.f32 %v524, %v551
        %v564 = vadd.f32 %v525, %v552
        %v565 = vadd.f32 %v526, %v553
        %v566 = vadd.f32 %v527, %v554
        %v567 = vadd.f32 %v528, %v555
        %v568 = vadd.f32 %v529, %v556
        %v569 = vadd.f32 %v530, %v557
        %v570 = vadd.f32 %v531, %v558
        %v571 = vadd.f32 %v532, %v559
        %v572 = vadd.f32 %v533, %v560
        %v573 = vadd.f32 %v534, %v561
        %v574 = vld [vmem:[%s495 + $0x2] sm:$0xff]
        %v575 = vld [vmem:[%s495 + $0xa] sm:$0xff]
        %v576 = vld [vmem:[%s495 + $0x12] sm:$0xff]
        %v577 = vld [vmem:[%s495 + $0x22] sm:$0xff]
        %v578 = vld [vmem:[%s495 + $0x2a] sm:$0xff]
        %v579 = vld [vmem:[%s495 + $0x32] sm:$0xff]
        %v580 = vld [vmem:[%s495 + $0x42] sm:$0xff]
        %v581 = vld [vmem:[%s495 + $0x4a] sm:$0xff]
        %v582 = vld [vmem:[%s495 + $0x52] sm:$0xff]
        %v583 = vld [vmem:[%s495 + $0x62] sm:$0xff]
        %v584 = vld [vmem:[%s495 + $0x6a] sm:$0xff]
        %v585 = vld [vmem:[%s495 + $0x72] sm:$0xff]
        %s586 = sadd.s32 %s112, 12
        %s587 = sld [smem:[#allocation4 + %s586]]
        %v588 = vstv %s587
        %v589 = vmul.f32 %v574, %v588
        %v590 = vmul.f32 %v575, %v588
        %v591 = vmul.f32 %v576, %v588
        %v592 = vmul.f32 %v577, %v588
        %v593 = vmul.f32 %v578, %v588
        %v594 = vmul.f32 %v579, %v588
        %v595 = vmul.f32 %v580, %v588
        %v596 = vmul.f32 %v581, %v588
        %v597 = vmul.f32 %v582, %v588
        %v598 = vmul.f32 %v583, %v588
        %v599 = vmul.f32 %v584, %v588
        %v600 = vmul.f32 %v585, %v588
        %v601 = vadd.f32 %v562, %v589
        %v602 = vadd.f32 %v563, %v590
        %v603 = vadd.f32 %v564, %v591
        %v604 = vadd.f32 %v565, %v592
        %v605 = vadd.f32 %v566, %v593
        %v606 = vadd.f32 %v567, %v594
        %v607 = vadd.f32 %v568, %v595
        %v608 = vadd.f32 %v569, %v596
        %v609 = vadd.f32 %v570, %v597
        %v610 = vadd.f32 %v571, %v598
        %v611 = vadd.f32 %v572, %v599
        %v612 = vadd.f32 %v573, %v600
        %v613 = vld [vmem:[%s495 + $0x3] sm:$0xff]
        %v614 = vld [vmem:[%s495 + $0xb] sm:$0xff]
        %v615 = vld [vmem:[%s495 + $0x13] sm:$0xff]
        %v616 = vld [vmem:[%s495 + $0x23] sm:$0xff]
        %v617 = vld [vmem:[%s495 + $0x2b] sm:$0xff]
        %v618 = vld [vmem:[%s495 + $0x33] sm:$0xff]
        %v619 = vld [vmem:[%s495 + $0x43] sm:$0xff]
        %v620 = vld [vmem:[%s495 + $0x4b] sm:$0xff]
        %v621 = vld [vmem:[%s495 + $0x53] sm:$0xff]
        %v622 = vld [vmem:[%s495 + $0x63] sm:$0xff]
        %v623 = vld [vmem:[%s495 + $0x6b] sm:$0xff]
        %v624 = vld [vmem:[%s495 + $0x73] sm:$0xff]
        %s625 = sadd.s32 %s112, 13
        %s626 = sld [smem:[#allocation4 + %s625]]
        %v627 = vstv %s626
        %v628 = vmul.f32 %v613, %v627
        %v629 = vmul.f32 %v614, %v627
        %v630 = vmul.f32 %v615, %v627
        %v631 = vmul.f32 %v616, %v627
        %v632 = vmul.f32 %v617, %v627
        %v633 = vmul.f32 %v618, %v627
        %v634 = vmul.f32 %v619, %v627
        %v635 = vmul.f32 %v620, %v627
        %v636 = vmul.f32 %v621, %v627
        %v637 = vmul.f32 %v622, %v627
        %v638 = vmul.f32 %v623, %v627
        %v639 = vmul.f32 %v624, %v627
        %v640 = vadd.f32 %v601, %v628
        %v641 = vadd.f32 %v602, %v629
        %v642 = vadd.f32 %v603, %v630
        %v643 = vadd.f32 %v604, %v631
        %v644 = vadd.f32 %v605, %v632
        %v645 = vadd.f32 %v606, %v633
        %v646 = vadd.f32 %v607, %v634
        %v647 = vadd.f32 %v608, %v635
        %v648 = vadd.f32 %v609, %v636
        %v649 = vadd.f32 %v610, %v637
        %v650 = vadd.f32 %v611, %v638
        %v651 = vadd.f32 %v612, %v639
        %v652 = vld [vmem:[%s495 + $0x4] sm:$0xff]
        %v653 = vld [vmem:[%s495 + $0xc] sm:$0xff]
        %v654 = vld [vmem:[%s495 + $0x14] sm:$0xff]
        %v655 = vld [vmem:[%s495 + $0x24] sm:$0xff]
        %v656 = vld [vmem:[%s495 + $0x2c] sm:$0xff]
        %v657 = vld [vmem:[%s495 + $0x34] sm:$0xff]
        %v658 = vld [vmem:[%s495 + $0x44] sm:$0xff]
        %v659 = vld [vmem:[%s495 + $0x4c] sm:$0xff]
        %v660 = vld [vmem:[%s495 + $0x54] sm:$0xff]
        %v661 = vld [vmem:[%s495 + $0x64] sm:$0xff]
        %v662 = vld [vmem:[%s495 + $0x6c] sm:$0xff]
        %v663 = vld [vmem:[%s495 + $0x74] sm:$0xff]
        %s664 = sadd.s32 %s112, 14
        %s665 = sld [smem:[#allocation4 + %s664]]
        %v666 = vstv %s665
        %v667 = vmul.f32 %v652, %v666
        %v668 = vmul.f32 %v653, %v666
        %v669 = vmul.f32 %v654, %v666
        %v670 = vmul.f32 %v655, %v666
        %v671 = vmul.f32 %v656, %v666
        %v672 = vmul.f32 %v657, %v666
        %v673 = vmul.f32 %v658, %v666
        %v674 = vmul.f32 %v659, %v666
        %v675 = vmul.f32 %v660, %v666
        %v676 = vmul.f32 %v661, %v666
        %v677 = vmul.f32 %v662, %v666
        %v678 = vmul.f32 %v663, %v666
        %v679 = vadd.f32 %v640, %v667
        %v680 = vadd.f32 %v641, %v668
        %v681 = vadd.f32 %v642, %v669
        %v682 = vadd.f32 %v643, %v670
        %v683 = vadd.f32 %v644, %v671
        %v684 = vadd.f32 %v645, %v672
        %v685 = vadd.f32 %v646, %v673
        %v686 = vadd.f32 %v647, %v674
        %v687 = vadd.f32 %v648, %v675
        %v688 = vadd.f32 %v649, %v676
        %v689 = vadd.f32 %v650, %v677
        %v690 = vadd.f32 %v651, %v678
        %s691 = sadd.s32 %s97, 3
        %s692 = smul.u32 %s691, 32
        %s693 = scalar_lea.vmem %s0, %s692
        %v694 = vld [vmem:[%s693] sm:$0xff]
        %v695 = vld [vmem:[%s693 + $0x8] sm:$0xff]
        %v696 = vld [vmem:[%s693 + $0x10] sm:$0xff]
        %v697 = vld [vmem:[%s693 + $0x20] sm:$0xff]
        %v698 = vld [vmem:[%s693 + $0x28] sm:$0xff]
        %v699 = vld [vmem:[%s693 + $0x30] sm:$0xff]
        %v700 = vld [vmem:[%s693 + $0x40] sm:$0xff]
        %v701 = vld [vmem:[%s693 + $0x48] sm:$0xff]
        %v702 = vld [vmem:[%s693 + $0x50] sm:$0xff]
        %v703 = vld [vmem:[%s693 + $0x60] sm:$0xff]
        %v704 = vld [vmem:[%s693 + $0x68] sm:$0xff]
        %v705 = vld [vmem:[%s693 + $0x70] sm:$0xff]
        %s706 = sadd.s32 %s112, 15
        %s707 = sld [smem:[#allocation4 + %s706]]
        %v708 = vstv %s707
        %v709 = vmul.f32 %v694, %v708
        %v710 = vmul.f32 %v695, %v708
        %v711 = vmul.f32 %v696, %v708
        %v712 = vmul.f32 %v697, %v708
        %v713 = vmul.f32 %v698, %v708
        %v714 = vmul.f32 %v699, %v708
        %v715 = vmul.f32 %v700, %v708
        %v716 = vmul.f32 %v701, %v708
        %v717 = vmul.f32 %v702, %v708
        %v718 = vmul.f32 %v703, %v708
        %v719 = vmul.f32 %v704, %v708
        %v720 = vmul.f32 %v705, %v708
        %v721 = vadd.f32 %v679, %v709
        %v722 = vadd.f32 %v680, %v710
        %v723 = vadd.f32 %v681, %v711
        %v724 = vadd.f32 %v682, %v712
        %v725 = vadd.f32 %v683, %v713
        %v726 = vadd.f32 %v684, %v714
        %v727 = vadd.f32 %v685, %v715
        %v728 = vadd.f32 %v686, %v716
        %v729 = vadd.f32 %v687, %v717
        %v730 = vadd.f32 %v688, %v718
        %v731 = vadd.f32 %v689, %v719
        %v732 = vadd.f32 %v690, %v720
        %v733 = vld [vmem:[%s693 + $0x1] sm:$0xff]
        %v734 = vld [vmem:[%s693 + $0x9] sm:$0xff]
        %v735 = vld [vmem:[%s693 + $0x11] sm:$0xff]
        %v736 = vld [vmem:[%s693 + $0x21] sm:$0xff]
        %v737 = vld [vmem:[%s693 + $0x29] sm:$0xff]
        %v738 = vld [vmem:[%s693 + $0x31] sm:$0xff]
        %v739 = vld [vmem:[%s693 + $0x41] sm:$0xff]
        %v740 = vld [vmem:[%s693 + $0x49] sm:$0xff]
        %v741 = vld [vmem:[%s693 + $0x51] sm:$0xff]
        %v742 = vld [vmem:[%s693 + $0x61] sm:$0xff]
        %v743 = vld [vmem:[%s693 + $0x69] sm:$0xff]
        %v744 = vld [vmem:[%s693 + $0x71] sm:$0xff]
        %s745 = sadd.s32 %s112, 16
        %s746 = sld [smem:[#allocation4 + %s745]]
        %v747 = vstv %s746
        %v748 = vmul.f32 %v733, %v747
        %v749 = vmul.f32 %v734, %v747
        %v750 = vmul.f32 %v735, %v747
        %v751 = vmul.f32 %v736, %v747
        %v752 = vmul.f32 %v737, %v747
        %v753 = vmul.f32 %v738, %v747
        %v754 = vmul.f32 %v739, %v747
        %v755 = vmul.f32 %v740, %v747
        %v756 = vmul.f32 %v741, %v747
        %v757 = vmul.f32 %v742, %v747
        %v758 = vmul.f32 %v743, %v747
        %v759 = vmul.f32 %v744, %v747
        %v760 = vadd.f32 %v721, %v748
        %v761 = vadd.f32 %v722, %v749
        %v762 = vadd.f32 %v723, %v750
        %v763 = vadd.f32 %v724, %v751
        %v764 = vadd.f32 %v725, %v752
        %v765 = vadd.f32 %v726, %v753
        %v766 = vadd.f32 %v727, %v754
        %v767 = vadd.f32 %v728, %v755
        %v768 = vadd.f32 %v729, %v756
        %v769 = vadd.f32 %v730, %v757
        %v770 = vadd.f32 %v731, %v758
        %v771 = vadd.f32 %v732, %v759
        %v772 = vld [vmem:[%s693 + $0x2] sm:$0xff]
        %v773 = vld [vmem:[%s693 + $0xa] sm:$0xff]
        %v774 = vld [vmem:[%s693 + $0x12] sm:$0xff]
        %v775 = vld [vmem:[%s693 + $0x22] sm:$0xff]
        %v776 = vld [vmem:[%s693 + $0x2a] sm:$0xff]
        %v777 = vld [vmem:[%s693 + $0x32] sm:$0xff]
        %v778 = vld [vmem:[%s693 + $0x42] sm:$0xff]
        %v779 = vld [vmem:[%s693 + $0x4a] sm:$0xff]
        %v780 = vld [vmem:[%s693 + $0x52] sm:$0xff]
        %v781 = vld [vmem:[%s693 + $0x62] sm:$0xff]
        %v782 = vld [vmem:[%s693 + $0x6a] sm:$0xff]
        %v783 = vld [vmem:[%s693 + $0x72] sm:$0xff]
        %s784 = sadd.s32 %s112, 17
        %s785 = sld [smem:[#allocation4 + %s784]]
        %v786 = vstv %s785
        %v787 = vmul.f32 %v772, %v786
        %v788 = vmul.f32 %v773, %v786
        %v789 = vmul.f32 %v774, %v786
        %v790 = vmul.f32 %v775, %v786
        %v791 = vmul.f32 %v776, %v786
        %v792 = vmul.f32 %v777, %v786
        %v793 = vmul.f32 %v778, %v786
        %v794 = vmul.f32 %v779, %v786
        %v795 = vmul.f32 %v780, %v786
        %v796 = vmul.f32 %v781, %v786
        %v797 = vmul.f32 %v782, %v786
        %v798 = vmul.f32 %v783, %v786
        %v799 = vadd.f32 %v760, %v787
        %v800 = vadd.f32 %v761, %v788
        %v801 = vadd.f32 %v762, %v789
        %v802 = vadd.f32 %v763, %v790
        %v803 = vadd.f32 %v764, %v791
        %v804 = vadd.f32 %v765, %v792
        %v805 = vadd.f32 %v766, %v793
        %v806 = vadd.f32 %v767, %v794
        %v807 = vadd.f32 %v768, %v795
        %v808 = vadd.f32 %v769, %v796
        %v809 = vadd.f32 %v770, %v797
        %v810 = vadd.f32 %v771, %v798
        %v811 = vld [vmem:[%s693 + $0x3] sm:$0xff]
        %v812 = vld [vmem:[%s693 + $0xb] sm:$0xff]
        %v813 = vld [vmem:[%s693 + $0x13] sm:$0xff]
        %v814 = vld [vmem:[%s693 + $0x23] sm:$0xff]
        %v815 = vld [vmem:[%s693 + $0x2b] sm:$0xff]
        %v816 = vld [vmem:[%s693 + $0x33] sm:$0xff]
        %v817 = vld [vmem:[%s693 + $0x43] sm:$0xff]
        %v818 = vld [vmem:[%s693 + $0x4b] sm:$0xff]
        %v819 = vld [vmem:[%s693 + $0x53] sm:$0xff]
        %v820 = vld [vmem:[%s693 + $0x63] sm:$0xff]
        %v821 = vld [vmem:[%s693 + $0x6b] sm:$0xff]
        %v822 = vld [vmem:[%s693 + $0x73] sm:$0xff]
        %s823 = sadd.s32 %s112, 18
        %s824 = sld [smem:[#allocation4 + %s823]]
        %v825 = vstv %s824
        %v826 = vmul.f32 %v811, %v825
        %v827 = vmul.f32 %v812, %v825
        %v828 = vmul.f32 %v813, %v825
        %v829 = vmul.f32 %v814, %v825
        %v830 = vmul.f32 %v815, %v825
        %v831 = vmul.f32 %v816, %v825
        %v832 = vmul.f32 %v817, %v825
        %v833 = vmul.f32 %v818, %v825
        %v834 = vmul.f32 %v819, %v825
        %v835 = vmul.f32 %v820, %v825
        %v836 = vmul.f32 %v821, %v825
        %v837 = vmul.f32 %v822, %v825
        %v838 = vadd.f32 %v799, %v826
        %v839 = vadd.f32 %v800, %v827
        %v840 = vadd.f32 %v801, %v828
        %v841 = vadd.f32 %v802, %v829
        %v842 = vadd.f32 %v803, %v830
        %v843 = vadd.f32 %v804, %v831
        %v844 = vadd.f32 %v805, %v832
        %v845 = vadd.f32 %v806, %v833
        %v846 = vadd.f32 %v807, %v834
        %v847 = vadd.f32 %v808, %v835
        %v848 = vadd.f32 %v809, %v836
        %v849 = vadd.f32 %v810, %v837
        %v850 = vld [vmem:[%s693 + $0x4] sm:$0xff]
        %v851 = vld [vmem:[%s693 + $0xc] sm:$0xff]
        %v852 = vld [vmem:[%s693 + $0x14] sm:$0xff]
        %v853 = vld [vmem:[%s693 + $0x24] sm:$0xff]
        %v854 = vld [vmem:[%s693 + $0x2c] sm:$0xff]
        %v855 = vld [vmem:[%s693 + $0x34] sm:$0xff]
        %v856 = vld [vmem:[%s693 + $0x44] sm:$0xff]
        %v857 = vld [vmem:[%s693 + $0x4c] sm:$0xff]
        %v858 = vld [vmem:[%s693 + $0x54] sm:$0xff]
        %v859 = vld [vmem:[%s693 + $0x64] sm:$0xff]
        %v860 = vld [vmem:[%s693 + $0x6c] sm:$0xff]
        %v861 = vld [vmem:[%s693 + $0x74] sm:$0xff]
        %s862 = sadd.s32 %s112, 19
        %s863 = sld [smem:[#allocation4 + %s862]]
        %v864 = vstv %s863
        %v865 = vmul.f32 %v850, %v864
        %v866 = vmul.f32 %v851, %v864
        %v867 = vmul.f32 %v852, %v864
        %v868 = vmul.f32 %v853, %v864
        %v869 = vmul.f32 %v854, %v864
        %v870 = vmul.f32 %v855, %v864
        %v871 = vmul.f32 %v856, %v864
        %v872 = vmul.f32 %v857, %v864
        %v873 = vmul.f32 %v858, %v864
        %v874 = vmul.f32 %v859, %v864
        %v875 = vmul.f32 %v860, %v864
        %v876 = vmul.f32 %v861, %v864
        %v877 = vadd.f32 %v838, %v865
        %v878 = vadd.f32 %v839, %v866
        %v879 = vadd.f32 %v840, %v867
        %v880 = vadd.f32 %v841, %v868
        %v881 = vadd.f32 %v842, %v869
        %v882 = vadd.f32 %v843, %v870
        %v883 = vadd.f32 %v844, %v871
        %v884 = vadd.f32 %v845, %v872
        %v885 = vadd.f32 %v846, %v873
        %v886 = vadd.f32 %v847, %v874
        %v887 = vadd.f32 %v848, %v875
        %v888 = vadd.f32 %v849, %v876
        %s889 = sadd.s32 %s97, 4
        %s890 = smul.u32 %s889, 32
        %s891 = scalar_lea.vmem %s0, %s890
        %v892 = vld [vmem:[%s891] sm:$0xff]
        %v893 = vld [vmem:[%s891 + $0x8] sm:$0xff]
        %v894 = vld [vmem:[%s891 + $0x10] sm:$0xff]
        %v895 = vld [vmem:[%s891 + $0x20] sm:$0xff]
        %v896 = vld [vmem:[%s891 + $0x28] sm:$0xff]
        %v897 = vld [vmem:[%s891 + $0x30] sm:$0xff]
        %v898 = vld [vmem:[%s891 + $0x40] sm:$0xff]
        %v899 = vld [vmem:[%s891 + $0x48] sm:$0xff]
        %v900 = vld [vmem:[%s891 + $0x50] sm:$0xff]
        %v901 = vld [vmem:[%s891 + $0x60] sm:$0xff]
        %v902 = vld [vmem:[%s891 + $0x68] sm:$0xff]
        %v903 = vld [vmem:[%s891 + $0x70] sm:$0xff]
        %s904 = sadd.s32 %s112, 20
        %s905 = sld [smem:[#allocation4 + %s904]]
        %v906 = vstv %s905
        %v907 = vmul.f32 %v892, %v906
        %v908 = vmul.f32 %v893, %v906
        %v909 = vmul.f32 %v894, %v906
        %v910 = vmul.f32 %v895, %v906
        %v911 = vmul.f32 %v896, %v906
        %v912 = vmul.f32 %v897, %v906
        %v913 = vmul.f32 %v898, %v906
        %v914 = vmul.f32 %v899, %v906
        %v915 = vmul.f32 %v900, %v906
        %v916 = vmul.f32 %v901, %v906
        %v917 = vmul.f32 %v902, %v906
        %v918 = vmul.f32 %v903, %v906
        %v919 = vadd.f32 %v877, %v907
        %v920 = vadd.f32 %v878, %v908
        %v921 = vadd.f32 %v879, %v909
        %v922 = vadd.f32 %v880, %v910
        %v923 = vadd.f32 %v881, %v911
        %v924 = vadd.f32 %v882, %v912
        %v925 = vadd.f32 %v883, %v913
        %v926 = vadd.f32 %v884, %v914
        %v927 = vadd.f32 %v885, %v915
        %v928 = vadd.f32 %v886, %v916
        %v929 = vadd.f32 %v887, %v917
        %v930 = vadd.f32 %v888, %v918
        %v931 = vld [vmem:[%s891 + $0x1] sm:$0xff]
        %v932 = vld [vmem:[%s891 + $0x9] sm:$0xff]
        %v933 = vld [vmem:[%s891 + $0x11] sm:$0xff]
        %v934 = vld [vmem:[%s891 + $0x21] sm:$0xff]
        %v935 = vld [vmem:[%s891 + $0x29] sm:$0xff]
        %v936 = vld [vmem:[%s891 + $0x31] sm:$0xff]
        %v937 = vld [vmem:[%s891 + $0x41] sm:$0xff]
        %v938 = vld [vmem:[%s891 + $0x49] sm:$0xff]
        %v939 = vld [vmem:[%s891 + $0x51] sm:$0xff]
        %v940 = vld [vmem:[%s891 + $0x61] sm:$0xff]
        %v941 = vld [vmem:[%s891 + $0x69] sm:$0xff]
        %v942 = vld [vmem:[%s891 + $0x71] sm:$0xff]
        %s943 = sadd.s32 %s112, 21
        %s944 = sld [smem:[#allocation4 + %s943]]
        %v945 = vstv %s944
        %v946 = vmul.f32 %v931, %v945
        %v947 = vmul.f32 %v932, %v945
        %v948 = vmul.f32 %v933, %v945
        %v949 = vmul.f32 %v934, %v945
        %v950 = vmul.f32 %v935, %v945
        %v951 = vmul.f32 %v936, %v945
        %v952 = vmul.f32 %v937, %v945
        %v953 = vmul.f32 %v938, %v945
        %v954 = vmul.f32 %v939, %v945
        %v955 = vmul.f32 %v940, %v945
        %v956 = vmul.f32 %v941, %v945
        %v957 = vmul.f32 %v942, %v945
        %v958 = vadd.f32 %v919, %v946
        %v959 = vadd.f32 %v920, %v947
        %v960 = vadd.f32 %v921, %v948
        %v961 = vadd.f32 %v922, %v949
        %v962 = vadd.f32 %v923, %v950
        %v963 = vadd.f32 %v924, %v951
        %v964 = vadd.f32 %v925, %v952
        %v965 = vadd.f32 %v926, %v953
        %v966 = vadd.f32 %v927, %v954
        %v967 = vadd.f32 %v928, %v955
        %v968 = vadd.f32 %v929, %v956
        %v969 = vadd.f32 %v930, %v957
        %v970 = vld [vmem:[%s891 + $0x2] sm:$0xff]
        %v971 = vld [vmem:[%s891 + $0xa] sm:$0xff]
        %v972 = vld [vmem:[%s891 + $0x12] sm:$0xff]
        %v973 = vld [vmem:[%s891 + $0x22] sm:$0xff]
        %v974 = vld [vmem:[%s891 + $0x2a] sm:$0xff]
        %v975 = vld [vmem:[%s891 + $0x32] sm:$0xff]
        %v976 = vld [vmem:[%s891 + $0x42] sm:$0xff]
        %v977 = vld [vmem:[%s891 + $0x4a] sm:$0xff]
        %v978 = vld [vmem:[%s891 + $0x52] sm:$0xff]
        %v979 = vld [vmem:[%s891 + $0x62] sm:$0xff]
        %v980 = vld [vmem:[%s891 + $0x6a] sm:$0xff]
        %v981 = vld [vmem:[%s891 + $0x72] sm:$0xff]
        %s982 = sadd.s32 %s112, 22
        %s983 = sld [smem:[#allocation4 + %s982]]
        %v984 = vstv %s983
        %v985 = vmul.f32 %v970, %v984
        %v986 = vmul.f32 %v971, %v984
        %v987 = vmul.f32 %v972, %v984
        %v988 = vmul.f32 %v973, %v984
        %v989 = vmul.f32 %v974, %v984
        %v990 = vmul.f32 %v975, %v984
        %v991 = vmul.f32 %v976, %v984
        %v992 = vmul.f32 %v977, %v984
        %v993 = vmul.f32 %v978, %v984
        %v994 = vmul.f32 %v979, %v984
        %v995 = vmul.f32 %v980, %v984
        %v996 = vmul.f32 %v981, %v984
        %v997 = vadd.f32 %v958, %v985
        %v998 = vadd.f32 %v959, %v986
        %v999 = vadd.f32 %v960, %v987
        %v1000 = vadd.f32 %v961, %v988
        %v1001 = vadd.f32 %v962, %v989
        %v1002 = vadd.f32 %v963, %v990
        %v1003 = vadd.f32 %v964, %v991
        %v1004 = vadd.f32 %v965, %v992
        %v1005 = vadd.f32 %v966, %v993
        %v1006 = vadd.f32 %v967, %v994
        %v1007 = vadd.f32 %v968, %v995
        %v1008 = vadd.f32 %v969, %v996
        %v1009 = vld [vmem:[%s891 + $0x3] sm:$0xff]
        %v1010 = vld [vmem:[%s891 + $0xb] sm:$0xff]
        %v1011 = vld [vmem:[%s891 + $0x13] sm:$0xff]
        %v1012 = vld [vmem:[%s891 + $0x23] sm:$0xff]
        %v1013 = vld [vmem:[%s891 + $0x2b] sm:$0xff]
        %v1014 = vld [vmem:[%s891 + $0x33] sm:$0xff]
        %v1015 = vld [vmem:[%s891 + $0x43] sm:$0xff]
        %v1016 = vld [vmem:[%s891 + $0x4b] sm:$0xff]
        %v1017 = vld [vmem:[%s891 + $0x53] sm:$0xff]
        %v1018 = vld [vmem:[%s891 + $0x63] sm:$0xff]
        %v1019 = vld [vmem:[%s891 + $0x6b] sm:$0xff]
        %v1020 = vld [vmem:[%s891 + $0x73] sm:$0xff]
        %s1021 = sadd.s32 %s112, 23
        %s1022 = sld [smem:[#allocation4 + %s1021]]
        %v1023 = vstv %s1022
        %v1024 = vmul.f32 %v1009, %v1023
        %v1025 = vmul.f32 %v1010, %v1023
        %v1026 = vmul.f32 %v1011, %v1023
        %v1027 = vmul.f32 %v1012, %v1023
        %v1028 = vmul.f32 %v1013, %v1023
        %v1029 = vmul.f32 %v1014, %v1023
        %v1030 = vmul.f32 %v1015, %v1023
        %v1031 = vmul.f32 %v1016, %v1023
        %v1032 = vmul.f32 %v1017, %v1023
        %v1033 = vmul.f32 %v1018, %v1023
        %v1034 = vmul.f32 %v1019, %v1023
        %v1035 = vmul.f32 %v1020, %v1023
        %v1036 = vadd.f32 %v997, %v1024
        %v1037 = vadd.f32 %v998, %v1025
        %v1038 = vadd.f32 %v999, %v1026
        %v1039 = vadd.f32 %v1000, %v1027
        %v1040 = vadd.f32 %v1001, %v1028
        %v1041 = vadd.f32 %v1002, %v1029
        %v1042 = vadd.f32 %v1003, %v1030
        %v1043 = vadd.f32 %v1004, %v1031
        %v1044 = vadd.f32 %v1005, %v1032
        %v1045 = vadd.f32 %v1006, %v1033
        %v1046 = vadd.f32 %v1007, %v1034
        %v1047 = vadd.f32 %v1008, %v1035
        %v1048 = vld [vmem:[%s891 + $0x4] sm:$0xff]
        %v1049 = vld [vmem:[%s891 + $0xc] sm:$0xff]
        %v1050 = vld [vmem:[%s891 + $0x14] sm:$0xff]
        %v1051 = vld [vmem:[%s891 + $0x24] sm:$0xff]
        %v1052 = vld [vmem:[%s891 + $0x2c] sm:$0xff]
        %v1053 = vld [vmem:[%s891 + $0x34] sm:$0xff]
        %v1054 = vld [vmem:[%s891 + $0x44] sm:$0xff]
        %v1055 = vld [vmem:[%s891 + $0x4c] sm:$0xff]
        %v1056 = vld [vmem:[%s891 + $0x54] sm:$0xff]
        %v1057 = vld [vmem:[%s891 + $0x64] sm:$0xff]
        %v1058 = vld [vmem:[%s891 + $0x6c] sm:$0xff]
        %v1059 = vld [vmem:[%s891 + $0x74] sm:$0xff]
        %s1060 = sadd.s32 %s112, 24
        %s1061 = sld [smem:[#allocation4 + %s1060]]
        %v1062 = vstv %s1061
        %v1063 = vmul.f32 %v1048, %v1062
        %v1064 = vmul.f32 %v1049, %v1062
        %v1065 = vmul.f32 %v1050, %v1062
        %v1066 = vmul.f32 %v1051, %v1062
        %v1067 = vmul.f32 %v1052, %v1062
        %v1068 = vmul.f32 %v1053, %v1062
        %v1069 = vmul.f32 %v1054, %v1062
        %v1070 = vmul.f32 %v1055, %v1062
        %v1071 = vmul.f32 %v1056, %v1062
        %v1072 = vmul.f32 %v1057, %v1062
        %v1073 = vmul.f32 %v1058, %v1062
        %v1074 = vmul.f32 %v1059, %v1062
        %v1075 = vadd.f32 %v1036, %v1063
        %v1076 = vadd.f32 %v1037, %v1064
        %v1077 = vadd.f32 %v1038, %v1065
        %v1078 = vadd.f32 %v1039, %v1066
        %v1079 = vadd.f32 %v1040, %v1067
        %v1080 = vadd.f32 %v1041, %v1068
        %v1081 = vadd.f32 %v1042, %v1069
        %v1082 = vadd.f32 %v1043, %v1070
        %v1083 = vadd.f32 %v1044, %v1071
        %v1084 = vadd.f32 %v1045, %v1072
        %v1085 = vadd.f32 %v1046, %v1073
        %v1086 = vadd.f32 %v1047, %v1074
        %s1087 = sld [smem:[#allocation6 + %s86]]
        %v1088 = vstv %s1087
        %v1089 = vadd.f32 %v1075, %v1088
        %v1090 = vadd.f32 %v1076, %v1088
        %v1091 = vadd.f32 %v1077, %v1088
        %v1092 = vadd.f32 %v1078, %v1088
        %v1093 = vadd.f32 %v1079, %v1088
        %v1094 = vadd.f32 %v1080, %v1088
        %v1095 = vadd.f32 %v1081, %v1088
        %v1096 = vadd.f32 %v1082, %v1088
        %v1097 = vadd.f32 %v1083, %v1088
        %v1098 = vadd.f32 %v1084, %v1088
        %v1099 = vadd.f32 %v1085, %v1088
        %v1100 = vadd.f32 %v1086, %v1088
        %v1101 = vmax.f32 %v1089, %v1092
        %v1102 = vmax.f32 %v1090, %v1093
        %v1103 = vmax.f32 %v1091, %v1094
        %v1104 = vmax.f32 %v1095, %v1098
        %v1105 = vmax.f32 %v1096, %v1099
        %v1106 = vmax.f32 %v1097, %v1100
        %v1113 = vcombine.high %v1101, %v1101
        %v1115 = vunpack.c.l.s4 1983009808
        %v1116 = vunpack.c.0.s8 %v1115
        %v1117 = vlaneseq
        %v1118 = vshrl.u32 %v1117, 7
        %v1119 = vsub.s32 %v1116, %v1118
        %v1120 = vrot.slane %v1101, %v1119
        %v1122 = vunpack.c.l.s4 1983009808
        %v1123 = vunpack.c.0.s8 %v1122
        %v1124 = vlaneseq
        %v1125 = vshrl.u32 %v1124, 7
        %v1126 = vsub.s32 %v1123, %v1125
        %v1127 = vrot.slane %v1113, %v1126
        %v1128 = vcombine.high %v1120, %v1120
        %v1129 = vcombine.high %v1127, %v1127
        %v1130 = vcombine.high %v1102, %v1102
        %v1132 = vunpack.c.l.s4 1983009808
        %v1133 = vunpack.c.0.s8 %v1132
        %v1134 = vlaneseq
        %v1135 = vshrl.u32 %v1134, 7
        %v1136 = vsub.s32 %v1133, %v1135
        %v1137 = vrot.slane %v1102, %v1136
        %v1139 = vunpack.c.l.s4 1983009808
        %v1140 = vunpack.c.0.s8 %v1139
        %v1141 = vlaneseq
        %v1142 = vshrl.u32 %v1141, 7
        %v1143 = vsub.s32 %v1140, %v1142
        %v1144 = vrot.slane %v1130, %v1143
        %v1145 = vcombine.high %v1137, %v1137
        %v1146 = vcombine.high %v1144, %v1144
        %v1147 = vcombine.high %v1103, %v1103
        %v1149 = vunpack.c.l.s4 1983009808
        %v1150 = vunpack.c.0.s8 %v1149
        %v1151 = vlaneseq
        %v1152 = vshrl.u32 %v1151, 7
        %v1153 = vsub.s32 %v1150, %v1152
        %v1154 = vrot.slane %v1103, %v1153
        %v1156 = vunpack.c.l.s4 1983009808
        %v1157 = vunpack.c.0.s8 %v1156
        %v1158 = vlaneseq
        %v1159 = vshrl.u32 %v1158, 7
        %v1160 = vsub.s32 %v1157, %v1159
        %v1161 = vrot.slane %v1147, %v1160
        %v1162 = vcombine.high %v1154, %v1154
        %v1163 = vcombine.high %v1161, %v1161
        %v1164 = vcombine.high %v1104, %v1104
        %v1166 = vunpack.c.l.s4 1983009808
        %v1167 = vunpack.c.0.s8 %v1166
        %v1168 = vlaneseq
        %v1169 = vshrl.u32 %v1168, 7
        %v1170 = vsub.s32 %v1167, %v1169
        %v1171 = vrot.slane %v1104, %v1170
        %v1173 = vunpack.c.l.s4 1983009808
        %v1174 = vunpack.c.0.s8 %v1173
        %v1175 = vlaneseq
        %v1176 = vshrl.u32 %v1175, 7
        %v1177 = vsub.s32 %v1174, %v1176
        %v1178 = vrot.slane %v1164, %v1177
        %v1179 = vcombine.high %v1171, %v1171
        %v1180 = vcombine.high %v1178, %v1178
        %v1181 = vcombine.high %v1105, %v1105
        %v1183 = vunpack.c.l.s4 1983009808
        %v1184 = vunpack.c.0.s8 %v1183
        %v1185 = vlaneseq
        %v1186 = vshrl.u32 %v1185, 7
        %v1187 = vsub.s32 %v1184, %v1186
        %v1188 = vrot.slane %v1105, %v1187
        %v1190 = vunpack.c.l.s4 1983009808
        %v1191 = vunpack.c.0.s8 %v1190
        %v1192 = vlaneseq
        %v1193 = vshrl.u32 %v1192, 7
        %v1194 = vsub.s32 %v1191, %v1193
        %v1195 = vrot.slane %v1181, %v1194
        %v1196 = vcombine.high %v1188, %v1188
        %v1197 = vcombine.high %v1195, %v1195
        %v1198 = vcombine.high %v1106, %v1106
        %v1200 = vunpack.c.l.s4 1983009808
        %v1201 = vunpack.c.0.s8 %v1200
        %v1202 = vlaneseq
        %v1203 = vshrl.u32 %v1202, 7
        %v1204 = vsub.s32 %v1201, %v1203
        %v1205 = vrot.slane %v1106, %v1204
        %v1207 = vunpack.c.l.s4 1983009808
        %v1208 = vunpack.c.0.s8 %v1207
        %v1209 = vlaneseq
        %v1210 = vshrl.u32 %v1209, 7
        %v1211 = vsub.s32 %v1208, %v1210
        %v1212 = vrot.slane %v1198, %v1211
        %v1213 = vcombine.high %v1205, %v1205
        %v1214 = vcombine.high %v1212, %v1212
        %vm1239 = vcmask 1041408
        %v1240 = vsel %vm1239, %v1120, -inf
        %v1241 = vrot.slane %v1240, 4
        %v1242 = vmax.f32 %v1240, %v1241
        %v1243 = vrot.slane %v1242, 2
        %v1244 = vmax.f32 %v1242, %v1243
        %v1245 = vrot.slane %v1244, 1
        %v1246 = vmax.f32 %v1244, %v1245
        %v1247 = vsel %vm1239, %v1128, -inf
        %v1248 = vrot.slane %v1247, 4
        %v1249 = vmax.f32 %v1247, %v1248
        %v1250 = vrot.slane %v1249, 2
        %v1251 = vmax.f32 %v1249, %v1250
        %v1252 = vrot.slane %v1251, 1
        %v1253 = vmax.f32 %v1251, %v1252
        %v1254 = vsel %vm1239, %v1127, -inf
        %v1255 = vrot.slane %v1254, 4
        %v1256 = vmax.f32 %v1254, %v1255
        %v1257 = vrot.slane %v1256, 2
        %v1258 = vmax.f32 %v1256, %v1257
        %v1259 = vrot.slane %v1258, 1
        %v1260 = vmax.f32 %v1258, %v1259
        %v1261 = vsel %vm1239, %v1129, -inf
        %v1262 = vrot.slane %v1261, 4
        %v1263 = vmax.f32 %v1261, %v1262
        %v1264 = vrot.slane %v1263, 2
        %v1265 = vmax.f32 %v1263, %v1264
        %v1266 = vrot.slane %v1265, 1
        %v1267 = vmax.f32 %v1265, %v1266
        %v1268 = vsel %vm1239, %v1137, -inf
        %v1269 = vrot.slane %v1268, 4
        %v1270 = vmax.f32 %v1268, %v1269
        %v1271 = vrot.slane %v1270, 2
        %v1272 = vmax.f32 %v1270, %v1271
        %v1273 = vrot.slane %v1272, 1
        %v1274 = vmax.f32 %v1272, %v1273
        %v1275 = vsel %vm1239, %v1145, -inf
        %v1276 = vrot.slane %v1275, 4
        %v1277 = vmax.f32 %v1275, %v1276
        %v1278 = vrot.slane %v1277, 2
        %v1279 = vmax.f32 %v1277, %v1278
        %v1280 = vrot.slane %v1279, 1
        %v1281 = vmax.f32 %v1279, %v1280
        %v1282 = vsel %vm1239, %v1144, -inf
        %v1283 = vrot.slane %v1282, 4
        %v1284 = vmax.f32 %v1282, %v1283
        %v1285 = vrot.slane %v1284, 2
        %v1286 = vmax.f32 %v1284, %v1285
        %v1287 = vrot.slane %v1286, 1
        %v1288 = vmax.f32 %v1286, %v1287
        %v1289 = vsel %vm1239, %v1146, -inf
        %v1290 = vrot.slane %v1289, 4
        %v1291 = vmax.f32 %v1289, %v1290
        %v1292 = vrot.slane %v1291, 2
        %v1293 = vmax.f32 %v1291, %v1292
        %v1294 = vrot.slane %v1293, 1
        %v1295 = vmax.f32 %v1293, %v1294
        %v1296 = vsel %vm1239, %v1154, -inf
        %v1297 = vrot.slane %v1296, 4
        %v1298 = vmax.f32 %v1296, %v1297
        %v1299 = vrot.slane %v1298, 2
        %v1300 = vmax.f32 %v1298, %v1299
        %v1301 = vrot.slane %v1300, 1
        %v1302 = vmax.f32 %v1300, %v1301
        %v1303 = vsel %vm1239, %v1162, -inf
        %v1304 = vrot.slane %v1303, 4
        %v1305 = vmax.f32 %v1303, %v1304
        %v1306 = vrot.slane %v1305, 2
        %v1307 = vmax.f32 %v1305, %v1306
        %v1308 = vrot.slane %v1307, 1
        %v1309 = vmax.f32 %v1307, %v1308
        %v1310 = vsel %vm1239, %v1161, -inf
        %v1311 = vrot.slane %v1310, 4
        %v1312 = vmax.f32 %v1310, %v1311
        %v1313 = vrot.slane %v1312, 2
        %v1314 = vmax.f32 %v1312, %v1313
        %v1315 = vrot.slane %v1314, 1
        %v1316 = vmax.f32 %v1314, %v1315
        %v1317 = vsel %vm1239, %v1163, -inf
        %v1318 = vrot.slane %v1317, 4
        %v1319 = vmax.f32 %v1317, %v1318
        %v1320 = vrot.slane %v1319, 2
        %v1321 = vmax.f32 %v1319, %v1320
        %v1322 = vrot.slane %v1321, 1
        %v1323 = vmax.f32 %v1321, %v1322
        %v1324 = vsel %vm1239, %v1171, -inf
        %v1325 = vrot.slane %v1324, 4
        %v1326 = vmax.f32 %v1324, %v1325
        %v1327 = vrot.slane %v1326, 2
        %v1328 = vmax.f32 %v1326, %v1327
        %v1329 = vrot.slane %v1328, 1
        %v1330 = vmax.f32 %v1328, %v1329
        %v1331 = vsel %vm1239, %v1179, -inf
        %v1332 = vrot.slane %v1331, 4
        %v1333 = vmax.f32 %v1331, %v1332
        %v1334 = vrot.slane %v1333, 2
        %v1335 = vmax.f32 %v1333, %v1334
        %v1336 = vrot.slane %v1335, 1
        %v1337 = vmax.f32 %v1335, %v1336
        %v1338 = vsel %vm1239, %v1178, -inf
        %v1339 = vrot.slane %v1338, 4
        %v1340 = vmax.f32 %v1338, %v1339
        %v1341 = vrot.slane %v1340, 2
        %v1342 = vmax.f32 %v1340, %v1341
        %v1343 = vrot.slane %v1342, 1
        %v1344 = vmax.f32 %v1342, %v1343
        %v1345 = vsel %vm1239, %v1180, -inf
        %v1346 = vrot.slane %v1345, 4
        %v1347 = vmax.f32 %v1345, %v1346
        %v1348 = vrot.slane %v1347, 2
        %v1349 = vmax.f32 %v1347, %v1348
        %v1350 = vrot.slane %v1349, 1
        %v1351 = vmax.f32 %v1349, %v1350
        %v1352 = vsel %vm1239, %v1188, -inf
        %v1353 = vrot.slane %v1352, 4
        %v1354 = vmax.f32 %v1352, %v1353
        %v1355 = vrot.slane %v1354, 2
        %v1356 = vmax.f32 %v1354, %v1355
        %v1357 = vrot.slane %v1356, 1
        %v1358 = vmax.f32 %v1356, %v1357
        %v1359 = vsel %vm1239, %v1196, -inf
        %v1360 = vrot.slane %v1359, 4
        %v1361 = vmax.f32 %v1359, %v1360
        %v1362 = vrot.slane %v1361, 2
        %v1363 = vmax.f32 %v1361, %v1362
        %v1364 = vrot.slane %v1363, 1
        %v1365 = vmax.f32 %v1363, %v1364
        %v1366 = vsel %vm1239, %v1195, -inf
        %v1367 = vrot.slane %v1366, 4
        %v1368 = vmax.f32 %v1366, %v1367
        %v1369 = vrot.slane %v1368, 2
        %v1370 = vmax.f32 %v1368, %v1369
        %v1371 = vrot.slane %v1370, 1
        %v1372 = vmax.f32 %v1370, %v1371
        %v1373 = vsel %vm1239, %v1197, -inf
        %v1374 = vrot.slane %v1373, 4
        %v1375 = vmax.f32 %v1373, %v1374
        %v1376 = vrot.slane %v1375, 2
        %v1377 = vmax.f32 %v1375, %v1376
        %v1378 = vrot.slane %v1377, 1
        %v1379 = vmax.f32 %v1377, %v1378
        %v1380 = vsel %vm1239, %v1205, -inf
        %v1381 = vrot.slane %v1380, 4
        %v1382 = vmax.f32 %v1380, %v1381
        %v1383 = vrot.slane %v1382, 2
        %v1384 = vmax.f32 %v1382, %v1383
        %v1385 = vrot.slane %v1384, 1
        %v1386 = vmax.f32 %v1384, %v1385
        %v1387 = vsel %vm1239, %v1213, -inf
        %v1388 = vrot.slane %v1387, 4
        %v1389 = vmax.f32 %v1387, %v1388
        %v1390 = vrot.slane %v1389, 2
        %v1391 = vmax.f32 %v1389, %v1390
        %v1392 = vrot.slane %v1391, 1
        %v1393 = vmax.f32 %v1391, %v1392
        %v1394 = vsel %vm1239, %v1212, -inf
        %v1395 = vrot.slane %v1394, 4
        %v1396 = vmax.f32 %v1394, %v1395
        %v1397 = vrot.slane %v1396, 2
        %v1398 = vmax.f32 %v1396, %v1397
        %v1399 = vrot.slane %v1398, 1
        %v1400 = vmax.f32 %v1398, %v1399
        %v1401 = vsel %vm1239, %v1214, -inf
        %v1402 = vrot.slane %v1401, 4
        %v1403 = vmax.f32 %v1401, %v1402
        %v1404 = vrot.slane %v1403, 2
        %v1405 = vmax.f32 %v1403, %v1404
        %v1406 = vrot.slane %v1405, 1
        %v1407 = vmax.f32 %v1405, %v1406
        %v1408 = vmax.f32 %v1246, 0.0
        %v1409 = vmax.f32 %v1253, 0.0
        %v1410 = vmax.f32 %v1260, 0.0
        %v1411 = vmax.f32 %v1267, 0.0
        %v1412 = vmax.f32 %v1274, 0.0
        %v1413 = vmax.f32 %v1281, 0.0
        %v1414 = vmax.f32 %v1288, 0.0
        %v1415 = vmax.f32 %v1295, 0.0
        %v1416 = vmax.f32 %v1302, 0.0
        %v1417 = vmax.f32 %v1309, 0.0
        %v1418 = vmax.f32 %v1316, 0.0
        %v1419 = vmax.f32 %v1323, 0.0
        %v1420 = vmax.f32 %v1330, 0.0
        %v1421 = vmax.f32 %v1337, 0.0
        %v1422 = vmax.f32 %v1344, 0.0
        %v1423 = vmax.f32 %v1351, 0.0
        %v1424 = vmax.f32 %v1358, 0.0
        %v1425 = vmax.f32 %v1365, 0.0
        %v1426 = vmax.f32 %v1372, 0.0
        %v1427 = vmax.f32 %v1379, 0.0
        %v1428 = vmax.f32 %v1386, 0.0
        %v1429 = vmax.f32 %v1393, 0.0
        %v1430 = vmax.f32 %v1400, 0.0
        %v1431 = vmax.f32 %v1407, 0.0
        %s1432 = smul.u32 %s92, 2
        %vm1457 = vcmask 1041409
        %v1458 = vsel %vm1457, %v1409, %v1408
        %vm1459 = vcmask 1042434
        %v1460 = vsel %vm1459, %v1410, %v1458
        %vm1461 = vcmask 1043459
        %v1462 = vsel %vm1461, %v1411, %v1460
        %vm1463 = vcmask 1044484
        %v1464 = vsel %vm1463, %v1412, %v1462
        %vm1465 = vcmask 1045509
        %v1466 = vsel %vm1465, %v1413, %v1464
        %vm1467 = vcmask 1046534
        %v1468 = vsel %vm1467, %v1414, %v1466
        %vm1469 = vcmask 1047559
        %v1470 = vsel %vm1469, %v1415, %v1468
        %v1471 = vsel %vm1457, %v1417, %v1416
        %v1472 = vsel %vm1459, %v1418, %v1471
        %v1473 = vsel %vm1461, %v1419, %v1472
        %v1474 = vsel %vm1457, %v1421, %v1420
        %v1475 = vsel %vm1459, %v1422, %v1474
        %v1476 = vsel %vm1461, %v1423, %v1475
        %v1477 = vsel %vm1463, %v1424, %v1476
        %v1478 = vsel %vm1465, %v1425, %v1477
        %v1479 = vsel %vm1467, %v1426, %v1478
        %v1480 = vsel %vm1469, %v1427, %v1479
        %v1481 = vsel %vm1457, %v1429, %v1428
        %v1482 = vsel %vm1459, %v1430, %v1481
        %v1483 = vsel %vm1461, %v1431, %v1482
        %s1488 = smul.u32 %s1432, 16
        %s1489 = smul.u32 %s86, 192
        %s1490 = sadd.s32 %s1488, %s1489
        %s1491 = scalar_lea.vmem [#allocation2], %s1490
        %1492 = vst [vmem:[%s1491] sm:$0xff] %v1470
        %1493 = vst [vmem:[%s1491 + $0x8] sm:$0xf] %v1473
        %1494 = vst [vmem:[%s1491 + $0x10] sm:$0xff] %v1480
        %1495 = vst [vmem:[%s1491 + $0x18] sm:$0xf] %v1483
      $region65: #{cnn_mnist_forward.1} parent=57 // loop_footer
        %s96 = sadd.s32 1, %s92
      $region66: #{cnn_mnist_forward.1} parent=57 // loop_footer_branch
        %91 = sbr.rel target = $region62
      $region67: #{cnn_mnist_forward.1} parent=57 // loop_exit
        _
    $region58: #{cnn_mnist_forward.1} parent=1 // loop_footer
      %s90 = sadd.s32 1, %s86
    $region59: #{cnn_mnist_forward.1} parent=1 // loop_footer_branch
      %85 = sbr.rel target = $region55
    $region60: #{cnn_mnist_forward.1} parent=1 // loop_exit
      _
    loop: start=0, step=1, limit=10
    $region68: #{cnn_mnist_forward.1} parent=1 // loop_pre_header
      _
    $region69: #{cnn_mnist_forward.1} parent=1 // loop_header
      %s1497 = sphi 0, %s1501
      %p1498 = scmp.ge.s32.totalorder %s1497, 10
    $region70: #{cnn_mnist_forward.1} parent=1 // loop_header_branch
      %1500 = sbr.rel (%p1498) target = $region74
    $region71: #{cnn_mnist_forward.1} parent=1 // loop_body
      %s1502 = smul.u32 %s1497, 2
      %s1503 = sadd.s32 %s1502, 1
      loop: start=0, step=1, limit=10
      $region75: #{cnn_mnist_forward.1} parent=71 // loop_pre_header
        _
      $region76: #{cnn_mnist_forward.1} parent=71 // loop_header
        %s1505 = sphi 0, %s1509
        %p1506 = scmp.ge.s32.totalorder %s1505, 10
        %v1510 = vphi 0.0, %v2943
        %v1511 = vphi 0.0, %v2944
        %v1512 = vphi 0.0, %v2945
        %v1513 = vphi 0.0, %v2946
        %v1514 = vphi 0.0, %v2947
        %v1515 = vphi 0.0, %v2948
        %v1516 = vphi 0.0, %v2949
        %v1517 = vphi 0.0, %v2950
        %v1518 = vphi 0.0, %v2965
        %v1519 = vphi 0.0, %v2966
        %v1520 = vphi 0.0, %v2967
        %v1521 = vphi 0.0, %v2968
        %v1522 = vphi 0.0, %v2969
        %v1523 = vphi 0.0, %v2970
        %v1524 = vphi 0.0, %v2971
        %v1525 = vphi 0.0, %v2972
      $region77: #{cnn_mnist_forward.1} parent=71 // loop_header_branch
        %1508 = sbr.rel (%p1506) target = $region81
      $region78: #{cnn_mnist_forward.1} parent=71 // loop_body
        %s1526 = smul.u32 %s1505, 25
        %s1527 = smul.u32 %s1505, 192
        %s1528 = scalar_lea.vmem [#allocation2], %s1527
        %v1529 = vld [vmem:[%s1528] sm:$0xff]
        %v1530 = vld [vmem:[%s1528 + $0x10] sm:$0xff]
        %v1531 = vld [vmem:[%s1528 + $0x20] sm:$0xff]
        %v1532 = vld [vmem:[%s1528 + $0x30] sm:$0xff]
        %v1533 = vld [vmem:[%s1528 + $0x40] sm:$0xff]
        %v1534 = vld [vmem:[%s1528 + $0x50] sm:$0xff]
        %v1535 = vld [vmem:[%s1528 + $0x60] sm:$0xff]
        %v1536 = vld [vmem:[%s1528 + $0x70] sm:$0xff]
        %s1537 = sshra.s32 %s1526, 7
        %s1538 = sand.u32 %s1526, 127
        %s1539 = sshra.s32 %s1502, 3
        %s1540 = sand.u32 %s1502, 7
        %s1541 = smul.u32 %s1539, 2
        %s1542 = sadd.s32 %s1537, %s1541
        %s1543 = smul.u32 %s1542, 1024
        %s1544 = sshra.s32 %s1502, 3
        %s1545 = sand.u32 %s1502, 7
        %s1546 = sshra.s32 %s1526, 7
        %s1547 = sand.u32 %s1526, 127
        %s1548 = smul.u32 %s1545, 128
        %s1549 = sadd.s32 %s1548, %s1547
        %s1550 = sadd.s32 %s1543, %s1549
        %s1551 = sld [smem:[#allocation8 + %s1550]]
        %v1552 = vstv %s1551
        %v1553 = vmul.f32 %v1529, %v1552
        %v1554 = vmul.f32 %v1530, %v1552
        %v1555 = vmul.f32 %v1531, %v1552
        %v1556 = vmul.f32 %v1532, %v1552
        %v1557 = vmul.f32 %v1533, %v1552
        %v1558 = vmul.f32 %v1534, %v1552
        %v1559 = vmul.f32 %v1535, %v1552
        %v1560 = vmul.f32 %v1536, %v1552
        %v1561 = vadd.f32 %v1510, %v1553
        %v1562 = vadd.f32 %v1511, %v1554
        %v1563 = vadd.f32 %v1512, %v1555
        %v1564 = vadd.f32 %v1513, %v1556
        %v1565 = vadd.f32 %v1514, %v1557
        %v1566 = vadd.f32 %v1515, %v1558
        %v1567 = vadd.f32 %v1516, %v1559
        %v1568 = vadd.f32 %v1517, %v1560
        %s1569 = sshra.s32 %s1503, 3
        %s1570 = sand.u32 %s1503, 7
        %s1571 = smul.u32 %s1569, 2
        %s1572 = sadd.s32 %s1537, %s1571
        %s1573 = smul.u32 %s1572, 1024
        %s1574 = sshra.s32 %s1503, 3
        %s1575 = sand.u32 %s1503, 7
        %s1576 = smul.u32 %s1575, 128
        %s1577 = sadd.s32 %s1576, %s1547
        %s1578 = sadd.s32 %s1573, %s1577
        %s1579 = sld [smem:[#allocation8 + %s1578]]
        %v1580 = vstv %s1579
        %v1581 = vmul.f32 %v1529, %v1580
        %v1582 = vmul.f32 %v1530, %v1580
        %v1583 = vmul.f32 %v1531, %v1580
        %v1584 = vmul.f32 %v1532, %v1580
        %v1585 = vmul.f32 %v1533, %v1580
        %v1586 = vmul.f32 %v1534, %v1580
        %v1587 = vmul.f32 %v1535, %v1580
        %v1588 = vmul.f32 %v1536, %v1580
        %v1589 = vadd.f32 %v1518, %v1581
        %v1590 = vadd.f32 %v1519, %v1582
        %v1591 = vadd.f32 %v1520, %v1583
        %v1592 = vadd.f32 %v1521, %v1584
        %v1593 = vadd.f32 %v1522, %v1585
        %v1594 = vadd.f32 %v1523, %v1586
        %v1595 = vadd.f32 %v1524, %v1587
        %v1596 = vadd.f32 %v1525, %v1588
        %v1597 = vld [vmem:[%s1528 + $0x1] sm:$0xff]
        %v1598 = vld [vmem:[%s1528 + $0x11] sm:$0xff]
        %v1599 = vld [vmem:[%s1528 + $0x21] sm:$0xff]
        %v1600 = vld [vmem:[%s1528 + $0x31] sm:$0xff]
        %v1601 = vld [vmem:[%s1528 + $0x41] sm:$0xff]
        %v1602 = vld [vmem:[%s1528 + $0x51] sm:$0xff]
        %v1603 = vld [vmem:[%s1528 + $0x61] sm:$0xff]
        %v1604 = vld [vmem:[%s1528 + $0x71] sm:$0xff]
        %s1605 = sadd.s32 %s1526, 1
        %s1606 = sshra.s32 %s1605, 7
        %s1607 = sand.u32 %s1605, 127
        %s1608 = sadd.s32 %s1606, %s1541
        %s1609 = smul.u32 %s1608, 1024
        %s1610 = sshra.s32 %s1605, 7
        %s1611 = sand.u32 %s1605, 127
        %s1612 = sadd.s32 %s1548, %s1611
        %s1613 = sadd.s32 %s1609, %s1612
        %s1614 = sld [smem:[#allocation8 + %s1613]]
        %v1615 = vstv %s1614
        %v1616 = vmul.f32 %v1597, %v1615
        %v1617 = vmul.f32 %v1598, %v1615
        %v1618 = vmul.f32 %v1599, %v1615
        %v1619 = vmul.f32 %v1600, %v1615
        %v1620 = vmul.f32 %v1601, %v1615
        %v1621 = vmul.f32 %v1602, %v1615
        %v1622 = vmul.f32 %v1603, %v1615
        %v1623 = vmul.f32 %v1604, %v1615
        %v1624 = vadd.f32 %v1561, %v1616
        %v1625 = vadd.f32 %v1562, %v1617
        %v1626 = vadd.f32 %v1563, %v1618
        %v1627 = vadd.f32 %v1564, %v1619
        %v1628 = vadd.f32 %v1565, %v1620
        %v1629 = vadd.f32 %v1566, %v1621
        %v1630 = vadd.f32 %v1567, %v1622
        %v1631 = vadd.f32 %v1568, %v1623
        %s1632 = sadd.s32 %s1606, %s1571
        %s1633 = smul.u32 %s1632, 1024
        %s1634 = sadd.s32 %s1576, %s1611
        %s1635 = sadd.s32 %s1633, %s1634
        %s1636 = sld [smem:[#allocation8 + %s1635]]
        %v1637 = vstv %s1636
        %v1638 = vmul.f32 %v1597, %v1637
        %v1639 = vmul.f32 %v1598, %v1637
        %v1640 = vmul.f32 %v1599, %v1637
        %v1641 = vmul.f32 %v1600, %v1637
        %v1642 = vmul.f32 %v1601, %v1637
        %v1643 = vmul.f32 %v1602, %v1637
        %v1644 = vmul.f32 %v1603, %v1637
        %v1645 = vmul.f32 %v1604, %v1637
        %v1646 = vadd.f32 %v1589, %v1638
        %v1647 = vadd.f32 %v1590, %v1639
        %v1648 = vadd.f32 %v1591, %v1640
        %v1649 = vadd.f32 %v1592, %v1641
        %v1650 = vadd.f32 %v1593, %v1642
        %v1651 = vadd.f32 %v1594, %v1643
        %v1652 = vadd.f32 %v1595, %v1644
        %v1653 = vadd.f32 %v1596, %v1645
        %v1654 = vld [vmem:[%s1528 + $0x2] sm:$0xff]
        %v1655 = vld [vmem:[%s1528 + $0x12] sm:$0xff]
        %v1656 = vld [vmem:[%s1528 + $0x22] sm:$0xff]
        %v1657 = vld [vmem:[%s1528 + $0x32] sm:$0xff]
        %v1658 = vld [vmem:[%s1528 + $0x42] sm:$0xff]
        %v1659 = vld [vmem:[%s1528 + $0x52] sm:$0xff]
        %v1660 = vld [vmem:[%s1528 + $0x62] sm:$0xff]
        %v1661 = vld [vmem:[%s1528 + $0x72] sm:$0xff]
        %s1662 = sadd.s32 %s1526, 2
        %s1663 = sshra.s32 %s1662, 7
        %s1664 = sand.u32 %s1662, 127
        %s1665 = sadd.s32 %s1663, %s1541
        %s1666 = smul.u32 %s1665, 1024
        %s1667 = sshra.s32 %s1662, 7
        %s1668 = sand.u32 %s1662, 127
        %s1669 = sadd.s32 %s1548, %s1668
        %s1670 = sadd.s32 %s1666, %s1669
        %s1671 = sld [smem:[#allocation8 + %s1670]]
        %v1672 = vstv %s1671
        %v1673 = vmul.f32 %v1654, %v1672
        %v1674 = vmul.f32 %v1655, %v1672
        %v1675 = vmul.f32 %v1656, %v1672
        %v1676 = vmul.f32 %v1657, %v1672
        %v1677 = vmul.f32 %v1658, %v1672
        %v1678 = vmul.f32 %v1659, %v1672
        %v1679 = vmul.f32 %v1660, %v1672
        %v1680 = vmul.f32 %v1661, %v1672
        %v1681 = vadd.f32 %v1624, %v1673
        %v1682 = vadd.f32 %v1625, %v1674
        %v1683 = vadd.f32 %v1626, %v1675
        %v1684 = vadd.f32 %v1627, %v1676
        %v1685 = vadd.f32 %v1628, %v1677
        %v1686 = vadd.f32 %v1629, %v1678
        %v1687 = vadd.f32 %v1630, %v1679
        %v1688 = vadd.f32 %v1631, %v1680
        %s1689 = sadd.s32 %s1663, %s1571
        %s1690 = smul.u32 %s1689, 1024
        %s1691 = sadd.s32 %s1576, %s1668
        %s1692 = sadd.s32 %s1690, %s1691
        %s1693 = sld [smem:[#allocation8 + %s1692]]
        %v1694 = vstv %s1693
        %v1695 = vmul.f32 %v1654, %v1694
        %v1696 = vmul.f32 %v1655, %v1694
        %v1697 = vmul.f32 %v1656, %v1694
        %v1698 = vmul.f32 %v1657, %v1694
        %v1699 = vmul.f32 %v1658, %v1694
        %v1700 = vmul.f32 %v1659, %v1694
        %v1701 = vmul.f32 %v1660, %v1694
        %v1702 = vmul.f32 %v1661, %v1694
        %v1703 = vadd.f32 %v1646, %v1695
        %v1704 = vadd.f32 %v1647, %v1696
        %v1705 = vadd.f32 %v1648, %v1697
        %v1706 = vadd.f32 %v1649, %v1698
        %v1707 = vadd.f32 %v1650, %v1699
        %v1708 = vadd.f32 %v1651, %v1700
        %v1709 = vadd.f32 %v1652, %v1701
        %v1710 = vadd.f32 %v1653, %v1702
        %v1711 = vld [vmem:[%s1528 + $0x3] sm:$0xff]
        %v1712 = vld [vmem:[%s1528 + $0x13] sm:$0xff]
        %v1713 = vld [vmem:[%s1528 + $0x23] sm:$0xff]
        %v1714 = vld [vmem:[%s1528 + $0x33] sm:$0xff]
        %v1715 = vld [vmem:[%s1528 + $0x43] sm:$0xff]
        %v1716 = vld [vmem:[%s1528 + $0x53] sm:$0xff]
        %v1717 = vld [vmem:[%s1528 + $0x63] sm:$0xff]
        %v1718 = vld [vmem:[%s1528 + $0x73] sm:$0xff]
        %s1719 = sadd.s32 %s1526, 3
        %s1720 = sshra.s32 %s1719, 7
        %s1721 = sand.u32 %s1719, 127
        %s1722 = sadd.s32 %s1720, %s1541
        %s1723 = smul.u32 %s1722, 1024
        %s1724 = sshra.s32 %s1719, 7
        %s1725 = sand.u32 %s1719, 127
        %s1726 = sadd.s32 %s1548, %s1725
        %s1727 = sadd.s32 %s1723, %s1726
        %s1728 = sld [smem:[#allocation8 + %s1727]]
        %v1729 = vstv %s1728
        %v1730 = vmul.f32 %v1711, %v1729
        %v1731 = vmul.f32 %v1712, %v1729
        %v1732 = vmul.f32 %v1713, %v1729
        %v1733 = vmul.f32 %v1714, %v1729
        %v1734 = vmul.f32 %v1715, %v1729
        %v1735 = vmul.f32 %v1716, %v1729
        %v1736 = vmul.f32 %v1717, %v1729
        %v1737 = vmul.f32 %v1718, %v1729
        %v1738 = vadd.f32 %v1681, %v1730
        %v1739 = vadd.f32 %v1682, %v1731
        %v1740 = vadd.f32 %v1683, %v1732
        %v1741 = vadd.f32 %v1684, %v1733
        %v1742 = vadd.f32 %v1685, %v1734
        %v1743 = vadd.f32 %v1686, %v1735
        %v1744 = vadd.f32 %v1687, %v1736
        %v1745 = vadd.f32 %v1688, %v1737
        %s1746 = sadd.s32 %s1720, %s1571
        %s1747 = smul.u32 %s1746, 1024
        %s1748 = sadd.s32 %s1576, %s1725
        %s1749 = sadd.s32 %s1747, %s1748
        %s1750 = sld [smem:[#allocation8 + %s1749]]
        %v1751 = vstv %s1750
        %v1752 = vmul.f32 %v1711, %v1751
        %v1753 = vmul.f32 %v1712, %v1751
        %v1754 = vmul.f32 %v1713, %v1751
        %v1755 = vmul.f32 %v1714, %v1751
        %v1756 = vmul.f32 %v1715, %v1751
        %v1757 = vmul.f32 %v1716, %v1751
        %v1758 = vmul.f32 %v1717, %v1751
        %v1759 = vmul.f32 %v1718, %v1751
        %v1760 = vadd.f32 %v1703, %v1752
        %v1761 = vadd.f32 %v1704, %v1753
        %v1762 = vadd.f32 %v1705, %v1754
        %v1763 = vadd.f32 %v1706, %v1755
        %v1764 = vadd.f32 %v1707, %v1756
        %v1765 = vadd.f32 %v1708, %v1757
        %v1766 = vadd.f32 %v1709, %v1758
        %v1767 = vadd.f32 %v1710, %v1759
        %v1768 = vld [vmem:[%s1528 + $0x4] sm:$0xff]
        %v1769 = vld [vmem:[%s1528 + $0x14] sm:$0xff]
        %v1770 = vld [vmem:[%s1528 + $0x24] sm:$0xff]
        %v1771 = vld [vmem:[%s1528 + $0x34] sm:$0xff]
        %v1772 = vld [vmem:[%s1528 + $0x44] sm:$0xff]
        %v1773 = vld [vmem:[%s1528 + $0x54] sm:$0xff]
        %v1774 = vld [vmem:[%s1528 + $0x64] sm:$0xff]
        %v1775 = vld [vmem:[%s1528 + $0x74] sm:$0xff]
        %s1776 = sadd.s32 %s1526, 4
        %s1777 = sshra.s32 %s1776, 7
        %s1778 = sand.u32 %s1776, 127
        %s1779 = sadd.s32 %s1777, %s1541
        %s1780 = smul.u32 %s1779, 1024
        %s1781 = sshra.s32 %s1776, 7
        %s1782 = sand.u32 %s1776, 127
        %s1783 = sadd.s32 %s1548, %s1782
        %s1784 = sadd.s32 %s1780, %s1783
        %s1785 = sld [smem:[#allocation8 + %s1784]]
        %v1786 = vstv %s1785
        %v1787 = vmul.f32 %v1768, %v1786
        %v1788 = vmul.f32 %v1769, %v1786
        %v1789 = vmul.f32 %v1770, %v1786
        %v1790 = vmul.f32 %v1771, %v1786
        %v1791 = vmul.f32 %v1772, %v1786
        %v1792 = vmul.f32 %v1773, %v1786
        %v1793 = vmul.f32 %v1774, %v1786
        %v1794 = vmul.f32 %v1775, %v1786
        %v1795 = vadd.f32 %v1738, %v1787
        %v1796 = vadd.f32 %v1739, %v1788
        %v1797 = vadd.f32 %v1740, %v1789
        %v1798 = vadd.f32 %v1741, %v1790
        %v1799 = vadd.f32 %v1742, %v1791
        %v1800 = vadd.f32 %v1743, %v1792
        %v1801 = vadd.f32 %v1744, %v1793
        %v1802 = vadd.f32 %v1745, %v1794
        %s1803 = sadd.s32 %s1777, %s1571
        %s1804 = smul.u32 %s1803, 1024
        %s1805 = sadd.s32 %s1576, %s1782
        %s1806 = sadd.s32 %s1804, %s1805
        %s1807 = sld [smem:[#allocation8 + %s1806]]
        %v1808 = vstv %s1807
        %v1809 = vmul.f32 %v1768, %v1808
        %v1810 = vmul.f32 %v1769, %v1808
        %v1811 = vmul.f32 %v1770, %v1808
        %v1812 = vmul.f32 %v1771, %v1808
        %v1813 = vmul.f32 %v1772, %v1808
        %v1814 = vmul.f32 %v1773, %v1808
        %v1815 = vmul.f32 %v1774, %v1808
        %v1816 = vmul.f32 %v1775, %v1808
        %v1817 = vadd.f32 %v1760, %v1809
        %v1818 = vadd.f32 %v1761, %v1810
        %v1819 = vadd.f32 %v1762, %v1811
        %v1820 = vadd.f32 %v1763, %v1812
        %v1821 = vadd.f32 %v1764, %v1813
        %v1822 = vadd.f32 %v1765, %v1814
        %v1823 = vadd.f32 %v1766, %v1815
        %v1824 = vadd.f32 %v1767, %v1816
        %s1825 = sadd.s32 16, %s1527
        %s1826 = scalar_lea.vmem [#allocation2], %s1825
        %v1827 = vld [vmem:[%s1826] sm:$0xff]
        %v1828 = vld [vmem:[%s1826 + $0x10] sm:$0xff]
        %v1829 = vld [vmem:[%s1826 + $0x20] sm:$0xff]
        %v1830 = vld [vmem:[%s1826 + $0x30] sm:$0xff]
        %v1831 = vld [vmem:[%s1826 + $0x40] sm:$0xff]
        %v1832 = vld [vmem:[%s1826 + $0x50] sm:$0xff]
        %v1833 = vld [vmem:[%s1826 + $0x60] sm:$0xff]
        %v1834 = vld [vmem:[%s1826 + $0x70] sm:$0xff]
        %s1835 = sadd.s32 %s1526, 5
        %s1836 = sshra.s32 %s1835, 7
        %s1837 = sand.u32 %s1835, 127
        %s1838 = sadd.s32 %s1836, %s1541
        %s1839 = smul.u32 %s1838, 1024
        %s1840 = sshra.s32 %s1835, 7
        %s1841 = sand.u32 %s1835, 127
        %s1842 = sadd.s32 %s1548, %s1841
        %s1843 = sadd.s32 %s1839, %s1842
        %s1844 = sld [smem:[#allocation8 + %s1843]]
        %v1845 = vstv %s1844
        %v1846 = vmul.f32 %v1827, %v1845
        %v1847 = vmul.f32 %v1828, %v1845
        %v1848 = vmul.f32 %v1829, %v1845
        %v1849 = vmul.f32 %v1830, %v1845
        %v1850 = vmul.f32 %v1831, %v1845
        %v1851 = vmul.f32 %v1832, %v1845
        %v1852 = vmul.f32 %v1833, %v1845
        %v1853 = vmul.f32 %v1834, %v1845
        %v1854 = vadd.f32 %v1795, %v1846
        %v1855 = vadd.f32 %v1796, %v1847
        %v1856 = vadd.f32 %v1797, %v1848
        %v1857 = vadd.f32 %v1798, %v1849
        %v1858 = vadd.f32 %v1799, %v1850
        %v1859 = vadd.f32 %v1800, %v1851
        %v1860 = vadd.f32 %v1801, %v1852
        %v1861 = vadd.f32 %v1802, %v1853
        %s1862 = sadd.s32 %s1836, %s1571
        %s1863 = smul.u32 %s1862, 1024
        %s1864 = sadd.s32 %s1576, %s1841
        %s1865 = sadd.s32 %s1863, %s1864
        %s1866 = sld [smem:[#allocation8 + %s1865]]
        %v1867 = vstv %s1866
        %v1868 = vmul.f32 %v1827, %v1867
        %v1869 = vmul.f32 %v1828, %v1867
        %v1870 = vmul.f32 %v1829, %v1867
        %v1871 = vmul.f32 %v1830, %v1867
        %v1872 = vmul.f32 %v1831, %v1867
        %v1873 = vmul.f32 %v1832, %v1867
        %v1874 = vmul.f32 %v1833, %v1867
        %v1875 = vmul.f32 %v1834, %v1867
        %v1876 = vadd.f32 %v1817, %v1868
        %v1877 = vadd.f32 %v1818, %v1869
        %v1878 = vadd.f32 %v1819, %v1870
        %v1879 = vadd.f32 %v1820, %v1871
        %v1880 = vadd.f32 %v1821, %v1872
        %v1881 = vadd.f32 %v1822, %v1873
        %v1882 = vadd.f32 %v1823, %v1874
        %v1883 = vadd.f32 %v1824, %v1875
        %v1884 = vld [vmem:[%s1826 + $0x1] sm:$0xff]
        %v1885 = vld [vmem:[%s1826 + $0x11] sm:$0xff]
        %v1886 = vld [vmem:[%s1826 + $0x21] sm:$0xff]
        %v1887 = vld [vmem:[%s1826 + $0x31] sm:$0xff]
        %v1888 = vld [vmem:[%s1826 + $0x41] sm:$0xff]
        %v1889 = vld [vmem:[%s1826 + $0x51] sm:$0xff]
        %v1890 = vld [vmem:[%s1826 + $0x61] sm:$0xff]
        %v1891 = vld [vmem:[%s1826 + $0x71] sm:$0xff]
        %s1892 = sadd.s32 %s1526, 6
        %s1893 = sshra.s32 %s1892, 7
        %s1894 = sand.u32 %s1892, 127
        %s1895 = sadd.s32 %s1893, %s1541
        %s1896 = smul.u32 %s1895, 1024
        %s1897 = sshra.s32 %s1892, 7
        %s1898 = sand.u32 %s1892, 127
        %s1899 = sadd.s32 %s1548, %s1898
        %s1900 = sadd.s32 %s1896, %s1899
        %s1901 = sld [smem:[#allocation8 + %s1900]]
        %v1902 = vstv %s1901
        %v1903 = vmul.f32 %v1884, %v1902
        %v1904 = vmul.f32 %v1885, %v1902
        %v1905 = vmul.f32 %v1886, %v1902
        %v1906 = vmul.f32 %v1887, %v1902
        %v1907 = vmul.f32 %v1888, %v1902
        %v1908 = vmul.f32 %v1889, %v1902
        %v1909 = vmul.f32 %v1890, %v1902
        %v1910 = vmul.f32 %v1891, %v1902
        %v1911 = vadd.f32 %v1854, %v1903
        %v1912 = vadd.f32 %v1855, %v1904
        %v1913 = vadd.f32 %v1856, %v1905
        %v1914 = vadd.f32 %v1857, %v1906
        %v1915 = vadd.f32 %v1858, %v1907
        %v1916 = vadd.f32 %v1859, %v1908
        %v1917 = vadd.f32 %v1860, %v1909
        %v1918 = vadd.f32 %v1861, %v1910
        %s1919 = sadd.s32 %s1893, %s1571
        %s1920 = smul.u32 %s1919, 1024
        %s1921 = sadd.s32 %s1576, %s1898
        %s1922 = sadd.s32 %s1920, %s1921
        %s1923 = sld [smem:[#allocation8 + %s1922]]
        %v1924 = vstv %s1923
        %v1925 = vmul.f32 %v1884, %v1924
        %v1926 = vmul.f32 %v1885, %v1924
        %v1927 = vmul.f32 %v1886, %v1924
        %v1928 = vmul.f32 %v1887, %v1924
        %v1929 = vmul.f32 %v1888, %v1924
        %v1930 = vmul.f32 %v1889, %v1924
        %v1931 = vmul.f32 %v1890, %v1924
        %v1932 = vmul.f32 %v1891, %v1924
        %v1933 = vadd.f32 %v1876, %v1925
        %v1934 = vadd.f32 %v1877, %v1926
        %v1935 = vadd.f32 %v1878, %v1927
        %v1936 = vadd.f32 %v1879, %v1928
        %v1937 = vadd.f32 %v1880, %v1929
        %v1938 = vadd.f32 %v1881, %v1930
        %v1939 = vadd.f32 %v1882, %v1931
        %v1940 = vadd.f32 %v1883, %v1932
        %v1941 = vld [vmem:[%s1826 + $0x2] sm:$0xff]
        %v1942 = vld [vmem:[%s1826 + $0x12] sm:$0xff]
        %v1943 = vld [vmem:[%s1826 + $0x22] sm:$0xff]
        %v1944 = vld [vmem:[%s1826 + $0x32] sm:$0xff]
        %v1945 = vld [vmem:[%s1826 + $0x42] sm:$0xff]
        %v1946 = vld [vmem:[%s1826 + $0x52] sm:$0xff]
        %v1947 = vld [vmem:[%s1826 + $0x62] sm:$0xff]
        %v1948 = vld [vmem:[%s1826 + $0x72] sm:$0xff]
        %s1949 = sadd.s32 %s1526, 7
        %s1950 = sshra.s32 %s1949, 7
        %s1951 = sand.u32 %s1949, 127
        %s1952 = sadd.s32 %s1950, %s1541
        %s1953 = smul.u32 %s1952, 1024
        %s1954 = sshra.s32 %s1949, 7
        %s1955 = sand.u32 %s1949, 127
        %s1956 = sadd.s32 %s1548, %s1955
        %s1957 = sadd.s32 %s1953, %s1956
        %s1958 = sld [smem:[#allocation8 + %s1957]]
        %v1959 = vstv %s1958
        %v1960 = vmul.f32 %v1941, %v1959
        %v1961 = vmul.f32 %v1942, %v1959
        %v1962 = vmul.f32 %v1943, %v1959
        %v1963 = vmul.f32 %v1944, %v1959
        %v1964 = vmul.f32 %v1945, %v1959
        %v1965 = vmul.f32 %v1946, %v1959
        %v1966 = vmul.f32 %v1947, %v1959
        %v1967 = vmul.f32 %v1948, %v1959
        %v1968 = vadd.f32 %v1911, %v1960
        %v1969 = vadd.f32 %v1912, %v1961
        %v1970 = vadd.f32 %v1913, %v1962
        %v1971 = vadd.f32 %v1914, %v1963
        %v1972 = vadd.f32 %v1915, %v1964
        %v1973 = vadd.f32 %v1916, %v1965
        %v1974 = vadd.f32 %v1917, %v1966
        %v1975 = vadd.f32 %v1918, %v1967
        %s1976 = sadd.s32 %s1950, %s1571
        %s1977 = smul.u32 %s1976, 1024
        %s1978 = sadd.s32 %s1576, %s1955
        %s1979 = sadd.s32 %s1977, %s1978
        %s1980 = sld [smem:[#allocation8 + %s1979]]
        %v1981 = vstv %s1980
        %v1982 = vmul.f32 %v1941, %v1981
        %v1983 = vmul.f32 %v1942, %v1981
        %v1984 = vmul.f32 %v1943, %v1981
        %v1985 = vmul.f32 %v1944, %v1981
        %v1986 = vmul.f32 %v1945, %v1981
        %v1987 = vmul.f32 %v1946, %v1981
        %v1988 = vmul.f32 %v1947, %v1981
        %v1989 = vmul.f32 %v1948, %v1981
        %v1990 = vadd.f32 %v1933, %v1982
        %v1991 = vadd.f32 %v1934, %v1983
        %v1992 = vadd.f32 %v1935, %v1984
        %v1993 = vadd.f32 %v1936, %v1985
        %v1994 = vadd.f32 %v1937, %v1986
        %v1995 = vadd.f32 %v1938, %v1987
        %v1996 = vadd.f32 %v1939, %v1988
        %v1997 = vadd.f32 %v1940, %v1989
        %v1998 = vld [vmem:[%s1826 + $0x3] sm:$0xff]
        %v1999 = vld [vmem:[%s1826 + $0x13] sm:$0xff]
        %v2000 = vld [vmem:[%s1826 + $0x23] sm:$0xff]
        %v2001 = vld [vmem:[%s1826 + $0x33] sm:$0xff]
        %v2002 = vld [vmem:[%s1826 + $0x43] sm:$0xff]
        %v2003 = vld [vmem:[%s1826 + $0x53] sm:$0xff]
        %v2004 = vld [vmem:[%s1826 + $0x63] sm:$0xff]
        %v2005 = vld [vmem:[%s1826 + $0x73] sm:$0xff]
        %s2006 = sadd.s32 %s1526, 8
        %s2007 = sshra.s32 %s2006, 7
        %s2008 = sand.u32 %s2006, 127
        %s2009 = sadd.s32 %s2007, %s1541
        %s2010 = smul.u32 %s2009, 1024
        %s2011 = sshra.s32 %s2006, 7
        %s2012 = sand.u32 %s2006, 127
        %s2013 = sadd.s32 %s1548, %s2012
        %s2014 = sadd.s32 %s2010, %s2013
        %s2015 = sld [smem:[#allocation8 + %s2014]]
        %v2016 = vstv %s2015
        %v2017 = vmul.f32 %v1998, %v2016
        %v2018 = vmul.f32 %v1999, %v2016
        %v2019 = vmul.f32 %v2000, %v2016
        %v2020 = vmul.f32 %v2001, %v2016
        %v2021 = vmul.f32 %v2002, %v2016
        %v2022 = vmul.f32 %v2003, %v2016
        %v2023 = vmul.f32 %v2004, %v2016
        %v2024 = vmul.f32 %v2005, %v2016
        %v2025 = vadd.f32 %v1968, %v2017
        %v2026 = vadd.f32 %v1969, %v2018
        %v2027 = vadd.f32 %v1970, %v2019
        %v2028 = vadd.f32 %v1971, %v2020
        %v2029 = vadd.f32 %v1972, %v2021
        %v2030 = vadd.f32 %v1973, %v2022
        %v2031 = vadd.f32 %v1974, %v2023
        %v2032 = vadd.f32 %v1975, %v2024
        %s2033 = sadd.s32 %s2007, %s1571
        %s2034 = smul.u32 %s2033, 1024
        %s2035 = sadd.s32 %s1576, %s2012
        %s2036 = sadd.s32 %s2034, %s2035
        %s2037 = sld [smem:[#allocation8 + %s2036]]
        %v2038 = vstv %s2037
        %v2039 = vmul.f32 %v1998, %v2038
        %v2040 = vmul.f32 %v1999, %v2038
        %v2041 = vmul.f32 %v2000, %v2038
        %v2042 = vmul.f32 %v2001, %v2038
        %v2043 = vmul.f32 %v2002, %v2038
        %v2044 = vmul.f32 %v2003, %v2038
        %v2045 = vmul.f32 %v2004, %v2038
        %v2046 = vmul.f32 %v2005, %v2038
        %v2047 = vadd.f32 %v1990, %v2039
        %v2048 = vadd.f32 %v1991, %v2040
        %v2049 = vadd.f32 %v1992, %v2041
        %v2050 = vadd.f32 %v1993, %v2042
        %v2051 = vadd.f32 %v1994, %v2043
        %v2052 = vadd.f32 %v1995, %v2044
        %v2053 = vadd.f32 %v1996, %v2045
        %v2054 = vadd.f32 %v1997, %v2046
        %v2055 = vld [vmem:[%s1826 + $0x4] sm:$0xff]
        %v2056 = vld [vmem:[%s1826 + $0x14] sm:$0xff]
        %v2057 = vld [vmem:[%s1826 + $0x24] sm:$0xff]
        %v2058 = vld [vmem:[%s1826 + $0x34] sm:$0xff]
        %v2059 = vld [vmem:[%s1826 + $0x44] sm:$0xff]
        %v2060 = vld [vmem:[%s1826 + $0x54] sm:$0xff]
        %v2061 = vld [vmem:[%s1826 + $0x64] sm:$0xff]
        %v2062 = vld [vmem:[%s1826 + $0x74] sm:$0xff]
        %s2063 = sadd.s32 %s1526, 9
        %s2064 = sshra.s32 %s2063, 7
        %s2065 = sand.u32 %s2063, 127
        %s2066 = sadd.s32 %s2064, %s1541
        %s2067 = smul.u32 %s2066, 1024
        %s2068 = sshra.s32 %s2063, 7
        %s2069 = sand.u32 %s2063, 127
        %s2070 = sadd.s32 %s1548, %s2069
        %s2071 = sadd.s32 %s2067, %s2070
        %s2072 = sld [smem:[#allocation8 + %s2071]]
        %v2073 = vstv %s2072
        %v2074 = vmul.f32 %v2055, %v2073
        %v2075 = vmul.f32 %v2056, %v2073
        %v2076 = vmul.f32 %v2057, %v2073
        %v2077 = vmul.f32 %v2058, %v2073
        %v2078 = vmul.f32 %v2059, %v2073
        %v2079 = vmul.f32 %v2060, %v2073
        %v2080 = vmul.f32 %v2061, %v2073
        %v2081 = vmul.f32 %v2062, %v2073
        %v2082 = vadd.f32 %v2025, %v2074
        %v2083 = vadd.f32 %v2026, %v2075
        %v2084 = vadd.f32 %v2027, %v2076
        %v2085 = vadd.f32 %v2028, %v2077
        %v2086 = vadd.f32 %v2029, %v2078
        %v2087 = vadd.f32 %v2030, %v2079
        %v2088 = vadd.f32 %v2031, %v2080
        %v2089 = vadd.f32 %v2032, %v2081
        %s2090 = sadd.s32 %s2064, %s1571
        %s2091 = smul.u32 %s2090, 1024
        %s2092 = sadd.s32 %s1576, %s2069
        %s2093 = sadd.s32 %s2091, %s2092
        %s2094 = sld [smem:[#allocation8 + %s2093]]
        %v2095 = vstv %s2094
        %v2096 = vmul.f32 %v2055, %v2095
        %v2097 = vmul.f32 %v2056, %v2095
        %v2098 = vmul.f32 %v2057, %v2095
        %v2099 = vmul.f32 %v2058, %v2095
        %v2100 = vmul.f32 %v2059, %v2095
        %v2101 = vmul.f32 %v2060, %v2095
        %v2102 = vmul.f32 %v2061, %v2095
        %v2103 = vmul.f32 %v2062, %v2095
        %v2104 = vadd.f32 %v2047, %v2096
        %v2105 = vadd.f32 %v2048, %v2097
        %v2106 = vadd.f32 %v2049, %v2098
        %v2107 = vadd.f32 %v2050, %v2099
        %v2108 = vadd.f32 %v2051, %v2100
        %v2109 = vadd.f32 %v2052, %v2101
        %v2110 = vadd.f32 %v2053, %v2102
        %v2111 = vadd.f32 %v2054, %v2103
        %s2112 = sadd.s32 32, %s1527
        %s2113 = scalar_lea.vmem [#allocation2], %s2112
        %v2114 = vld [vmem:[%s2113] sm:$0xff]
        %v2115 = vld [vmem:[%s2113 + $0x10] sm:$0xff]
        %v2116 = vld [vmem:[%s2113 + $0x20] sm:$0xff]
        %v2117 = vld [vmem:[%s2113 + $0x30] sm:$0xff]
        %v2118 = vld [vmem:[%s2113 + $0x40] sm:$0xff]
        %v2119 = vld [vmem:[%s2113 + $0x50] sm:$0xff]
        %v2120 = vld [vmem:[%s2113 + $0x60] sm:$0xff]
        %v2121 = vld [vmem:[%s2113 + $0x70] sm:$0xff]
        %s2122 = sadd.s32 %s1526, 10
        %s2123 = sshra.s32 %s2122, 7
        %s2124 = sand.u32 %s2122, 127
        %s2125 = sadd.s32 %s2123, %s1541
        %s2126 = smul.u32 %s2125, 1024
        %s2127 = sshra.s32 %s2122, 7
        %s2128 = sand.u32 %s2122, 127
        %s2129 = sadd.s32 %s1548, %s2128
        %s2130 = sadd.s32 %s2126, %s2129
        %s2131 = sld [smem:[#allocation8 + %s2130]]
        %v2132 = vstv %s2131
        %v2133 = vmul.f32 %v2114, %v2132
        %v2134 = vmul.f32 %v2115, %v2132
        %v2135 = vmul.f32 %v2116, %v2132
        %v2136 = vmul.f32 %v2117, %v2132
        %v2137 = vmul.f32 %v2118, %v2132
        %v2138 = vmul.f32 %v2119, %v2132
        %v2139 = vmul.f32 %v2120, %v2132
        %v2140 = vmul.f32 %v2121, %v2132
        %v2141 = vadd.f32 %v2082, %v2133
        %v2142 = vadd.f32 %v2083, %v2134
        %v2143 = vadd.f32 %v2084, %v2135
        %v2144 = vadd.f32 %v2085, %v2136
        %v2145 = vadd.f32 %v2086, %v2137
        %v2146 = vadd.f32 %v2087, %v2138
        %v2147 = vadd.f32 %v2088, %v2139
        %v2148 = vadd.f32 %v2089, %v2140
        %s2149 = sadd.s32 %s2123, %s1571
        %s2150 = smul.u32 %s2149, 1024
        %s2151 = sadd.s32 %s1576, %s2128
        %s2152 = sadd.s32 %s2150, %s2151
        %s2153 = sld [smem:[#allocation8 + %s2152]]
        %v2154 = vstv %s2153
        %v2155 = vmul.f32 %v2114, %v2154
        %v2156 = vmul.f32 %v2115, %v2154
        %v2157 = vmul.f32 %v2116, %v2154
        %v2158 = vmul.f32 %v2117, %v2154
        %v2159 = vmul.f32 %v2118, %v2154
        %v2160 = vmul.f32 %v2119, %v2154
        %v2161 = vmul.f32 %v2120, %v2154
        %v2162 = vmul.f32 %v2121, %v2154
        %v2163 = vadd.f32 %v2104, %v2155
        %v2164 = vadd.f32 %v2105, %v2156
        %v2165 = vadd.f32 %v2106, %v2157
        %v2166 = vadd.f32 %v2107, %v2158
        %v2167 = vadd.f32 %v2108, %v2159
        %v2168 = vadd.f32 %v2109, %v2160
        %v2169 = vadd.f32 %v2110, %v2161
        %v2170 = vadd.f32 %v2111, %v2162
        %v2171 = vld [vmem:[%s2113 + $0x1] sm:$0xff]
        %v2172 = vld [vmem:[%s2113 + $0x11] sm:$0xff]
        %v2173 = vld [vmem:[%s2113 + $0x21] sm:$0xff]
        %v2174 = vld [vmem:[%s2113 + $0x31] sm:$0xff]
        %v2175 = vld [vmem:[%s2113 + $0x41] sm:$0xff]
        %v2176 = vld [vmem:[%s2113 + $0x51] sm:$0xff]
        %v2177 = vld [vmem:[%s2113 + $0x61] sm:$0xff]
        %v2178 = vld [vmem:[%s2113 + $0x71] sm:$0xff]
        %s2179 = sadd.s32 %s1526, 11
        %s2180 = sshra.s32 %s2179, 7
        %s2181 = sand.u32 %s2179, 127
        %s2182 = sadd.s32 %s2180, %s1541
        %s2183 = smul.u32 %s2182, 1024
        %s2184 = sshra.s32 %s2179, 7
        %s2185 = sand.u32 %s2179, 127
        %s2186 = sadd.s32 %s1548, %s2185
        %s2187 = sadd.s32 %s2183, %s2186
        %s2188 = sld [smem:[#allocation8 + %s2187]]
        %v2189 = vstv %s2188
        %v2190 = vmul.f32 %v2171, %v2189
        %v2191 = vmul.f32 %v2172, %v2189
        %v2192 = vmul.f32 %v2173, %v2189
        %v2193 = vmul.f32 %v2174, %v2189
        %v2194 = vmul.f32 %v2175, %v2189
        %v2195 = vmul.f32 %v2176, %v2189
        %v2196 = vmul.f32 %v2177, %v2189
        %v2197 = vmul.f32 %v2178, %v2189
        %v2198 = vadd.f32 %v2141, %v2190
        %v2199 = vadd.f32 %v2142, %v2191
        %v2200 = vadd.f32 %v2143, %v2192
        %v2201 = vadd.f32 %v2144, %v2193
        %v2202 = vadd.f32 %v2145, %v2194
        %v2203 = vadd.f32 %v2146, %v2195
        %v2204 = vadd.f32 %v2147, %v2196
        %v2205 = vadd.f32 %v2148, %v2197
        %s2206 = sadd.s32 %s2180, %s1571
        %s2207 = smul.u32 %s2206, 1024
        %s2208 = sadd.s32 %s1576, %s2185
        %s2209 = sadd.s32 %s2207, %s2208
        %s2210 = sld [smem:[#allocation8 + %s2209]]
        %v2211 = vstv %s2210
        %v2212 = vmul.f32 %v2171, %v2211
        %v2213 = vmul.f32 %v2172, %v2211
        %v2214 = vmul.f32 %v2173, %v2211
        %v2215 = vmul.f32 %v2174, %v2211
        %v2216 = vmul.f32 %v2175, %v2211
        %v2217 = vmul.f32 %v2176, %v2211
        %v2218 = vmul.f32 %v2177, %v2211
        %v2219 = vmul.f32 %v2178, %v2211
        %v2220 = vadd.f32 %v2163, %v2212
        %v2221 = vadd.f32 %v2164, %v2213
        %v2222 = vadd.f32 %v2165, %v2214
        %v2223 = vadd.f32 %v2166, %v2215
        %v2224 = vadd.f32 %v2167, %v2216
        %v2225 = vadd.f32 %v2168, %v2217
        %v2226 = vadd.f32 %v2169, %v2218
        %v2227 = vadd.f32 %v2170, %v2219
        %v2228 = vld [vmem:[%s2113 + $0x2] sm:$0xff]
        %v2229 = vld [vmem:[%s2113 + $0x12] sm:$0xff]
        %v2230 = vld [vmem:[%s2113 + $0x22] sm:$0xff]
        %v2231 = vld [vmem:[%s2113 + $0x32] sm:$0xff]
        %v2232 = vld [vmem:[%s2113 + $0x42] sm:$0xff]
        %v2233 = vld [vmem:[%s2113 + $0x52] sm:$0xff]
        %v2234 = vld [vmem:[%s2113 + $0x62] sm:$0xff]
        %v2235 = vld [vmem:[%s2113 + $0x72] sm:$0xff]
        %s2236 = sadd.s32 %s1526, 12
        %s2237 = sshra.s32 %s2236, 7
        %s2238 = sand.u32 %s2236, 127
        %s2239 = sadd.s32 %s2237, %s1541
        %s2240 = smul.u32 %s2239, 1024
        %s2241 = sshra.s32 %s2236, 7
        %s2242 = sand.u32 %s2236, 127
        %s2243 = sadd.s32 %s1548, %s2242
        %s2244 = sadd.s32 %s2240, %s2243
        %s2245 = sld [smem:[#allocation8 + %s2244]]
        %v2246 = vstv %s2245
        %v2247 = vmul.f32 %v2228, %v2246
        %v2248 = vmul.f32 %v2229, %v2246
        %v2249 = vmul.f32 %v2230, %v2246
        %v2250 = vmul.f32 %v2231, %v2246
        %v2251 = vmul.f32 %v2232, %v2246
        %v2252 = vmul.f32 %v2233, %v2246
        %v2253 = vmul.f32 %v2234, %v2246
        %v2254 = vmul.f32 %v2235, %v2246
        %v2255 = vadd.f32 %v2198, %v2247
        %v2256 = vadd.f32 %v2199, %v2248
        %v2257 = vadd.f32 %v2200, %v2249
        %v2258 = vadd.f32 %v2201, %v2250
        %v2259 = vadd.f32 %v2202, %v2251
        %v2260 = vadd.f32 %v2203, %v2252
        %v2261 = vadd.f32 %v2204, %v2253
        %v2262 = vadd.f32 %v2205, %v2254
        %s2263 = sadd.s32 %s2237, %s1571
        %s2264 = smul.u32 %s2263, 1024
        %s2265 = sadd.s32 %s1576, %s2242
        %s2266 = sadd.s32 %s2264, %s2265
        %s2267 = sld [smem:[#allocation8 + %s2266]]
        %v2268 = vstv %s2267
        %v2269 = vmul.f32 %v2228, %v2268
        %v2270 = vmul.f32 %v2229, %v2268
        %v2271 = vmul.f32 %v2230, %v2268
        %v2272 = vmul.f32 %v2231, %v2268
        %v2273 = vmul.f32 %v2232, %v2268
        %v2274 = vmul.f32 %v2233, %v2268
        %v2275 = vmul.f32 %v2234, %v2268
        %v2276 = vmul.f32 %v2235, %v2268
        %v2277 = vadd.f32 %v2220, %v2269
        %v2278 = vadd.f32 %v2221, %v2270
        %v2279 = vadd.f32 %v2222, %v2271
        %v2280 = vadd.f32 %v2223, %v2272
        %v2281 = vadd.f32 %v2224, %v2273
        %v2282 = vadd.f32 %v2225, %v2274
        %v2283 = vadd.f32 %v2226, %v2275
        %v2284 = vadd.f32 %v2227, %v2276
        %v2285 = vld [vmem:[%s2113 + $0x3] sm:$0xff]
        %v2286 = vld [vmem:[%s2113 + $0x13] sm:$0xff]
        %v2287 = vld [vmem:[%s2113 + $0x23] sm:$0xff]
        %v2288 = vld [vmem:[%s2113 + $0x33] sm:$0xff]
        %v2289 = vld [vmem:[%s2113 + $0x43] sm:$0xff]
        %v2290 = vld [vmem:[%s2113 + $0x53] sm:$0xff]
        %v2291 = vld [vmem:[%s2113 + $0x63] sm:$0xff]
        %v2292 = vld [vmem:[%s2113 + $0x73] sm:$0xff]
        %s2293 = sadd.s32 %s1526, 13
        %s2294 = sshra.s32 %s2293, 7
        %s2295 = sand.u32 %s2293, 127
        %s2296 = sadd.s32 %s2294, %s1541
        %s2297 = smul.u32 %s2296, 1024
        %s2298 = sshra.s32 %s2293, 7
        %s2299 = sand.u32 %s2293, 127
        %s2300 = sadd.s32 %s1548, %s2299
        %s2301 = sadd.s32 %s2297, %s2300
        %s2302 = sld [smem:[#allocation8 + %s2301]]
        %v2303 = vstv %s2302
        %v2304 = vmul.f32 %v2285, %v2303
        %v2305 = vmul.f32 %v2286, %v2303
        %v2306 = vmul.f32 %v2287, %v2303
        %v2307 = vmul.f32 %v2288, %v2303
        %v2308 = vmul.f32 %v2289, %v2303
        %v2309 = vmul.f32 %v2290, %v2303
        %v2310 = vmul.f32 %v2291, %v2303
        %v2311 = vmul.f32 %v2292, %v2303
        %v2312 = vadd.f32 %v2255, %v2304
        %v2313 = vadd.f32 %v2256, %v2305
        %v2314 = vadd.f32 %v2257, %v2306
        %v2315 = vadd.f32 %v2258, %v2307
        %v2316 = vadd.f32 %v2259, %v2308
        %v2317 = vadd.f32 %v2260, %v2309
        %v2318 = vadd.f32 %v2261, %v2310
        %v2319 = vadd.f32 %v2262, %v2311
        %s2320 = sadd.s32 %s2294, %s1571
        %s2321 = smul.u32 %s2320, 1024
        %s2322 = sadd.s32 %s1576, %s2299
        %s2323 = sadd.s32 %s2321, %s2322
        %s2324 = sld [smem:[#allocation8 + %s2323]]
        %v2325 = vstv %s2324
        %v2326 = vmul.f32 %v2285, %v2325
        %v2327 = vmul.f32 %v2286, %v2325
        %v2328 = vmul.f32 %v2287, %v2325
        %v2329 = vmul.f32 %v2288, %v2325
        %v2330 = vmul.f32 %v2289, %v2325
        %v2331 = vmul.f32 %v2290, %v2325
        %v2332 = vmul.f32 %v2291, %v2325
        %v2333 = vmul.f32 %v2292, %v2325
        %v2334 = vadd.f32 %v2277, %v2326
        %v2335 = vadd.f32 %v2278, %v2327
        %v2336 = vadd.f32 %v2279, %v2328
        %v2337 = vadd.f32 %v2280, %v2329
        %v2338 = vadd.f32 %v2281, %v2330
        %v2339 = vadd.f32 %v2282, %v2331
        %v2340 = vadd.f32 %v2283, %v2332
        %v2341 = vadd.f32 %v2284, %v2333
        %v2342 = vld [vmem:[%s2113 + $0x4] sm:$0xff]
        %v2343 = vld [vmem:[%s2113 + $0x14] sm:$0xff]
        %v2344 = vld [vmem:[%s2113 + $0x24] sm:$0xff]
        %v2345 = vld [vmem:[%s2113 + $0x34] sm:$0xff]
        %v2346 = vld [vmem:[%s2113 + $0x44] sm:$0xff]
        %v2347 = vld [vmem:[%s2113 + $0x54] sm:$0xff]
        %v2348 = vld [vmem:[%s2113 + $0x64] sm:$0xff]
        %v2349 = vld [vmem:[%s2113 + $0x74] sm:$0xff]
        %s2350 = sadd.s32 %s1526, 14
        %s2351 = sshra.s32 %s2350, 7
        %s2352 = sand.u32 %s2350, 127
        %s2353 = sadd.s32 %s2351, %s1541
        %s2354 = smul.u32 %s2353, 1024
        %s2355 = sshra.s32 %s2350, 7
        %s2356 = sand.u32 %s2350, 127
        %s2357 = sadd.s32 %s1548, %s2356
        %s2358 = sadd.s32 %s2354, %s2357
        %s2359 = sld [smem:[#allocation8 + %s2358]]
        %v2360 = vstv %s2359
        %v2361 = vmul.f32 %v2342, %v2360
        %v2362 = vmul.f32 %v2343, %v2360
        %v2363 = vmul.f32 %v2344, %v2360
        %v2364 = vmul.f32 %v2345, %v2360
        %v2365 = vmul.f32 %v2346, %v2360
        %v2366 = vmul.f32 %v2347, %v2360
        %v2367 = vmul.f32 %v2348, %v2360
        %v2368 = vmul.f32 %v2349, %v2360
        %v2369 = vadd.f32 %v2312, %v2361
        %v2370 = vadd.f32 %v2313, %v2362
        %v2371 = vadd.f32 %v2314, %v2363
        %v2372 = vadd.f32 %v2315, %v2364
        %v2373 = vadd.f32 %v2316, %v2365
        %v2374 = vadd.f32 %v2317, %v2366
        %v2375 = vadd.f32 %v2318, %v2367
        %v2376 = vadd.f32 %v2319, %v2368
        %s2377 = sadd.s32 %s2351, %s1571
        %s2378 = smul.u32 %s2377, 1024
        %s2379 = sadd.s32 %s1576, %s2356
        %s2380 = sadd.s32 %s2378, %s2379
        %s2381 = sld [smem:[#allocation8 + %s2380]]
        %v2382 = vstv %s2381
        %v2383 = vmul.f32 %v2342, %v2382
        %v2384 = vmul.f32 %v2343, %v2382
        %v2385 = vmul.f32 %v2344, %v2382
        %v2386 = vmul.f32 %v2345, %v2382
        %v2387 = vmul.f32 %v2346, %v2382
        %v2388 = vmul.f32 %v2347, %v2382
        %v2389 = vmul.f32 %v2348, %v2382
        %v2390 = vmul.f32 %v2349, %v2382
        %v2391 = vadd.f32 %v2334, %v2383
        %v2392 = vadd.f32 %v2335, %v2384
        %v2393 = vadd.f32 %v2336, %v2385
        %v2394 = vadd.f32 %v2337, %v2386
        %v2395 = vadd.f32 %v2338, %v2387
        %v2396 = vadd.f32 %v2339, %v2388
        %v2397 = vadd.f32 %v2340, %v2389
        %v2398 = vadd.f32 %v2341, %v2390
        %s2399 = sadd.s32 48, %s1527
        %s2400 = scalar_lea.vmem [#allocation2], %s2399
        %v2401 = vld [vmem:[%s2400] sm:$0xff]
        %v2402 = vld [vmem:[%s2400 + $0x10] sm:$0xff]
        %v2403 = vld [vmem:[%s2400 + $0x20] sm:$0xff]
        %v2404 = vld [vmem:[%s2400 + $0x30] sm:$0xff]
        %v2405 = vld [vmem:[%s2400 + $0x40] sm:$0xff]
        %v2406 = vld [vmem:[%s2400 + $0x50] sm:$0xff]
        %v2407 = vld [vmem:[%s2400 + $0x60] sm:$0xff]
        %v2408 = vld [vmem:[%s2400 + $0x70] sm:$0xff]
        %s2409 = sadd.s32 %s1526, 15
        %s2410 = sshra.s32 %s2409, 7
        %s2411 = sand.u32 %s2409, 127
        %s2412 = sadd.s32 %s2410, %s1541
        %s2413 = smul.u32 %s2412, 1024
        %s2414 = sshra.s32 %s2409, 7
        %s2415 = sand.u32 %s2409, 127
        %s2416 = sadd.s32 %s1548, %s2415
        %s2417 = sadd.s32 %s2413, %s2416
        %s2418 = sld [smem:[#allocation8 + %s2417]]
        %v2419 = vstv %s2418
        %v2420 = vmul.f32 %v2401, %v2419
        %v2421 = vmul.f32 %v2402, %v2419
        %v2422 = vmul.f32 %v2403, %v2419
        %v2423 = vmul.f32 %v2404, %v2419
        %v2424 = vmul.f32 %v2405, %v2419
        %v2425 = vmul.f32 %v2406, %v2419
        %v2426 = vmul.f32 %v2407, %v2419
        %v2427 = vmul.f32 %v2408, %v2419
        %v2428 = vadd.f32 %v2369, %v2420
        %v2429 = vadd.f32 %v2370, %v2421
        %v2430 = vadd.f32 %v2371, %v2422
        %v2431 = vadd.f32 %v2372, %v2423
        %v2432 = vadd.f32 %v2373, %v2424
        %v2433 = vadd.f32 %v2374, %v2425
        %v2434 = vadd.f32 %v2375, %v2426
        %v2435 = vadd.f32 %v2376, %v2427
        %s2436 = sadd.s32 %s2410, %s1571
        %s2437 = smul.u32 %s2436, 1024
        %s2438 = sadd.s32 %s1576, %s2415
        %s2439 = sadd.s32 %s2437, %s2438
        %s2440 = sld [smem:[#allocation8 + %s2439]]
        %v2441 = vstv %s2440
        %v2442 = vmul.f32 %v2401, %v2441
        %v2443 = vmul.f32 %v2402, %v2441
        %v2444 = vmul.f32 %v2403, %v2441
        %v2445 = vmul.f32 %v2404, %v2441
        %v2446 = vmul.f32 %v2405, %v2441
        %v2447 = vmul.f32 %v2406, %v2441
        %v2448 = vmul.f32 %v2407, %v2441
        %v2449 = vmul.f32 %v2408, %v2441
        %v2450 = vadd.f32 %v2391, %v2442
        %v2451 = vadd.f32 %v2392, %v2443
        %v2452 = vadd.f32 %v2393, %v2444
        %v2453 = vadd.f32 %v2394, %v2445
        %v2454 = vadd.f32 %v2395, %v2446
        %v2455 = vadd.f32 %v2396, %v2447
        %v2456 = vadd.f32 %v2397, %v2448
        %v2457 = vadd.f32 %v2398, %v2449
        %v2458 = vld [vmem:[%s2400 + $0x1] sm:$0xff]
        %v2459 = vld [vmem:[%s2400 + $0x11] sm:$0xff]
        %v2460 = vld [vmem:[%s2400 + $0x21] sm:$0xff]
        %v2461 = vld [vmem:[%s2400 + $0x31] sm:$0xff]
        %v2462 = vld [vmem:[%s2400 + $0x41] sm:$0xff]
        %v2463 = vld [vmem:[%s2400 + $0x51] sm:$0xff]
        %v2464 = vld [vmem:[%s2400 + $0x61] sm:$0xff]
        %v2465 = vld [vmem:[%s2400 + $0x71] sm:$0xff]
        %s2466 = sadd.s32 %s1526, 16
        %s2467 = sshra.s32 %s2466, 7
        %s2468 = sand.u32 %s2466, 127
        %s2469 = sadd.s32 %s2467, %s1541
        %s2470 = smul.u32 %s2469, 1024
        %s2471 = sshra.s32 %s2466, 7
        %s2472 = sand.u32 %s2466, 127
        %s2473 = sadd.s32 %s1548, %s2472
        %s2474 = sadd.s32 %s2470, %s2473
        %s2475 = sld [smem:[#allocation8 + %s2474]]
        %v2476 = vstv %s2475
        %v2477 = vmul.f32 %v2458, %v2476
        %v2478 = vmul.f32 %v2459, %v2476
        %v2479 = vmul.f32 %v2460, %v2476
        %v2480 = vmul.f32 %v2461, %v2476
        %v2481 = vmul.f32 %v2462, %v2476
        %v2482 = vmul.f32 %v2463, %v2476
        %v2483 = vmul.f32 %v2464, %v2476
        %v2484 = vmul.f32 %v2465, %v2476
        %v2485 = vadd.f32 %v2428, %v2477
        %v2486 = vadd.f32 %v2429, %v2478
        %v2487 = vadd.f32 %v2430, %v2479
        %v2488 = vadd.f32 %v2431, %v2480
        %v2489 = vadd.f32 %v2432, %v2481
        %v2490 = vadd.f32 %v2433, %v2482
        %v2491 = vadd.f32 %v2434, %v2483
        %v2492 = vadd.f32 %v2435, %v2484
        %s2493 = sadd.s32 %s2467, %s1571
        %s2494 = smul.u32 %s2493, 1024
        %s2495 = sadd.s32 %s1576, %s2472
        %s2496 = sadd.s32 %s2494, %s2495
        %s2497 = sld [smem:[#allocation8 + %s2496]]
        %v2498 = vstv %s2497
        %v2499 = vmul.f32 %v2458, %v2498
        %v2500 = vmul.f32 %v2459, %v2498
        %v2501 = vmul.f32 %v2460, %v2498
        %v2502 = vmul.f32 %v2461, %v2498
        %v2503 = vmul.f32 %v2462, %v2498
        %v2504 = vmul.f32 %v2463, %v2498
        %v2505 = vmul.f32 %v2464, %v2498
        %v2506 = vmul.f32 %v2465, %v2498
        %v2507 = vadd.f32 %v2450, %v2499
        %v2508 = vadd.f32 %v2451, %v2500
        %v2509 = vadd.f32 %v2452, %v2501
        %v2510 = vadd.f32 %v2453, %v2502
        %v2511 = vadd.f32 %v2454, %v2503
        %v2512 = vadd.f32 %v2455, %v2504
        %v2513 = vadd.f32 %v2456, %v2505
        %v2514 = vadd.f32 %v2457, %v2506
        %v2515 = vld [vmem:[%s2400 + $0x2] sm:$0xff]
        %v2516 = vld [vmem:[%s2400 + $0x12] sm:$0xff]
        %v2517 = vld [vmem:[%s2400 + $0x22] sm:$0xff]
        %v2518 = vld [vmem:[%s2400 + $0x32] sm:$0xff]
        %v2519 = vld [vmem:[%s2400 + $0x42] sm:$0xff]
        %v2520 = vld [vmem:[%s2400 + $0x52] sm:$0xff]
        %v2521 = vld [vmem:[%s2400 + $0x62] sm:$0xff]
        %v2522 = vld [vmem:[%s2400 + $0x72] sm:$0xff]
        %s2523 = sadd.s32 %s1526, 17
        %s2524 = sshra.s32 %s2523, 7
        %s2525 = sand.u32 %s2523, 127
        %s2526 = sadd.s32 %s2524, %s1541
        %s2527 = smul.u32 %s2526, 1024
        %s2528 = sshra.s32 %s2523, 7
        %s2529 = sand.u32 %s2523, 127
        %s2530 = sadd.s32 %s1548, %s2529
        %s2531 = sadd.s32 %s2527, %s2530
        %s2532 = sld [smem:[#allocation8 + %s2531]]
        %v2533 = vstv %s2532
        %v2534 = vmul.f32 %v2515, %v2533
        %v2535 = vmul.f32 %v2516, %v2533
        %v2536 = vmul.f32 %v2517, %v2533
        %v2537 = vmul.f32 %v2518, %v2533
        %v2538 = vmul.f32 %v2519, %v2533
        %v2539 = vmul.f32 %v2520, %v2533
        %v2540 = vmul.f32 %v2521, %v2533
        %v2541 = vmul.f32 %v2522, %v2533
        %v2542 = vadd.f32 %v2485, %v2534
        %v2543 = vadd.f32 %v2486, %v2535
        %v2544 = vadd.f32 %v2487, %v2536
        %v2545 = vadd.f32 %v2488, %v2537
        %v2546 = vadd.f32 %v2489, %v2538
        %v2547 = vadd.f32 %v2490, %v2539
        %v2548 = vadd.f32 %v2491, %v2540
        %v2549 = vadd.f32 %v2492, %v2541
        %s2550 = sadd.s32 %s2524, %s1571
        %s2551 = smul.u32 %s2550, 1024
        %s2552 = sadd.s32 %s1576, %s2529
        %s2553 = sadd.s32 %s2551, %s2552
        %s2554 = sld [smem:[#allocation8 + %s2553]]
        %v2555 = vstv %s2554
        %v2556 = vmul.f32 %v2515, %v2555
        %v2557 = vmul.f32 %v2516, %v2555
        %v2558 = vmul.f32 %v2517, %v2555
        %v2559 = vmul.f32 %v2518, %v2555
        %v2560 = vmul.f32 %v2519, %v2555
        %v2561 = vmul.f32 %v2520, %v2555
        %v2562 = vmul.f32 %v2521, %v2555
        %v2563 = vmul.f32 %v2522, %v2555
        %v2564 = vadd.f32 %v2507, %v2556
        %v2565 = vadd.f32 %v2508, %v2557
        %v2566 = vadd.f32 %v2509, %v2558
        %v2567 = vadd.f32 %v2510, %v2559
        %v2568 = vadd.f32 %v2511, %v2560
        %v2569 = vadd.f32 %v2512, %v2561
        %v2570 = vadd.f32 %v2513, %v2562
        %v2571 = vadd.f32 %v2514, %v2563
        %v2572 = vld [vmem:[%s2400 + $0x3] sm:$0xff]
        %v2573 = vld [vmem:[%s2400 + $0x13] sm:$0xff]
        %v2574 = vld [vmem:[%s2400 + $0x23] sm:$0xff]
        %v2575 = vld [vmem:[%s2400 + $0x33] sm:$0xff]
        %v2576 = vld [vmem:[%s2400 + $0x43] sm:$0xff]
        %v2577 = vld [vmem:[%s2400 + $0x53] sm:$0xff]
        %v2578 = vld [vmem:[%s2400 + $0x63] sm:$0xff]
        %v2579 = vld [vmem:[%s2400 + $0x73] sm:$0xff]
        %s2580 = sadd.s32 %s1526, 18
        %s2581 = sshra.s32 %s2580, 7
        %s2582 = sand.u32 %s2580, 127
        %s2583 = sadd.s32 %s2581, %s1541
        %s2584 = smul.u32 %s2583, 1024
        %s2585 = sshra.s32 %s2580, 7
        %s2586 = sand.u32 %s2580, 127
        %s2587 = sadd.s32 %s1548, %s2586
        %s2588 = sadd.s32 %s2584, %s2587
        %s2589 = sld [smem:[#allocation8 + %s2588]]
        %v2590 = vstv %s2589
        %v2591 = vmul.f32 %v2572, %v2590
        %v2592 = vmul.f32 %v2573, %v2590
        %v2593 = vmul.f32 %v2574, %v2590
        %v2594 = vmul.f32 %v2575, %v2590
        %v2595 = vmul.f32 %v2576, %v2590
        %v2596 = vmul.f32 %v2577, %v2590
        %v2597 = vmul.f32 %v2578, %v2590
        %v2598 = vmul.f32 %v2579, %v2590
        %v2599 = vadd.f32 %v2542, %v2591
        %v2600 = vadd.f32 %v2543, %v2592
        %v2601 = vadd.f32 %v2544, %v2593
        %v2602 = vadd.f32 %v2545, %v2594
        %v2603 = vadd.f32 %v2546, %v2595
        %v2604 = vadd.f32 %v2547, %v2596
        %v2605 = vadd.f32 %v2548, %v2597
        %v2606 = vadd.f32 %v2549, %v2598
        %s2607 = sadd.s32 %s2581, %s1571
        %s2608 = smul.u32 %s2607, 1024
        %s2609 = sadd.s32 %s1576, %s2586
        %s2610 = sadd.s32 %s2608, %s2609
        %s2611 = sld [smem:[#allocation8 + %s2610]]
        %v2612 = vstv %s2611
        %v2613 = vmul.f32 %v2572, %v2612
        %v2614 = vmul.f32 %v2573, %v2612
        %v2615 = vmul.f32 %v2574, %v2612
        %v2616 = vmul.f32 %v2575, %v2612
        %v2617 = vmul.f32 %v2576, %v2612
        %v2618 = vmul.f32 %v2577, %v2612
        %v2619 = vmul.f32 %v2578, %v2612
        %v2620 = vmul.f32 %v2579, %v2612
        %v2621 = vadd.f32 %v2564, %v2613
        %v2622 = vadd.f32 %v2565, %v2614
        %v2623 = vadd.f32 %v2566, %v2615
        %v2624 = vadd.f32 %v2567, %v2616
        %v2625 = vadd.f32 %v2568, %v2617
        %v2626 = vadd.f32 %v2569, %v2618
        %v2627 = vadd.f32 %v2570, %v2619
        %v2628 = vadd.f32 %v2571, %v2620
        %v2629 = vld [vmem:[%s2400 + $0x4] sm:$0xff]
        %v2630 = vld [vmem:[%s2400 + $0x14] sm:$0xff]
        %v2631 = vld [vmem:[%s2400 + $0x24] sm:$0xff]
        %v2632 = vld [vmem:[%s2400 + $0x34] sm:$0xff]
        %v2633 = vld [vmem:[%s2400 + $0x44] sm:$0xff]
        %v2634 = vld [vmem:[%s2400 + $0x54] sm:$0xff]
        %v2635 = vld [vmem:[%s2400 + $0x64] sm:$0xff]
        %v2636 = vld [vmem:[%s2400 + $0x74] sm:$0xff]
        %s2637 = sadd.s32 %s1526, 19
        %s2638 = sshra.s32 %s2637, 7
        %s2639 = sand.u32 %s2637, 127
        %s2640 = sadd.s32 %s2638, %s1541
        %s2641 = smul.u32 %s2640, 1024
        %s2642 = sshra.s32 %s2637, 7
        %s2643 = sand.u32 %s2637, 127
        %s2644 = sadd.s32 %s1548, %s2643
        %s2645 = sadd.s32 %s2641, %s2644
        %s2646 = sld [smem:[#allocation8 + %s2645]]
        %v2647 = vstv %s2646
        %v2648 = vmul.f32 %v2629, %v2647
        %v2649 = vmul.f32 %v2630, %v2647
        %v2650 = vmul.f32 %v2631, %v2647
        %v2651 = vmul.f32 %v2632, %v2647
        %v2652 = vmul.f32 %v2633, %v2647
        %v2653 = vmul.f32 %v2634, %v2647
        %v2654 = vmul.f32 %v2635, %v2647
        %v2655 = vmul.f32 %v2636, %v2647
        %v2656 = vadd.f32 %v2599, %v2648
        %v2657 = vadd.f32 %v2600, %v2649
        %v2658 = vadd.f32 %v2601, %v2650
        %v2659 = vadd.f32 %v2602, %v2651
        %v2660 = vadd.f32 %v2603, %v2652
        %v2661 = vadd.f32 %v2604, %v2653
        %v2662 = vadd.f32 %v2605, %v2654
        %v2663 = vadd.f32 %v2606, %v2655
        %s2664 = sadd.s32 %s2638, %s1571
        %s2665 = smul.u32 %s2664, 1024
        %s2666 = sadd.s32 %s1576, %s2643
        %s2667 = sadd.s32 %s2665, %s2666
        %s2668 = sld [smem:[#allocation8 + %s2667]]
        %v2669 = vstv %s2668
        %v2670 = vmul.f32 %v2629, %v2669
        %v2671 = vmul.f32 %v2630, %v2669
        %v2672 = vmul.f32 %v2631, %v2669
        %v2673 = vmul.f32 %v2632, %v2669
        %v2674 = vmul.f32 %v2633, %v2669
        %v2675 = vmul.f32 %v2634, %v2669
        %v2676 = vmul.f32 %v2635, %v2669
        %v2677 = vmul.f32 %v2636, %v2669
        %v2678 = vadd.f32 %v2621, %v2670
        %v2679 = vadd.f32 %v2622, %v2671
        %v2680 = vadd.f32 %v2623, %v2672
        %v2681 = vadd.f32 %v2624, %v2673
        %v2682 = vadd.f32 %v2625, %v2674
        %v2683 = vadd.f32 %v2626, %v2675
        %v2684 = vadd.f32 %v2627, %v2676
        %v2685 = vadd.f32 %v2628, %v2677
        %s2686 = sadd.s32 64, %s1527
        %s2687 = scalar_lea.vmem [#allocation2], %s2686
        %v2688 = vld [vmem:[%s2687] sm:$0xff]
        %v2689 = vld [vmem:[%s2687 + $0x10] sm:$0xff]
        %v2690 = vld [vmem:[%s2687 + $0x20] sm:$0xff]
        %v2691 = vld [vmem:[%s2687 + $0x30] sm:$0xff]
        %v2692 = vld [vmem:[%s2687 + $0x40] sm:$0xff]
        %v2693 = vld [vmem:[%s2687 + $0x50] sm:$0xff]
        %v2694 = vld [vmem:[%s2687 + $0x60] sm:$0xff]
        %v2695 = vld [vmem:[%s2687 + $0x70] sm:$0xff]
        %s2696 = sadd.s32 %s1526, 20
        %s2697 = sshra.s32 %s2696, 7
        %s2698 = sand.u32 %s2696, 127
        %s2699 = sadd.s32 %s2697, %s1541
        %s2700 = smul.u32 %s2699, 1024
        %s2701 = sshra.s32 %s2696, 7
        %s2702 = sand.u32 %s2696, 127
        %s2703 = sadd.s32 %s1548, %s2702
        %s2704 = sadd.s32 %s2700, %s2703
        %s2705 = sld [smem:[#allocation8 + %s2704]]
        %v2706 = vstv %s2705
        %v2707 = vmul.f32 %v2688, %v2706
        %v2708 = vmul.f32 %v2689, %v2706
        %v2709 = vmul.f32 %v2690, %v2706
        %v2710 = vmul.f32 %v2691, %v2706
        %v2711 = vmul.f32 %v2692, %v2706
        %v2712 = vmul.f32 %v2693, %v2706
        %v2713 = vmul.f32 %v2694, %v2706
        %v2714 = vmul.f32 %v2695, %v2706
        %v2715 = vadd.f32 %v2656, %v2707
        %v2716 = vadd.f32 %v2657, %v2708
        %v2717 = vadd.f32 %v2658, %v2709
        %v2718 = vadd.f32 %v2659, %v2710
        %v2719 = vadd.f32 %v2660, %v2711
        %v2720 = vadd.f32 %v2661, %v2712
        %v2721 = vadd.f32 %v2662, %v2713
        %v2722 = vadd.f32 %v2663, %v2714
        %s2723 = sadd.s32 %s2697, %s1571
        %s2724 = smul.u32 %s2723, 1024
        %s2725 = sadd.s32 %s1576, %s2702
        %s2726 = sadd.s32 %s2724, %s2725
        %s2727 = sld [smem:[#allocation8 + %s2726]]
        %v2728 = vstv %s2727
        %v2729 = vmul.f32 %v2688, %v2728
        %v2730 = vmul.f32 %v2689, %v2728
        %v2731 = vmul.f32 %v2690, %v2728
        %v2732 = vmul.f32 %v2691, %v2728
        %v2733 = vmul.f32 %v2692, %v2728
        %v2734 = vmul.f32 %v2693, %v2728
        %v2735 = vmul.f32 %v2694, %v2728
        %v2736 = vmul.f32 %v2695, %v2728
        %v2737 = vadd.f32 %v2678, %v2729
        %v2738 = vadd.f32 %v2679, %v2730
        %v2739 = vadd.f32 %v2680, %v2731
        %v2740 = vadd.f32 %v2681, %v2732
        %v2741 = vadd.f32 %v2682, %v2733
        %v2742 = vadd.f32 %v2683, %v2734
        %v2743 = vadd.f32 %v2684, %v2735
        %v2744 = vadd.f32 %v2685, %v2736
        %v2745 = vld [vmem:[%s2687 + $0x1] sm:$0xff]
        %v2746 = vld [vmem:[%s2687 + $0x11] sm:$0xff]
        %v2747 = vld [vmem:[%s2687 + $0x21] sm:$0xff]
        %v2748 = vld [vmem:[%s2687 + $0x31] sm:$0xff]
        %v2749 = vld [vmem:[%s2687 + $0x41] sm:$0xff]
        %v2750 = vld [vmem:[%s2687 + $0x51] sm:$0xff]
        %v2751 = vld [vmem:[%s2687 + $0x61] sm:$0xff]
        %v2752 = vld [vmem:[%s2687 + $0x71] sm:$0xff]
        %s2753 = sadd.s32 %s1526, 21
        %s2754 = sshra.s32 %s2753, 7
        %s2755 = sand.u32 %s2753, 127
        %s2756 = sadd.s32 %s2754, %s1541
        %s2757 = smul.u32 %s2756, 1024
        %s2758 = sshra.s32 %s2753, 7
        %s2759 = sand.u32 %s2753, 127
        %s2760 = sadd.s32 %s1548, %s2759
        %s2761 = sadd.s32 %s2757, %s2760
        %s2762 = sld [smem:[#allocation8 + %s2761]]
        %v2763 = vstv %s2762
        %v2764 = vmul.f32 %v2745, %v2763
        %v2765 = vmul.f32 %v2746, %v2763
        %v2766 = vmul.f32 %v2747, %v2763
        %v2767 = vmul.f32 %v2748, %v2763
        %v2768 = vmul.f32 %v2749, %v2763
        %v2769 = vmul.f32 %v2750, %v2763
        %v2770 = vmul.f32 %v2751, %v2763
        %v2771 = vmul.f32 %v2752, %v2763
        %v2772 = vadd.f32 %v2715, %v2764
        %v2773 = vadd.f32 %v2716, %v2765
        %v2774 = vadd.f32 %v2717, %v2766
        %v2775 = vadd.f32 %v2718, %v2767
        %v2776 = vadd.f32 %v2719, %v2768
        %v2777 = vadd.f32 %v2720, %v2769
        %v2778 = vadd.f32 %v2721, %v2770
        %v2779 = vadd.f32 %v2722, %v2771
        %s2780 = sadd.s32 %s2754, %s1571
        %s2781 = smul.u32 %s2780, 1024
        %s2782 = sadd.s32 %s1576, %s2759
        %s2783 = sadd.s32 %s2781, %s2782
        %s2784 = sld [smem:[#allocation8 + %s2783]]
        %v2785 = vstv %s2784
        %v2786 = vmul.f32 %v2745, %v2785
        %v2787 = vmul.f32 %v2746, %v2785
        %v2788 = vmul.f32 %v2747, %v2785
        %v2789 = vmul.f32 %v2748, %v2785
        %v2790 = vmul.f32 %v2749, %v2785
        %v2791 = vmul.f32 %v2750, %v2785
        %v2792 = vmul.f32 %v2751, %v2785
        %v2793 = vmul.f32 %v2752, %v2785
        %v2794 = vadd.f32 %v2737, %v2786
        %v2795 = vadd.f32 %v2738, %v2787
        %v2796 = vadd.f32 %v2739, %v2788
        %v2797 = vadd.f32 %v2740, %v2789
        %v2798 = vadd.f32 %v2741, %v2790
        %v2799 = vadd.f32 %v2742, %v2791
        %v2800 = vadd.f32 %v2743, %v2792
        %v2801 = vadd.f32 %v2744, %v2793
        %v2802 = vld [vmem:[%s2687 + $0x2] sm:$0xff]
        %v2803 = vld [vmem:[%s2687 + $0x12] sm:$0xff]
        %v2804 = vld [vmem:[%s2687 + $0x22] sm:$0xff]
        %v2805 = vld [vmem:[%s2687 + $0x32] sm:$0xff]
        %v2806 = vld [vmem:[%s2687 + $0x42] sm:$0xff]
        %v2807 = vld [vmem:[%s2687 + $0x52] sm:$0xff]
        %v2808 = vld [vmem:[%s2687 + $0x62] sm:$0xff]
        %v2809 = vld [vmem:[%s2687 + $0x72] sm:$0xff]
        %s2810 = sadd.s32 %s1526, 22
        %s2811 = sshra.s32 %s2810, 7
        %s2812 = sand.u32 %s2810, 127
        %s2813 = sadd.s32 %s2811, %s1541
        %s2814 = smul.u32 %s2813, 1024
        %s2815 = sshra.s32 %s2810, 7
        %s2816 = sand.u32 %s2810, 127
        %s2817 = sadd.s32 %s1548, %s2816
        %s2818 = sadd.s32 %s2814, %s2817
        %s2819 = sld [smem:[#allocation8 + %s2818]]
        %v2820 = vstv %s2819
        %v2821 = vmul.f32 %v2802, %v2820
        %v2822 = vmul.f32 %v2803, %v2820
        %v2823 = vmul.f32 %v2804, %v2820
        %v2824 = vmul.f32 %v2805, %v2820
        %v2825 = vmul.f32 %v2806, %v2820
        %v2826 = vmul.f32 %v2807, %v2820
        %v2827 = vmul.f32 %v2808, %v2820
        %v2828 = vmul.f32 %v2809, %v2820
        %v2829 = vadd.f32 %v2772, %v2821
        %v2830 = vadd.f32 %v2773, %v2822
        %v2831 = vadd.f32 %v2774, %v2823
        %v2832 = vadd.f32 %v2775, %v2824
        %v2833 = vadd.f32 %v2776, %v2825
        %v2834 = vadd.f32 %v2777, %v2826
        %v2835 = vadd.f32 %v2778, %v2827
        %v2836 = vadd.f32 %v2779, %v2828
        %s2837 = sadd.s32 %s2811, %s1571
        %s2838 = smul.u32 %s2837, 1024
        %s2839 = sadd.s32 %s1576, %s2816
        %s2840 = sadd.s32 %s2838, %s2839
        %s2841 = sld [smem:[#allocation8 + %s2840]]
        %v2842 = vstv %s2841
        %v2843 = vmul.f32 %v2802, %v2842
        %v2844 = vmul.f32 %v2803, %v2842
        %v2845 = vmul.f32 %v2804, %v2842
        %v2846 = vmul.f32 %v2805, %v2842
        %v2847 = vmul.f32 %v2806, %v2842
        %v2848 = vmul.f32 %v2807, %v2842
        %v2849 = vmul.f32 %v2808, %v2842
        %v2850 = vmul.f32 %v2809, %v2842
        %v2851 = vadd.f32 %v2794, %v2843
        %v2852 = vadd.f32 %v2795, %v2844
        %v2853 = vadd.f32 %v2796, %v2845
        %v2854 = vadd.f32 %v2797, %v2846
        %v2855 = vadd.f32 %v2798, %v2847
        %v2856 = vadd.f32 %v2799, %v2848
        %v2857 = vadd.f32 %v2800, %v2849
        %v2858 = vadd.f32 %v2801, %v2850
        %v2859 = vld [vmem:[%s2687 + $0x3] sm:$0xff]
        %v2860 = vld [vmem:[%s2687 + $0x13] sm:$0xff]
        %v2861 = vld [vmem:[%s2687 + $0x23] sm:$0xff]
        %v2862 = vld [vmem:[%s2687 + $0x33] sm:$0xff]
        %v2863 = vld [vmem:[%s2687 + $0x43] sm:$0xff]
        %v2864 = vld [vmem:[%s2687 + $0x53] sm:$0xff]
        %v2865 = vld [vmem:[%s2687 + $0x63] sm:$0xff]
        %v2866 = vld [vmem:[%s2687 + $0x73] sm:$0xff]
        %s2867 = sadd.s32 %s1526, 23
        %s2868 = sshra.s32 %s2867, 7
        %s2869 = sand.u32 %s2867, 127
        %s2870 = sadd.s32 %s2868, %s1541
        %s2871 = smul.u32 %s2870, 1024
        %s2872 = sshra.s32 %s2867, 7
        %s2873 = sand.u32 %s2867, 127
        %s2874 = sadd.s32 %s1548, %s2873
        %s2875 = sadd.s32 %s2871, %s2874
        %s2876 = sld [smem:[#allocation8 + %s2875]]
        %v2877 = vstv %s2876
        %v2878 = vmul.f32 %v2859, %v2877
        %v2879 = vmul.f32 %v2860, %v2877
        %v2880 = vmul.f32 %v2861, %v2877
        %v2881 = vmul.f32 %v2862, %v2877
        %v2882 = vmul.f32 %v2863, %v2877
        %v2883 = vmul.f32 %v2864, %v2877
        %v2884 = vmul.f32 %v2865, %v2877
        %v2885 = vmul.f32 %v2866, %v2877
        %v2886 = vadd.f32 %v2829, %v2878
        %v2887 = vadd.f32 %v2830, %v2879
        %v2888 = vadd.f32 %v2831, %v2880
        %v2889 = vadd.f32 %v2832, %v2881
        %v2890 = vadd.f32 %v2833, %v2882
        %v2891 = vadd.f32 %v2834, %v2883
        %v2892 = vadd.f32 %v2835, %v2884
        %v2893 = vadd.f32 %v2836, %v2885
        %s2894 = sadd.s32 %s2868, %s1571
        %s2895 = smul.u32 %s2894, 1024
        %s2896 = sadd.s32 %s1576, %s2873
        %s2897 = sadd.s32 %s2895, %s2896
        %s2898 = sld [smem:[#allocation8 + %s2897]]
        %v2899 = vstv %s2898
        %v2900 = vmul.f32 %v2859, %v2899
        %v2901 = vmul.f32 %v2860, %v2899
        %v2902 = vmul.f32 %v2861, %v2899
        %v2903 = vmul.f32 %v2862, %v2899
        %v2904 = vmul.f32 %v2863, %v2899
        %v2905 = vmul.f32 %v2864, %v2899
        %v2906 = vmul.f32 %v2865, %v2899
        %v2907 = vmul.f32 %v2866, %v2899
        %v2908 = vadd.f32 %v2851, %v2900
        %v2909 = vadd.f32 %v2852, %v2901
        %v2910 = vadd.f32 %v2853, %v2902
        %v2911 = vadd.f32 %v2854, %v2903
        %v2912 = vadd.f32 %v2855, %v2904
        %v2913 = vadd.f32 %v2856, %v2905
        %v2914 = vadd.f32 %v2857, %v2906
        %v2915 = vadd.f32 %v2858, %v2907
        %v2916 = vld [vmem:[%s2687 + $0x4] sm:$0xff]
        %v2917 = vld [vmem:[%s2687 + $0x14] sm:$0xff]
        %v2918 = vld [vmem:[%s2687 + $0x24] sm:$0xff]
        %v2919 = vld [vmem:[%s2687 + $0x34] sm:$0xff]
        %v2920 = vld [vmem:[%s2687 + $0x44] sm:$0xff]
        %v2921 = vld [vmem:[%s2687 + $0x54] sm:$0xff]
        %v2922 = vld [vmem:[%s2687 + $0x64] sm:$0xff]
        %v2923 = vld [vmem:[%s2687 + $0x74] sm:$0xff]
        %s2924 = sadd.s32 %s1526, 24
        %s2925 = sshra.s32 %s2924, 7
        %s2926 = sand.u32 %s2924, 127
        %s2927 = sadd.s32 %s2925, %s1541
        %s2928 = smul.u32 %s2927, 1024
        %s2929 = sshra.s32 %s2924, 7
        %s2930 = sand.u32 %s2924, 127
        %s2931 = sadd.s32 %s1548, %s2930
        %s2932 = sadd.s32 %s2928, %s2931
        %s2933 = sld [smem:[#allocation8 + %s2932]]
        %v2934 = vstv %s2933
        %v2935 = vmul.f32 %v2916, %v2934
        %v2936 = vmul.f32 %v2917, %v2934
        %v2937 = vmul.f32 %v2918, %v2934
        %v2938 = vmul.f32 %v2919, %v2934
        %v2939 = vmul.f32 %v2920, %v2934
        %v2940 = vmul.f32 %v2921, %v2934
        %v2941 = vmul.f32 %v2922, %v2934
        %v2942 = vmul.f32 %v2923, %v2934
        %v2943 = vadd.f32 %v2886, %v2935
        %v2944 = vadd.f32 %v2887, %v2936
        %v2945 = vadd.f32 %v2888, %v2937
        %v2946 = vadd.f32 %v2889, %v2938
        %v2947 = vadd.f32 %v2890, %v2939
        %v2948 = vadd.f32 %v2891, %v2940
        %v2949 = vadd.f32 %v2892, %v2941
        %v2950 = vadd.f32 %v2893, %v2942
        %s2951 = sadd.s32 %s2925, %s1571
        %s2952 = smul.u32 %s2951, 1024
        %s2953 = sadd.s32 %s1576, %s2930
        %s2954 = sadd.s32 %s2952, %s2953
        %s2955 = sld [smem:[#allocation8 + %s2954]]
        %v2956 = vstv %s2955
        %v2957 = vmul.f32 %v2916, %v2956
        %v2958 = vmul.f32 %v2917, %v2956
        %v2959 = vmul.f32 %v2918, %v2956
        %v2960 = vmul.f32 %v2919, %v2956
        %v2961 = vmul.f32 %v2920, %v2956
        %v2962 = vmul.f32 %v2921, %v2956
        %v2963 = vmul.f32 %v2922, %v2956
        %v2964 = vmul.f32 %v2923, %v2956
        %v2965 = vadd.f32 %v2908, %v2957
        %v2966 = vadd.f32 %v2909, %v2958
        %v2967 = vadd.f32 %v2910, %v2959
        %v2968 = vadd.f32 %v2911, %v2960
        %v2969 = vadd.f32 %v2912, %v2961
        %v2970 = vadd.f32 %v2913, %v2962
        %v2971 = vadd.f32 %v2914, %v2963
        %v2972 = vadd.f32 %v2915, %v2964
      $region79: #{cnn_mnist_forward.1} parent=71 // loop_footer
        %s1509 = sadd.s32 1, %s1505
      $region80: #{cnn_mnist_forward.1} parent=71 // loop_footer_branch
        %1504 = sbr.rel target = $region76
      $region81: #{cnn_mnist_forward.1} parent=71 // loop_exit
        _
      %s2973 = sld [smem:[#allocation9 + %s1502]]
      %v2974 = vstv %s2973
      %v2975 = vadd.f32 %v1510, %v2974
      %v2976 = vadd.f32 %v1511, %v2974
      %v2977 = vadd.f32 %v1512, %v2974
      %v2978 = vadd.f32 %v1513, %v2974
      %v2979 = vadd.f32 %v1514, %v2974
      %v2980 = vadd.f32 %v1515, %v2974
      %v2981 = vadd.f32 %v1516, %v2974
      %v2982 = vadd.f32 %v1517, %v2974
      %v2983 = vmax.f32 %v2975, %v2976
      %v2984 = vmax.f32 %v2977, %v2978
      %v2985 = vmax.f32 %v2979, %v2980
      %v2986 = vmax.f32 %v2981, %v2982
      %v2991 = vcombine.high %v2983, %v2983
      %v2993 = vunpack.c.l.s4 1983009808
      %v2994 = vunpack.c.0.s8 %v2993
      %v2995 = vlaneseq
      %v2996 = vshrl.u32 %v2995, 7
      %v2997 = vsub.s32 %v2994, %v2996
      %v2998 = vrot.slane %v2983, %v2997
      %v3000 = vunpack.c.l.s4 1983009808
      %v3001 = vunpack.c.0.s8 %v3000
      %v3002 = vlaneseq
      %v3003 = vshrl.u32 %v3002, 7
      %v3004 = vsub.s32 %v3001, %v3003
      %v3005 = vrot.slane %v2991, %v3004
      %v3006 = vcombine.high %v2998, %v2998
      %v3007 = vcombine.high %v3005, %v3005
      %v3008 = vcombine.high %v2984, %v2984
      %v3010 = vunpack.c.l.s4 1983009808
      %v3011 = vunpack.c.0.s8 %v3010
      %v3012 = vlaneseq
      %v3013 = vshrl.u32 %v3012, 7
      %v3014 = vsub.s32 %v3011, %v3013
      %v3015 = vrot.slane %v2984, %v3014
      %v3017 = vunpack.c.l.s4 1983009808
      %v3018 = vunpack.c.0.s8 %v3017
      %v3019 = vlaneseq
      %v3020 = vshrl.u32 %v3019, 7
      %v3021 = vsub.s32 %v3018, %v3020
      %v3022 = vrot.slane %v3008, %v3021
      %v3023 = vcombine.high %v3015, %v3015
      %v3024 = vcombine.high %v3022, %v3022
      %v3025 = vcombine.high %v2985, %v2985
      %v3027 = vunpack.c.l.s4 1983009808
      %v3028 = vunpack.c.0.s8 %v3027
      %v3029 = vlaneseq
      %v3030 = vshrl.u32 %v3029, 7
      %v3031 = vsub.s32 %v3028, %v3030
      %v3032 = vrot.slane %v2985, %v3031
      %v3034 = vunpack.c.l.s4 1983009808
      %v3035 = vunpack.c.0.s8 %v3034
      %v3036 = vlaneseq
      %v3037 = vshrl.u32 %v3036, 7
      %v3038 = vsub.s32 %v3035, %v3037
      %v3039 = vrot.slane %v3025, %v3038
      %v3040 = vcombine.high %v3032, %v3032
      %v3041 = vcombine.high %v3039, %v3039
      %v3042 = vcombine.high %v2986, %v2986
      %v3044 = vunpack.c.l.s4 1983009808
      %v3045 = vunpack.c.0.s8 %v3044
      %v3046 = vlaneseq
      %v3047 = vshrl.u32 %v3046, 7
      %v3048 = vsub.s32 %v3045, %v3047
      %v3049 = vrot.slane %v2986, %v3048
      %v3051 = vunpack.c.l.s4 1983009808
      %v3052 = vunpack.c.0.s8 %v3051
      %v3053 = vlaneseq
      %v3054 = vshrl.u32 %v3053, 7
      %v3055 = vsub.s32 %v3052, %v3054
      %v3056 = vrot.slane %v3042, %v3055
      %v3057 = vcombine.high %v3049, %v3049
      %v3058 = vcombine.high %v3056, %v3056
      %vm3075 = vcmask 1041408
      %v3076 = vsel %vm3075, %v2998, -inf
      %v3077 = vrot.slane %v3076, 4
      %v3078 = vmax.f32 %v3076, %v3077
      %v3079 = vrot.slane %v3078, 2
      %v3080 = vmax.f32 %v3078, %v3079
      %v3081 = vrot.slane %v3080, 1
      %v3082 = vmax.f32 %v3080, %v3081
      %v3083 = vsel %vm3075, %v3006, -inf
      %v3084 = vrot.slane %v3083, 4
      %v3085 = vmax.f32 %v3083, %v3084
      %v3086 = vrot.slane %v3085, 2
      %v3087 = vmax.f32 %v3085, %v3086
      %v3088 = vrot.slane %v3087, 1
      %v3089 = vmax.f32 %v3087, %v3088
      %v3090 = vsel %vm3075, %v3005, -inf
      %v3091 = vrot.slane %v3090, 4
      %v3092 = vmax.f32 %v3090, %v3091
      %v3093 = vrot.slane %v3092, 2
      %v3094 = vmax.f32 %v3092, %v3093
      %v3095 = vrot.slane %v3094, 1
      %v3096 = vmax.f32 %v3094, %v3095
      %v3097 = vsel %vm3075, %v3007, -inf
      %v3098 = vrot.slane %v3097, 4
      %v3099 = vmax.f32 %v3097, %v3098
      %v3100 = vrot.slane %v3099, 2
      %v3101 = vmax.f32 %v3099, %v3100
      %v3102 = vrot.slane %v3101, 1
      %v3103 = vmax.f32 %v3101, %v3102
      %v3104 = vsel %vm3075, %v3015, -inf
      %v3105 = vrot.slane %v3104, 4
      %v3106 = vmax.f32 %v3104, %v3105
      %v3107 = vrot.slane %v3106, 2
      %v3108 = vmax.f32 %v3106, %v3107
      %v3109 = vrot.slane %v3108, 1
      %v3110 = vmax.f32 %v3108, %v3109
      %v3111 = vsel %vm3075, %v3023, -inf
      %v3112 = vrot.slane %v3111, 4
      %v3113 = vmax.f32 %v3111, %v3112
      %v3114 = vrot.slane %v3113, 2
      %v3115 = vmax.f32 %v3113, %v3114
      %v3116 = vrot.slane %v3115, 1
      %v3117 = vmax.f32 %v3115, %v3116
      %v3118 = vsel %vm3075, %v3022, -inf
      %v3119 = vrot.slane %v3118, 4
      %v3120 = vmax.f32 %v3118, %v3119
      %v3121 = vrot.slane %v3120, 2
      %v3122 = vmax.f32 %v3120, %v3121
      %v3123 = vrot.slane %v3122, 1
      %v3124 = vmax.f32 %v3122, %v3123
      %v3125 = vsel %vm3075, %v3024, -inf
      %v3126 = vrot.slane %v3125, 4
      %v3127 = vmax.f32 %v3125, %v3126
      %v3128 = vrot.slane %v3127, 2
      %v3129 = vmax.f32 %v3127, %v3128
      %v3130 = vrot.slane %v3129, 1
      %v3131 = vmax.f32 %v3129, %v3130
      %v3132 = vsel %vm3075, %v3032, -inf
      %v3133 = vrot.slane %v3132, 4
      %v3134 = vmax.f32 %v3132, %v3133
      %v3135 = vrot.slane %v3134, 2
      %v3136 = vmax.f32 %v3134, %v3135
      %v3137 = vrot.slane %v3136, 1
      %v3138 = vmax.f32 %v3136, %v3137
      %v3139 = vsel %vm3075, %v3040, -inf
      %v3140 = vrot.slane %v3139, 4
      %v3141 = vmax.f32 %v3139, %v3140
      %v3142 = vrot.slane %v3141, 2
      %v3143 = vmax.f32 %v3141, %v3142
      %v3144 = vrot.slane %v3143, 1
      %v3145 = vmax.f32 %v3143, %v3144
      %v3146 = vsel %vm3075, %v3039, -inf
      %v3147 = vrot.slane %v3146, 4
      %v3148 = vmax.f32 %v3146, %v3147
      %v3149 = vrot.slane %v3148, 2
      %v3150 = vmax.f32 %v3148, %v3149
      %v3151 = vrot.slane %v3150, 1
      %v3152 = vmax.f32 %v3150, %v3151
      %v3153 = vsel %vm3075, %v3041, -inf
      %v3154 = vrot.slane %v3153, 4
      %v3155 = vmax.f32 %v3153, %v3154
      %v3156 = vrot.slane %v3155, 2
      %v3157 = vmax.f32 %v3155, %v3156
      %v3158 = vrot.slane %v3157, 1
      %v3159 = vmax.f32 %v3157, %v3158
      %v3160 = vsel %vm3075, %v3049, -inf
      %v3161 = vrot.slane %v3160, 4
      %v3162 = vmax.f32 %v3160, %v3161
      %v3163 = vrot.slane %v3162, 2
      %v3164 = vmax.f32 %v3162, %v3163
      %v3165 = vrot.slane %v3164, 1
      %v3166 = vmax.f32 %v3164, %v3165
      %v3167 = vsel %vm3075, %v3057, -inf
      %v3168 = vrot.slane %v3167, 4
      %v3169 = vmax.f32 %v3167, %v3168
      %v3170 = vrot.slane %v3169, 2
      %v3171 = vmax.f32 %v3169, %v3170
      %v3172 = vrot.slane %v3171, 1
      %v3173 = vmax.f32 %v3171, %v3172
      %v3174 = vsel %vm3075, %v3056, -inf
      %v3175 = vrot.slane %v3174, 4
      %v3176 = vmax.f32 %v3174, %v3175
      %v3177 = vrot.slane %v3176, 2
      %v3178 = vmax.f32 %v3176, %v3177
      %v3179 = vrot.slane %v3178, 1
      %v3180 = vmax.f32 %v3178, %v3179
      %v3181 = vsel %vm3075, %v3058, -inf
      %v3182 = vrot.slane %v3181, 4
      %v3183 = vmax.f32 %v3181, %v3182
      %v3184 = vrot.slane %v3183, 2
      %v3185 = vmax.f32 %v3183, %v3184
      %v3186 = vrot.slane %v3185, 1
      %v3187 = vmax.f32 %v3185, %v3186
      %v3188 = vmax.f32 %v3082, 0.0
      %v3189 = vmax.f32 %v3089, 0.0
      %v3190 = vmax.f32 %v3096, 0.0
      %v3191 = vmax.f32 %v3103, 0.0
      %v3192 = vmax.f32 %v3110, 0.0
      %v3193 = vmax.f32 %v3117, 0.0
      %v3194 = vmax.f32 %v3124, 0.0
      %v3195 = vmax.f32 %v3131, 0.0
      %v3196 = vmax.f32 %v3138, 0.0
      %v3197 = vmax.f32 %v3145, 0.0
      %v3198 = vmax.f32 %v3152, 0.0
      %v3199 = vmax.f32 %v3159, 0.0
      %v3200 = vmax.f32 %v3166, 0.0
      %v3201 = vmax.f32 %v3173, 0.0
      %v3202 = vmax.f32 %v3180, 0.0
      %v3203 = vmax.f32 %v3187, 0.0
      %vm3208 = vcmask 1041409
      %v3209 = vsel %vm3208, %v3189, %v3188
      %vm3210 = vcmask 1042434
      %v3211 = vsel %vm3210, %v3190, %v3209
      %vm3212 = vcmask 1043459
      %v3213 = vsel %vm3212, %v3191, %v3211
      %s3215 = smul.u32 %s1502, 16
      %s3216 = scalar_lea.vmem [#allocation3], %s3215
      %3217 = vst [vmem:[%s3216] sm:$0xf] %v3213
      %v3222 = vsel %vm3208, %v3193, %v3192
      %v3223 = vsel %vm3210, %v3194, %v3222
      %v3224 = vsel %vm3212, %v3195, %v3223
      %3226 = vst [vmem:[%s3216 + $0x4] sm:$0xf] %v3224
      %v3231 = vsel %vm3208, %v3197, %v3196
      %v3232 = vsel %vm3210, %v3198, %v3231
      %v3233 = vsel %vm3212, %v3199, %v3232
      %3235 = vst [vmem:[%s3216 + $0x8] sm:$0xf] %v3233
      %v3240 = vsel %vm3208, %v3201, %v3200
      %v3241 = vsel %vm3210, %v3202, %v3240
      %v3242 = vsel %vm3212, %v3203, %v3241
      %3244 = vst [vmem:[%s3216 + $0xc] sm:$0xf] %v3242
      %s3245 = sld [smem:[#allocation9 + %s1503]]
      %v3246 = vstv %s3245
      %v3247 = vadd.f32 %v1518, %v3246
      %v3248 = vadd.f32 %v1519, %v3246
      %v3249 = vadd.f32 %v1520, %v3246
      %v3250 = vadd.f32 %v1521, %v3246
      %v3251 = vadd.f32 %v1522, %v3246
      %v3252 = vadd.f32 %v1523, %v3246
      %v3253 = vadd.f32 %v1524, %v3246
      %v3254 = vadd.f32 %v1525, %v3246
      %v3255 = vmax.f32 %v3247, %v3248
      %v3256 = vmax.f32 %v3249, %v3250
      %v3257 = vmax.f32 %v3251, %v3252
      %v3258 = vmax.f32 %v3253, %v3254
      %v3263 = vcombine.high %v3255, %v3255
      %v3265 = vunpack.c.l.s4 1983009808
      %v3266 = vunpack.c.0.s8 %v3265
      %v3267 = vlaneseq
      %v3268 = vshrl.u32 %v3267, 7
      %v3269 = vsub.s32 %v3266, %v3268
      %v3270 = vrot.slane %v3255, %v3269
      %v3272 = vunpack.c.l.s4 1983009808
      %v3273 = vunpack.c.0.s8 %v3272
      %v3274 = vlaneseq
      %v3275 = vshrl.u32 %v3274, 7
      %v3276 = vsub.s32 %v3273, %v3275
      %v3277 = vrot.slane %v3263, %v3276
      %v3278 = vcombine.high %v3270, %v3270
      %v3279 = vcombine.high %v3277, %v3277
      %v3280 = vcombine.high %v3256, %v3256
      %v3282 = vunpack.c.l.s4 1983009808
      %v3283 = vunpack.c.0.s8 %v3282
      %v3284 = vlaneseq
      %v3285 = vshrl.u32 %v3284, 7
      %v3286 = vsub.s32 %v3283, %v3285
      %v3287 = vrot.slane %v3256, %v3286
      %v3289 = vunpack.c.l.s4 1983009808
      %v3290 = vunpack.c.0.s8 %v3289
      %v3291 = vlaneseq
      %v3292 = vshrl.u32 %v3291, 7
      %v3293 = vsub.s32 %v3290, %v3292
      %v3294 = vrot.slane %v3280, %v3293
      %v3295 = vcombine.high %v3287, %v3287
      %v3296 = vcombine.high %v3294, %v3294
      %v3297 = vcombine.high %v3257, %v3257
      %v3299 = vunpack.c.l.s4 1983009808
      %v3300 = vunpack.c.0.s8 %v3299
      %v3301 = vlaneseq
      %v3302 = vshrl.u32 %v3301, 7
      %v3303 = vsub.s32 %v3300, %v3302
      %v3304 = vrot.slane %v3257, %v3303
      %v3306 = vunpack.c.l.s4 1983009808
      %v3307 = vunpack.c.0.s8 %v3306
      %v3308 = vlaneseq
      %v3309 = vshrl.u32 %v3308, 7
      %v3310 = vsub.s32 %v3307, %v3309
      %v3311 = vrot.slane %v3297, %v3310
      %v3312 = vcombine.high %v3304, %v3304
      %v3313 = vcombine.high %v3311, %v3311
      %v3314 = vcombine.high %v3258, %v3258
      %v3316 = vunpack.c.l.s4 1983009808
      %v3317 = vunpack.c.0.s8 %v3316
      %v3318 = vlaneseq
      %v3319 = vshrl.u32 %v3318, 7
      %v3320 = vsub.s32 %v3317, %v3319
      %v3321 = vrot.slane %v3258, %v3320
      %v3323 = vunpack.c.l.s4 1983009808
      %v3324 = vunpack.c.0.s8 %v3323
      %v3325 = vlaneseq
      %v3326 = vshrl.u32 %v3325, 7
      %v3327 = vsub.s32 %v3324, %v3326
      %v3328 = vrot.slane %v3314, %v3327
      %v3329 = vcombine.high %v3321, %v3321
      %v3330 = vcombine.high %v3328, %v3328
      %v3347 = vsel %vm3075, %v3270, -inf
      %v3348 = vrot.slane %v3347, 4
      %v3349 = vmax.f32 %v3347, %v3348
      %v3350 = vrot.slane %v3349, 2
      %v3351 = vmax.f32 %v3349, %v3350
      %v3352 = vrot.slane %v3351, 1
      %v3353 = vmax.f32 %v3351, %v3352
      %v3354 = vsel %vm3075, %v3278, -inf
      %v3355 = vrot.slane %v3354, 4
      %v3356 = vmax.f32 %v3354, %v3355
      %v3357 = vrot.slane %v3356, 2
      %v3358 = vmax.f32 %v3356, %v3357
      %v3359 = vrot.slane %v3358, 1
      %v3360 = vmax.f32 %v3358, %v3359
      %v3361 = vsel %vm3075, %v3277, -inf
      %v3362 = vrot.slane %v3361, 4
      %v3363 = vmax.f32 %v3361, %v3362
      %v3364 = vrot.slane %v3363, 2
      %v3365 = vmax.f32 %v3363, %v3364
      %v3366 = vrot.slane %v3365, 1
      %v3367 = vmax.f32 %v3365, %v3366
      %v3368 = vsel %vm3075, %v3279, -inf
      %v3369 = vrot.slane %v3368, 4
      %v3370 = vmax.f32 %v3368, %v3369
      %v3371 = vrot.slane %v3370, 2
      %v3372 = vmax.f32 %v3370, %v3371
      %v3373 = vrot.slane %v3372, 1
      %v3374 = vmax.f32 %v3372, %v3373
      %v3375 = vsel %vm3075, %v3287, -inf
      %v3376 = vrot.slane %v3375, 4
      %v3377 = vmax.f32 %v3375, %v3376
      %v3378 = vrot.slane %v3377, 2
      %v3379 = vmax.f32 %v3377, %v3378
      %v3380 = vrot.slane %v3379, 1
      %v3381 = vmax.f32 %v3379, %v3380
      %v3382 = vsel %vm3075, %v3295, -inf
      %v3383 = vrot.slane %v3382, 4
      %v3384 = vmax.f32 %v3382, %v3383
      %v3385 = vrot.slane %v3384, 2
      %v3386 = vmax.f32 %v3384, %v3385
      %v3387 = vrot.slane %v3386, 1
      %v3388 = vmax.f32 %v3386, %v3387
      %v3389 = vsel %vm3075, %v3294, -inf
      %v3390 = vrot.slane %v3389, 4
      %v3391 = vmax.f32 %v3389, %v3390
      %v3392 = vrot.slane %v3391, 2
      %v3393 = vmax.f32 %v3391, %v3392
      %v3394 = vrot.slane %v3393, 1
      %v3395 = vmax.f32 %v3393, %v3394
      %v3396 = vsel %vm3075, %v3296, -inf
      %v3397 = vrot.slane %v3396, 4
      %v3398 = vmax.f32 %v3396, %v3397
      %v3399 = vrot.slane %v3398, 2
      %v3400 = vmax.f32 %v3398, %v3399
      %v3401 = vrot.slane %v3400, 1
      %v3402 = vmax.f32 %v3400, %v3401
      %v3403 = vsel %vm3075, %v3304, -inf
      %v3404 = vrot.slane %v3403, 4
      %v3405 = vmax.f32 %v3403, %v3404
      %v3406 = vrot.slane %v3405, 2
      %v3407 = vmax.f32 %v3405, %v3406
      %v3408 = vrot.slane %v3407, 1
      %v3409 = vmax.f32 %v3407, %v3408
      %v3410 = vsel %vm3075, %v3312, -inf
      %v3411 = vrot.slane %v3410, 4
      %v3412 = vmax.f32 %v3410, %v3411
      %v3413 = vrot.slane %v3412, 2
      %v3414 = vmax.f32 %v3412, %v3413
      %v3415 = vrot.slane %v3414, 1
      %v3416 = vmax.f32 %v3414, %v3415
      %v3417 = vsel %vm3075, %v3311, -inf
      %v3418 = vrot.slane %v3417, 4
      %v3419 = vmax.f32 %v3417, %v3418
      %v3420 = vrot.slane %v3419, 2
      %v3421 = vmax.f32 %v3419, %v3420
      %v3422 = vrot.slane %v3421, 1
      %v3423 = vmax.f32 %v3421, %v3422
      %v3424 = vsel %vm3075, %v3313, -inf
      %v3425 = vrot.slane %v3424, 4
      %v3426 = vmax.f32 %v3424, %v3425
      %v3427 = vrot.slane %v3426, 2
      %v3428 = vmax.f32 %v3426, %v3427
      %v3429 = vrot.slane %v3428, 1
      %v3430 = vmax.f32 %v3428, %v3429
      %v3431 = vsel %vm3075, %v3321, -inf
      %v3432 = vrot.slane %v3431, 4
      %v3433 = vmax.f32 %v3431, %v3432
      %v3434 = vrot.slane %v3433, 2
      %v3435 = vmax.f32 %v3433, %v3434
      %v3436 = vrot.slane %v3435, 1
      %v3437 = vmax.f32 %v3435, %v3436
      %v3438 = vsel %vm3075, %v3329, -inf
      %v3439 = vrot.slane %v3438, 4
      %v3440 = vmax.f32 %v3438, %v3439
      %v3441 = vrot.slane %v3440, 2
      %v3442 = vmax.f32 %v3440, %v3441
      %v3443 = vrot.slane %v3442, 1
      %v3444 = vmax.f32 %v3442, %v3443
      %v3445 = vsel %vm3075, %v3328, -inf
      %v3446 = vrot.slane %v3445, 4
      %v3447 = vmax.f32 %v3445, %v3446
      %v3448 = vrot.slane %v3447, 2
      %v3449 = vmax.f32 %v3447, %v3448
      %v3450 = vrot.slane %v3449, 1
      %v3451 = vmax.f32 %v3449, %v3450
      %v3452 = vsel %vm3075, %v3330, -inf
      %v3453 = vrot.slane %v3452, 4
      %v3454 = vmax.f32 %v3452, %v3453
      %v3455 = vrot.slane %v3454, 2
      %v3456 = vmax.f32 %v3454, %v3455
      %v3457 = vrot.slane %v3456, 1
      %v3458 = vmax.f32 %v3456, %v3457
      %v3459 = vmax.f32 %v3353, 0.0
      %v3460 = vmax.f32 %v3360, 0.0
      %v3461 = vmax.f32 %v3367, 0.0
      %v3462 = vmax.f32 %v3374, 0.0
      %v3463 = vmax.f32 %v3381, 0.0
      %v3464 = vmax.f32 %v3388, 0.0
      %v3465 = vmax.f32 %v3395, 0.0
      %v3466 = vmax.f32 %v3402, 0.0
      %v3467 = vmax.f32 %v3409, 0.0
      %v3468 = vmax.f32 %v3416, 0.0
      %v3469 = vmax.f32 %v3423, 0.0
      %v3470 = vmax.f32 %v3430, 0.0
      %v3471 = vmax.f32 %v3437, 0.0
      %v3472 = vmax.f32 %v3444, 0.0
      %v3473 = vmax.f32 %v3451, 0.0
      %v3474 = vmax.f32 %v3458, 0.0
      %v3479 = vsel %vm3208, %v3460, %v3459
      %v3480 = vsel %vm3210, %v3461, %v3479
      %v3481 = vsel %vm3212, %v3462, %v3480
      %s3483 = smul.u32 %s1503, 16
      %s3484 = scalar_lea.vmem [#allocation3], %s3483
      %3485 = vst [vmem:[%s3484] sm:$0xf] %v3481
      %v3490 = vsel %vm3208, %v3464, %v3463
      %v3491 = vsel %vm3210, %v3465, %v3490
      %v3492 = vsel %vm3212, %v3466, %v3491
      %3494 = vst [vmem:[%s3484 + $0x4] sm:$0xf] %v3492
      %v3499 = vsel %vm3208, %v3468, %v3467
      %v3500 = vsel %vm3210, %v3469, %v3499
      %v3501 = vsel %vm3212, %v3470, %v3500
      %3503 = vst [vmem:[%s3484 + $0x8] sm:$0xf] %v3501
      %v3508 = vsel %vm3208, %v3472, %v3471
      %v3509 = vsel %vm3210, %v3473, %v3508
      %v3510 = vsel %vm3212, %v3474, %v3509
      %3512 = vst [vmem:[%s3484 + $0xc] sm:$0xf] %v3510
    $region72: #{cnn_mnist_forward.1} parent=1 // loop_footer
      %s1501 = sadd.s32 1, %s1497
    $region73: #{cnn_mnist_forward.1} parent=1 // loop_footer_branch
      %1496 = sbr.rel target = $region69
    $region74: #{cnn_mnist_forward.1} parent=1 // loop_exit
      _
    %v3513 = vld [vmem:[#allocation3] sm:$0xff]
    %v3514 = vld [vmem:[#allocation3 + $0x8] sm:$0xff]
    %v3515 = vld [vmem:[#allocation3 + $0x10] sm:$0xff]
    %v3516 = vld [vmem:[#allocation3 + $0x18] sm:$0xff]
    %v3517 = vld [vmem:[#allocation3 + $0x20] sm:$0xff]
    %v3518 = vld [vmem:[#allocation3 + $0x28] sm:$0xff]
    %v3519 = vld [vmem:[#allocation3 + $0x30] sm:$0xff]
    %v3520 = vld [vmem:[#allocation3 + $0x38] sm:$0xff]
    %v3521 = vld [vmem:[#allocation3 + $0x40] sm:$0xff]
    %v3522 = vld [vmem:[#allocation3 + $0x48] sm:$0xff]
    %v3523 = vld [vmem:[#allocation3 + $0x50] sm:$0xff]
    %v3524 = vld [vmem:[#allocation3 + $0x58] sm:$0xff]
    %v3525 = vld [vmem:[#allocation3 + $0x60] sm:$0xff]
    %v3526 = vld [vmem:[#allocation3 + $0x68] sm:$0xff]
    %v3527 = vld [vmem:[#allocation3 + $0x70] sm:$0xff]
    %v3528 = vld [vmem:[#allocation3 + $0x78] sm:$0xff]
    %v3529 = vld [vmem:[#allocation3 + $0x80] sm:$0xff]
    %v3530 = vld [vmem:[#allocation3 + $0x88] sm:$0xff]
    %v3531 = vld [vmem:[#allocation3 + $0x90] sm:$0xff]
    %v3532 = vld [vmem:[#allocation3 + $0x98] sm:$0xff]
    %v3533 = vld [vmem:[#allocation3 + $0xa0] sm:$0xff]
    %v3534 = vld [vmem:[#allocation3 + $0xa8] sm:$0xff]
    %v3535 = vld [vmem:[#allocation3 + $0xb0] sm:$0xff]
    %v3536 = vld [vmem:[#allocation3 + $0xb8] sm:$0xff]
    %v3537 = vld [vmem:[#allocation3 + $0xc0] sm:$0xff]
    %v3538 = vld [vmem:[#allocation3 + $0xc8] sm:$0xff]
    %v3539 = vld [vmem:[#allocation3 + $0xd0] sm:$0xff]
    %v3540 = vld [vmem:[#allocation3 + $0xd8] sm:$0xff]
    %v3541 = vld [vmem:[#allocation3 + $0xe0] sm:$0xff]
    %v3542 = vld [vmem:[#allocation3 + $0xe8] sm:$0xff]
    %v3543 = vld [vmem:[#allocation3 + $0xf0] sm:$0xff]
    %v3544 = vld [vmem:[#allocation3 + $0xf8] sm:$0xff]
    %v3545 = vld [vmem:[#allocation3 + $0x100] sm:$0xff]
    %v3546 = vld [vmem:[#allocation3 + $0x108] sm:$0xff]
    %v3547 = vld [vmem:[#allocation3 + $0x110] sm:$0xff]
    %v3548 = vld [vmem:[#allocation3 + $0x118] sm:$0xff]
    %v3549 = vld [vmem:[#allocation3 + $0x120] sm:$0xff]
    %v3550 = vld [vmem:[#allocation3 + $0x128] sm:$0xff]
    %v3551 = vld [vmem:[#allocation3 + $0x130] sm:$0xff]
    %v3552 = vld [vmem:[#allocation3 + $0x138] sm:$0xff]
    %v3553 = vpack.c.bf16 %v3514, %v3513
    %v3554 = vpack.c.bf16 %v3516, %v3515
    %v3555 = vpack.c.bf16 %v3518, %v3517
    %v3556 = vpack.c.bf16 %v3520, %v3519
    %v3557 = vpack.c.bf16 %v3522, %v3521
    %v3558 = vpack.c.bf16 %v3524, %v3523
    %v3559 = vpack.c.bf16 %v3526, %v3525
    %v3560 = vpack.c.bf16 %v3528, %v3527
    %v3561 = vpack.c.bf16 %v3530, %v3529
    %v3562 = vpack.c.bf16 %v3532, %v3531
    %v3563 = vpack.c.bf16 %v3534, %v3533
    %v3564 = vpack.c.bf16 %v3536, %v3535
    %v3565 = vpack.c.bf16 %v3538, %v3537
    %v3566 = vpack.c.bf16 %v3540, %v3539
    %v3567 = vpack.c.bf16 %v3542, %v3541
    %v3568 = vpack.c.bf16 %v3544, %v3543
    %v3569 = vpack.c.bf16 %v3546, %v3545
    %v3570 = vpack.c.bf16 %v3548, %v3547
    %v3571 = vpack.c.bf16 %v3550, %v3549
    %v3572 = vpack.c.bf16 %v3552, %v3551
    %v3573 = vld [vmem:[%s5] sm:$0xff]
    %v3574 = vld [vmem:[%s5 + $0x8] sm:$0xf]
    %v3575 = vld [vmem:[%s5 + $0xc] sm:$0xff]
    %v3576 = vld [vmem:[%s5 + $0x14] sm:$0xf]
    %v3577 = vld [vmem:[%s5 + $0x18] sm:$0xff]
    %v3578 = vld [vmem:[%s5 + $0x20] sm:$0xf]
    %v3579 = vld [vmem:[%s5 + $0x24] sm:$0xff]
    %v3580 = vld [vmem:[%s5 + $0x2c] sm:$0xf]
    %v3581 = vld [vmem:[%s5 + $0x30] sm:$0xff]
    %v3582 = vld [vmem:[%s5 + $0x38] sm:$0xf]
    %v3583 = vld [vmem:[%s5 + $0x3c] sm:$0xff]
    %v3584 = vld [vmem:[%s5 + $0x44] sm:$0xf]
    %v3585 = vld [vmem:[%s5 + $0x48] sm:$0x11]
    %v3586 = vld [vmem:[%s5 + $0x50] sm:$0x1]
    %v3587 = vld [vmem:[%s6] sm:$0xff]
    %v3588 = vld [vmem:[%s6 + $0x8] sm:$0xff]
    %v3589 = vld [vmem:[%s6 + $0x10] sm:$0xff]
    %v3590 = vld [vmem:[%s6 + $0x18] sm:$0xff]
    %v3591 = vld [vmem:[%s6 + $0x20] sm:$0xff]
    %v3592 = vld [vmem:[%s6 + $0x28] sm:$0xff]
    %v3593 = vld [vmem:[%s6 + $0x30] sm:$0x3]
    %3595 = vset.pattern.permute.xlu0 0
    %3596 = vperm.xlu0 %3595, %v3587
    %v3597 = vpop.permute.xlu0 %3596
    %3600 = vset.pattern.permute.xlu0 0
    %3601 = vperm.xlu0 %3600, %v3588
    %v3602 = vpop.permute.xlu0 %3601
    %3605 = vset.pattern.permute.xlu0 0
    %3606 = vperm.xlu0 %3605, %v3589
    %v3607 = vpop.permute.xlu0 %3606
    %3610 = vset.pattern.permute.xlu0 0
    %3611 = vperm.xlu0 %3610, %v3590
    %v3612 = vpop.permute.xlu0 %3611
    %3615 = vset.pattern.permute.xlu0 0
    %3616 = vperm.xlu0 %3615, %v3591
    %v3617 = vpop.permute.xlu0 %3616
    %3620 = vset.pattern.permute.xlu0 0
    %3621 = vperm.xlu0 %3620, %v3592
    %v3622 = vpop.permute.xlu0 %3621
    %3625 = vset.pattern.permute.xlu0 0
    %3626 = vperm.xlu0 %3625, %v3593
    %v3627 = vpop.permute.xlu0 %3626
    %v3643 = vunpack.c.l.b16 %v3573
    %v3644 = vunpack.c.h.b16 %v3573
    %v3645 = vunpack.c.l.b16 %v3574
    %v3646 = vunpack.c.l.b16 %v3575
    %v3647 = vunpack.c.h.b16 %v3575
    %v3648 = vunpack.c.l.b16 %v3576
    %v3649 = vunpack.c.l.b16 %v3577
    %v3650 = vunpack.c.h.b16 %v3577
    %v3651 = vunpack.c.l.b16 %v3578
    %v3652 = vunpack.c.l.b16 %v3579
    %v3653 = vunpack.c.h.b16 %v3579
    %v3654 = vunpack.c.l.b16 %v3580
    %v3655 = vunpack.c.l.b16 %v3581
    %v3656 = vunpack.c.h.b16 %v3581
    %v3657 = vunpack.c.l.b16 %v3582
    %v3658 = vunpack.c.l.b16 %v3583
    %v3659 = vunpack.c.h.b16 %v3583
    %v3660 = vunpack.c.l.b16 %v3584
    %v3661 = vunpack.c.l.b16 %v3585
    %v3662 = vunpack.c.h.b16 %v3585
    %v3663 = vunpack.c.l.b16 %v3586
    %v3664 = vpack.c.b16 %v3646, %v3643
    %v3665 = vpack.c.b16 %v3647, %v3644
    %v3666 = vpack.c.b16 %v3648, %v3645
    %v3667 = vpack.c.b16 %v3652, %v3649
    %v3668 = vpack.c.b16 %v3653, %v3650
    %v3669 = vpack.c.b16 %v3654, %v3651
    %v3670 = vpack.c.b16 %v3658, %v3655
    %v3671 = vpack.c.b16 %v3659, %v3656
    %v3672 = vpack.c.b16 %v3660, %v3657
    %v3673 = vpack.c.b16 %v3661, %v3661
    %v3674 = vpack.c.b16 %v3662, %v3662
    %v3675 = vpack.c.b16 %v3663, %v3663
    %vm3684 = vcmask 523264
    %v3686 = vsel %vm3684, %v3666, 0
    %v3689 = vsel %vm3684, %v3669, 0
    %v3692 = vsel %vm3684, %v3672, 0
    %v3695 = vsel %vm3684, %v3675, 0
    %3697 = vmatprep.subr.bf16.mxu0 0
    %3698 = vmatpush1.bf16.msra.mxu0 %v3553
    %3699 = vmatprep.subr.bf16.mxu0 0
    %3700 = vmatpush1.bf16.msra.mxu0 %v3554
    %3701 = vmatprep.subr.bf16.mxu0 0
    %3702 = vmatpush1.bf16.msra.mxu0 %v3555
    %3703 = vmatprep.subr.bf16.mxu0 0
    %3704 = vmatpush1.bf16.msra.mxu0 %v3556
    %3705 = vmatprep.subr.bf16.mxu0 0
    %3706 = vmatpush1.bf16.msra.mxu0 %v3557
    %3707 = vmatprep.subr.bf16.mxu0 0
    %3708 = vmatpush1.bf16.msra.mxu0 %v3558
    %3709 = vmatprep.subr.bf16.mxu0 0
    %3710 = vmatpush1.bf16.msra.mxu0 %v3559
    %3711 = vmatprep.subr.bf16.mxu0 0
    %3712 = vmatpush1.bf16.msra.mxu0 %v3560
    %3713 = vmatprep.subr.bf16.mxu0 0
    %3714 = vmatpush1.bf16.msra.mxu0 %v3561
    %3715 = vmatprep.subr.bf16.mxu0 0
    %3716 = vmatpush1.bf16.msra.mxu0 %v3562
    %3717 = vmatprep.subr.bf16.mxu0 0
    %3718 = vmatpush1.bf16.msra.mxu0 %v3563
    %3719 = vmatprep.subr.bf16.mxu0 0
    %3720 = vmatpush1.bf16.msra.mxu0 %v3564
    %3721 = vmatprep.subr.bf16.mxu0 0
    %3722 = vmatpush1.bf16.msra.mxu0 %v3565
    %3723 = vmatprep.subr.bf16.mxu0 0
    %3724 = vmatpush1.bf16.msra.mxu0 %v3566
    %3725 = vmatprep.subr.bf16.mxu0 0
    %3726 = vmatpush1.bf16.msra.mxu0 %v3567
    %3727 = vmatprep.subr.bf16.mxu0 0
    %3728 = vmatpush1.bf16.msra.mxu0 %v3568
    %3729 = vmatprep.mubr.bf16.mxu0 %v3665
    %3730 = vmatmul.mubr.bf16.gmra.mrb[0].mxu0 %v3664
    %v3731 = vpop.f32.mrb[0].mxu0
    %v3732 = vadd.f32 %v3597, %v3731
    %v3733 = vpop.f32.mrb[0].mxu0
    %v3734 = vpop.f32.mrb[0].mxu0
    %v3735 = vadd.f32 %v3602, %v3734
    %v3736 = vpop.f32.mrb[0].mxu0
    %3737 = vmatprep.mubr.bf16.mxu0 %v3668
    %3738 = vmatmul.mubr.bf16.gmra.mrb[0].mxu0 %v3667
    %v3739 = vpop.f32.mrb[0].mxu0
    %v3740 = vadd.f32 %v3607, %v3739
    %v3741 = vpop.f32.mrb[0].mxu0
    %v3742 = vpop.f32.mrb[0].mxu0
    %v3743 = vadd.f32 %v3612, %v3742
    %v3744 = vpop.f32.mrb[0].mxu0
    %3745 = vmatprep.mubr.bf16.mxu0 %v3671
    %3746 = vmatmul.mubr.bf16.gmra.mrb[0].mxu0 %v3670
    %v3747 = vpop.f32.mrb[0].mxu0
    %v3748 = vadd.f32 %v3617, %v3747
    %v3749 = vpop.f32.mrb[0].mxu0
    %v3750 = vpop.f32.mrb[0].mxu0
    %v3751 = vadd.f32 %v3622, %v3750
    %v3752 = vpop.f32.mrb[0].mxu0
    %3753 = vmatprep.mubr.bf16.mxu0 %v3674
    %3754 = vmatmul.mubr.bf16.gmra.mrb[0].mxu0 %v3673
    %v3755 = vpop.f32.mrb[0].mxu0
    %v3756 = vadd.f32 %v3627, %v3755
    %v3757 = vpop.f32.mrb[0].mxu0
    %v3758 = vpop.f32.mrb[0].mxu0
    %v3759 = vpop.f32.mrb[0].mxu0
    %3760 = vdwg.mxu0
    %3761 = vmatprep.subr.bf16.mxu0 0
    %3762 = vmatpush1.bf16.msra.mxu0 %v3569
    %3763 = vmatprep.subr.bf16.mxu0 0
    %3764 = vmatpush1.bf16.msra.mxu0 %v3570
    %3765 = vmatprep.subr.bf16.mxu0 0
    %3766 = vmatpush1.bf16.msra.mxu0 %v3571
    %3767 = vmatprep.subr.bf16.mxu0 0
    %3768 = vmatpush1.bf16.msra.mxu0 %v3572
    %3769 = vmatprep.subr.bf16.mxu0 0
    %3770 = vmatpush1.bf16.msra.mxu0 0
    %3771 = vmatprep.subr.bf16.mxu0 0
    %3772 = vmatpush1.bf16.msra.mxu0 0
    %3773 = vmatprep.subr.bf16.mxu0 0
    %3774 = vmatpush1.bf16.msra.mxu0 0
    %3775 = vmatprep.subr.bf16.mxu0 0
    %3776 = vmatpush1.bf16.msra.mxu0 0
    %3777 = vmatprep.subr.bf16.mxu0 0
    %3778 = vmatpush1.bf16.msra.mxu0 0
    %3779 = vmatprep.subr.bf16.mxu0 0
    %3780 = vmatpush1.bf16.msra.mxu0 0
    %3781 = vmatprep.subr.bf16.mxu0 0
    %3782 = vmatpush1.bf16.msra.mxu0 0
    %3783 = vmatprep.subr.bf16.mxu0 0
    %3784 = vmatpush1.bf16.msra.mxu0 0
    %3785 = vmatprep.subr.bf16.mxu0 0
    %3786 = vmatpush1.bf16.msra.mxu0 0
    %3787 = vmatprep.subr.bf16.mxu0 0
    %3788 = vmatpush1.bf16.msra.mxu0 0
    %3789 = vmatprep.subr.bf16.mxu0 0
    %3790 = vmatpush1.bf16.msra.mxu0 0
    %3791 = vmatprep.subr.bf16.mxu0 0
    %3792 = vmatpush1.bf16.msra.mxu0 0
    %3793 = vmatprep.mubr.bf16.mxu0 0
    %3794 = vmatmul.mubr.bf16.gmra.mrb[0].mxu0 %v3686
    %v3795 = vpop.f32.mrb[0].mxu0
    %v3796 = vadd.f32 %v3732, %v3795
    %v3797 = vpop.f32.mrb[0].mxu0
    %v3798 = vpop.f32.mrb[0].mxu0
    %v3799 = vadd.f32 %v3735, %v3798
    %v3800 = vpop.f32.mrb[0].mxu0
    %3801 = vmatprep.mubr.bf16.mxu0 0
    %3802 = vmatmul.mubr.bf16.gmra.mrb[0].mxu0 %v3689
    %v3803 = vpop.f32.mrb[0].mxu0
    %v3804 = vadd.f32 %v3740, %v3803
    %v3805 = vpop.f32.mrb[0].mxu0
    %v3806 = vpop.f32.mrb[0].mxu0
    %v3807 = vadd.f32 %v3743, %v3806
    %v3808 = vpop.f32.mrb[0].mxu0
    %3809 = vmatprep.mubr.bf16.mxu0 0
    %3810 = vmatmul.mubr.bf16.gmra.mrb[0].mxu0 %v3692
    %v3811 = vpop.f32.mrb[0].mxu0
    %v3812 = vadd.f32 %v3748, %v3811
    %v3813 = vpop.f32.mrb[0].mxu0
    %v3814 = vpop.f32.mrb[0].mxu0
    %v3815 = vadd.f32 %v3751, %v3814
    %v3816 = vpop.f32.mrb[0].mxu0
    %3817 = vmatprep.mubr.bf16.mxu0 0
    %3818 = vmatmul.mubr.bf16.gmra.mrb[0].mxu0 %v3695
    %v3819 = vpop.f32.mrb[0].mxu0
    %v3820 = vadd.f32 %v3756, %v3819
    %v3821 = vpop.f32.mrb[0].mxu0
    %v3822 = vpop.f32.mrb[0].mxu0
    %v3823 = vpop.f32.mrb[0].mxu0
    %3824 = vdwg.mxu0
    %v3825 = vmax.f32 %v3796, 0.0
    %v3826 = vmax.f32 %v3799, 0.0
    %v3827 = vmax.f32 %v3804, 0.0
    %v3828 = vmax.f32 %v3807, 0.0
    %v3829 = vmax.f32 %v3812, 0.0
    %v3830 = vmax.f32 %v3815, 0.0
    %v3831 = vmax.f32 %v3820, 0.0
    %v3832 = vld [vmem:[%s7] sm:$0xf]
    %v3833 = vld [vmem:[%s7 + $0x4] sm:$0x1]
    %v3834 = vpack.c.bf16 %v3826, %v3825
    %v3835 = vpack.c.bf16 %v3828, %v3827
    %v3836 = vpack.c.bf16 %v3830, %v3829
    %v3837 = vpack.c.bf16 %v3831, %v3831
    %v3838 = vld [vmem:[%s8] sm:$0xff]
    %v3839 = vld [vmem:[%s8 + $0x8] sm:$0x3]
    %3841 = vset.pattern.permute.xlu0 0
    %3842 = vperm.xlu0 %3841, %v3838
    %v3843 = vpop.permute.xlu0 %3842
    %3846 = vset.pattern.permute.xlu0 0
    %3847 = vperm.xlu0 %3846, %v3839
    %v3848 = vpop.permute.xlu0 %3847
    %v3852 = vunpack.c.l.b16 %v3832
    %v3853 = vunpack.c.l.b16 %v3833
    %v3854 = vpack.c.b16 %v3853, %v3852
    %vm3855 = vcmask 408576
    %v3857 = vsel %vm3855, %v3854, 0
    %vm3859 = vcmask 1040384
    %v3861 = vsel %vm3859, %v3837, 0
    %3863 = vmatprep.subr.bf16.mxu0 0
    %3864 = vmatpush1.bf16.msra.mxu0 %v3834
    %3865 = vmatprep.subr.bf16.mxu0 0
    %3866 = vmatpush1.bf16.msra.mxu0 %v3835
    %3867 = vmatprep.subr.bf16.mxu0 0
    %3868 = vmatpush1.bf16.msra.mxu0 %v3836
    %3869 = vmatprep.subr.bf16.mxu0 0
    %3870 = vmatpush1.bf16.msra.mxu0 %v3861
    %3871 = vmatprep.subr.bf16.mxu0 0
    %3872 = vmatpush1.bf16.msra.mxu0 0
    %3873 = vmatprep.subr.bf16.mxu0 0
    %3874 = vmatpush1.bf16.msra.mxu0 0
    %3875 = vmatprep.subr.bf16.mxu0 0
    %3876 = vmatpush1.bf16.msra.mxu0 0
    %3877 = vmatprep.subr.bf16.mxu0 0
    %3878 = vmatpush1.bf16.msra.mxu0 0
    %3879 = vmatprep.subr.bf16.mxu0 0
    %3880 = vmatpush1.bf16.msra.mxu0 0
    %3881 = vmatprep.subr.bf16.mxu0 0
    %3882 = vmatpush1.bf16.msra.mxu0 0
    %3883 = vmatprep.subr.bf16.mxu0 0
    %3884 = vmatpush1.bf16.msra.mxu0 0
    %3885 = vmatprep.subr.bf16.mxu0 0
    %3886 = vmatpush1.bf16.msra.mxu0 0
    %3887 = vmatprep.subr.bf16.mxu0 0
    %3888 = vmatpush1.bf16.msra.mxu0 0
    %3889 = vmatprep.subr.bf16.mxu0 0
    %3890 = vmatpush1.bf16.msra.mxu0 0
    %3891 = vmatprep.subr.bf16.mxu0 0
    %3892 = vmatpush1.bf16.msra.mxu0 0
    %3893 = vmatprep.subr.bf16.mxu0 0
    %3894 = vmatpush1.bf16.msra.mxu0 0
    %3895 = vmatprep.mubr.bf16.mxu0 0
    %3896 = vmatmul.mubr.bf16.gmra.mrb[0].mxu0 %v3857
    %v3897 = vpop.f32.mrb[0].mxu0
    %v3898 = vadd.f32 %v3843, %v3897
    %v3899 = vpop.f32.mrb[0].mxu0
    %v3900 = vpop.f32.mrb[0].mxu0
    %v3901 = vadd.f32 %v3848, %v3900
    %v3902 = vpop.f32.mrb[0].mxu0
    %3903 = vdwg.mxu0
    %vm3904 = vcmask 1041408
    %v3905 = vsel %vm3904, %v3901, -inf
    %v3906 = vmax.f32 %v3898, %v3905
    %v3907 = vrot.slane %v3906, 4
    %v3908 = vmax.f32 %v3906, %v3907
    %v3909 = vrot.slane %v3908, 2
    %v3910 = vmax.f32 %v3908, %v3909
    %v3911 = vrot.slane %v3910, 1
    %v3912 = vmax.f32 %v3910, %v3911
    %v3913 = vsub.f32 %v3898, %v3912
    %v3914 = vsub.f32 %v3901, %v3912
    %v3915 = vmul.f32 %v3913, 1.442695
    %v3916 = vpow.pop %v3915
    %v3917 = vmul.f32 %v3914, 1.442695
    %v3918 = vpow.pop %v3917
    %v3919 = vsel %vm3904, %v3918, 0.0
    %v3920 = vadd.f32 %v3916, %v3919
    %v3921 = vrot.slane %v3920, 4
    %v3922 = vadd.f32 %v3920, %v3921
    %v3923 = vrot.slane %v3922, 2
    %v3924 = vadd.f32 %v3922, %v3923
    %v3925 = vrot.slane %v3924, 1
    %v3926 = vadd.f32 %v3924, %v3925
    %v3927 = vlog2.pop %v3926
    %v3928 = vmul.f32 %v3927, 0.6931472
    %v3929 = vsub.f32 %v3913, %v3928
    %v3930 = vsub.f32 %v3914, %v3928
    %3931 = vst [vmem:[%s9] sm:$0xff] %v3929
    %3932 = vst [vmem:[%s9 + $0x8] sm:$0x3] %v3930
    // Predicated region
    $region82: #{cnn_mnist_forward.1} parent=1 // pred_check
      _
    $region83: #{cnn_mnist_forward.1} parent=1 // pred_check_branch
      %3934 = sbr.rel (0) target = $region85
    $region84: #{cnn_mnist_forward.1} parent=1 // pred_region
      _
    $region85: #{cnn_mnist_forward.1} parent=1 // pred_fallthru
      _
    // Predicated region
    $region86: #{cnn_mnist_forward.1} parent=1 // pred_check
      _
    $region87: #{cnn_mnist_forward.1} parent=1 // pred_check_branch
      %3936 = sbr.rel (0) target = $region89
    $region88: #{cnn_mnist_forward.1} parent=1 // pred_region
      _
    $region89: #{cnn_mnist_forward.1} parent=1 // pred_fallthru
      _
    %3937 = vsyncpa [#allocation5], 1
    %3938 = vsyncpa [#allocation7], 1
    %3939 = vsyncpa [#allocation10], 1

</llo_original>
